<compile_context>
chip_gen: v7x
topology: tpu7x:2x2x1
jax: 0.10.0
libtpu: 0.0.40
codegen_flags: <defaults>
</compile_context>

<pallas_src>
import functools

import jax
import jax.numpy as jnp
from jax import lax
from jax.experimental import pallas as pl
from jax.experimental.pallas import tpu as pltpu


_VMEM = pl.BlockSpec(memory_space=pltpu.MemorySpace.VMEM)


# ----------------------------------------------------------------------------
# Fused Pallas kernel: 2 LSTM layers + fc head, everything resident in VMEM.
# ----------------------------------------------------------------------------
def decoder_fused_kernel(
    x_ref,                           # [B, T*D]  batch-first, time folded into lanes
    wih0_ref, whh0_ref, b0_ref,      # layer 0: [D,4H], [H,4H], [1,4H]
    wih1_ref, whh1_ref, b1_ref,      # layer 1: [H,4H], [H,4H], [1,4H]
    wfc_ref, bfc_ref,                # fc head: [H,O], [1,O]
    h0_ref, c0_ref,                  # initial state: [L,B,H] each
    pred_ref,                        # [B, T*O]  (lane-dense output)
    hT_ref, cT_ref,                  # [L,B,H] each
    *, seq_len, in_dim, hidden_dim, out_dim,
):
    T, D, H, O = seq_len, in_dim, hidden_dim, out_dim

    x2 = x_ref[...]                                        # [B, T*D]
    # Per-timestep inputs as static lane slices (no transpose, no gather).
    xs = [x2[:, t * D:(t + 1) * D] for t in range(T)]      # each [B, D]

    layer_w = ((wih0_ref, whh0_ref, b0_ref),
               (wih1_ref, whh1_ref, b1_ref))

    for l, (wih_ref, whh_ref, b_ref) in enumerate(layer_w):
        w_ih = wih_ref[...]
        w_hh = whh_ref[...]
        b = b_ref[...]

        # Hoisted input projection: independent of the recurrence, so it sits
        # off the sequential critical path.  The recurrent loop below only
        # does h @ W_hh plus the elementwise gate math.
        wx = [jnp.dot(xs[t], w_ih, preferred_element_type=jnp.float32) + b
              for t in range(T)]                           # each [B, 4H]

        h = h0_ref[l]                                      # [B, H]
        c = c0_ref[l]                                      # [B, H]
        ys = []
        # Fully unrolled recurrence (T is static & small).
        for t in range(T):
            g = wx[t] + jnp.dot(h, w_hh, preferred_element_type=jnp.float32)
            # PyTorch gate order: i, f, g, o
            i_g = jax.nn.sigmoid(g[:, 0 * H:1 * H])
            f_g = jax.nn.sigmoid(g[:, 1 * H:2 * H])
            g_g = jnp.tanh(g[:, 2 * H:3 * H])
            o_g = jax.nn.sigmoid(g[:, 3 * H:4 * H])
            c = f_g * c + i_g * g_g
            h = o_g * jnp.tanh(c)
            ys.append(h)

        hT_ref[l] = h
        cT_ref[l] = c
        xs = ys                                            # feed next layer (stays on-chip)

    # Fused fc head; lane-dense stores into [B, T*O].
    w_fc = wfc_ref[...]
    b_fc = bfc_ref[...]
    for t in range(T):
        pred_t = jnp.dot(xs[t], w_fc, preferred_element_type=jnp.float32) + b_fc
        pred_ref[:, t * O:(t + 1) * O] = pred_t


# ----------------------------------------------------------------------------
# Decoder forward (matches nn.LSTM(batch_first=True, num_layers=2) + nn.Linear)
# ----------------------------------------------------------------------------
def decoder_forward(params, inputs, encoder_state):
    """inputs: [B, T, output_dim]; encoder_state: (h0, c0) each [L, B, H].

    Returns (prediction [B, T, output_dim], (hidden [L, B, H], cell [L, B, H])).
    """
    h0, c0 = encoder_state
    B, T, D = inputs.shape
    lstm = params["lstm"]
    assert len(lstm) == 2, "fused kernel is specialized to n_layers=2 (module default)"
    H = lstm[0][1].shape[0]
    w_fc, b_fc = params["fc"]
    O = w_fc.shape[-1]
    L = len(lstm)

    # Free contiguous reshape (no HBM transpose): fold time into the lane dim.
    x2 = inputs.reshape(B, T * D)

    out_shapes = (
        jax.ShapeDtypeStruct((B, T * O), jnp.float32),   # lane-dense prediction
        jax.ShapeDtypeStruct((L, B, H), jnp.float32),    # final hidden
        jax.ShapeDtypeStruct((L, B, H), jnp.float32),    # final cell
    )
    kernel = functools.partial(decoder_fused_kernel, seq_len=T, in_dim=D,
                               hidden_dim=H, out_dim=O)
    (w_ih0, w_hh0, b0), (w_ih1, w_hh1, b1) = lstm

    pred2d, hidden, cell = pl.pallas_call(
        kernel,
        out_shape=out_shapes,
        in_specs=[_VMEM] * 11,
        out_specs=(_VMEM, _VMEM, _VMEM),
        compiler_params=pltpu.CompilerParams(vmem_limit_bytes=32 * 1024 * 1024),
    )(x2, w_ih0, w_hh0, b0, w_ih1, w_hh1, b1, w_fc, b_fc, h0, c0)

    prediction = pred2d.reshape(B, T, O)   # free contiguous reshape back to [B, T, O]
    return prediction, (hidden, cell)


# ----------------------------------------------------------------------------
# Pure-JAX reference (same math, lax.scan) for correctness checking
# ----------------------------------------------------------------------------
def decoder_forward_ref(params, inputs, encoder_state):
    h0, c0 = encoder_state
    x_tm = jnp.transpose(inputs, (1, 0, 2))
    h_finals, c_finals = [], []
    layer_in = x_tm
    for l, (w_ih, w_hh, b) in enumerate(params["lstm"]):
        H = w_hh.shape[0]

        def step(carry, x_t, w_ih=w_ih, w_hh=w_hh, b=b, H=H):
            h, c = carry
            g = x_t @ w_ih + h @ w_hh + b
            i = jax.nn.sigmoid(g[:, :H])
            f = jax.nn.sigmoid(g[:, H:2 * H])
            gg = jnp.tanh(g[:, 2 * H:3 * H])
            o = jax.nn.sigmoid(g[:, 3 * H:])
            c_new = f * c + i * gg
            h_new = o * jnp.tanh(c_new)
            return (h_new, c_new), h_new

        (hT, cT), ys = lax.scan(step, (h0[l], c0[l]), layer_in)
        layer_in = ys
        h_finals.append(hT)
        c_finals.append(cT)
    w_fc, b_fc = params["fc"]
    pred = layer_in @ w_fc + b_fc
    return (jnp.transpose(pred, (1, 0, 2)),
            (jnp.stack(h_finals, 0), jnp.stack(c_finals, 0)))


# ----------------------------------------------------------------------------
# Deterministic parameter init (shapes follow nn.LSTM / nn.Linear)
# ----------------------------------------------------------------------------
def init_params(key, output_dim, hidden_dim, n_layers):
    params = {"lstm": []}
    in_dim = output_dim
    scale = 1.0 / jnp.sqrt(hidden_dim)
    for _ in range(n_layers):
        key, k1, k2, k3, k4 = jax.random.split(key, 5)
        w_ih = scale * jax.random.normal(k1, (in_dim, 4 * hidden_dim), jnp.float32)
        w_hh = scale * jax.random.normal(k2, (hidden_dim, 4 * hidden_dim), jnp.float32)
        b_ih = scale * jax.random.normal(k3, (4 * hidden_dim,), jnp.float32)
        b_hh = scale * jax.random.normal(k4, (4 * hidden_dim,), jnp.float32)
        params["lstm"].append((w_ih, w_hh, (b_ih + b_hh)[None, :]))
        in_dim = hidden_dim
    key, k1, k2 = jax.random.split(key, 3)
    w_fc = scale * jax.random.normal(k1, (hidden_dim, output_dim), jnp.float32)
    b_fc = scale * jax.random.normal(k2, (1, output_dim), jnp.float32)
    params["fc"] = (w_fc, b_fc)
    return params


if __name__ == "__main__":
    OUTPUT_DIM = 16   # spectrogram dims per frame
    HIDDEN_DIM = 32
    N_LAYERS = 2
    BATCH = 2
    SEQ = 8

    key = jax.random.PRNGKey(0)
    key, kp, kx, kh, kc = jax.random.split(key, 5)

    params = init_params(kp, OUTPUT_DIM, HIDDEN_DIM, N_LAYERS)
    inputs = jax.random.normal(kx, (BATCH, SEQ, OUTPUT_DIM), jnp.float32)
    h0 = jax.random.normal(kh, (N_LAYERS, BATCH, HIDDEN_DIM), jnp.float32)
    c0 = jax.random.normal(kc, (N_LAYERS, BATCH, HIDDEN_DIM), jnp.float32)

    pred, (hidden, cell) = jax.jit(decoder_forward)(params, inputs, (h0, c0))
    jax.block_until_ready((pred, hidden, cell))

    pred_r, (hidden_r, cell_r) = decoder_forward_ref(params, inputs, (h0, c0))

    assert pred.shape == (BATCH, SEQ, OUTPUT_DIM)
    assert hidden.shape == (N_LAYERS, BATCH, HIDDEN_DIM)
    assert cell.shape == (N_LAYERS, BATCH, HIDDEN_DIM)
    assert jnp.allclose(pred, pred_r, atol=1e-4, rtol=1e-4)
    assert jnp.allclose(hidden, hidden_r, atol=1e-4, rtol=1e-4)
    assert jnp.allclose(cell, cell_r, atol=1e-4, rtol=1e-4)

    print("KERNEL_OK")
</pallas_src>

<mosaic_0001>
module attributes {stable_mosaic.version = 11 : i64} {
  func.func @decoder_fused_kernel(%arg0: memref<2x128xf32, #tpu.memory_space<vmem>>, %arg1: memref<16x128xf32, #tpu.memory_space<vmem>>, %arg2: memref<32x128xf32, #tpu.memory_space<vmem>>, %arg3: memref<1x128xf32, #tpu.memory_space<vmem>>, %arg4: memref<32x128xf32, #tpu.memory_space<vmem>>, %arg5: memref<32x128xf32, #tpu.memory_space<vmem>>, %arg6: memref<1x128xf32, #tpu.memory_space<vmem>>, %arg7: memref<32x16xf32, #tpu.memory_space<vmem>>, %arg8: memref<1x16xf32, #tpu.memory_space<vmem>>, %arg9: memref<2x2x32xf32, #tpu.memory_space<vmem>>, %arg10: memref<2x2x32xf32, #tpu.memory_space<vmem>>, %arg11: memref<2x128xf32, #tpu.memory_space<vmem>>, %arg12: memref<2x2x32xf32, #tpu.memory_space<vmem>>, %arg13: memref<2x2x32xf32, #tpu.memory_space<vmem>>) attributes {dimension_semantics = [], scalar_prefetch = 0 : i64, scratch_operands = 0 : i64, tpu.core_type = #tpu.core_type<tc>} {
    %c0 = arith.constant 0 : index
    %c0_0 = arith.constant 0 : index
    %0 = vector.load %arg0[%c0, %c0_0] : memref<2x128xf32, #tpu.memory_space<vmem>>, vector<2x128xf32>
    %1 = vector.extract_strided_slice %0 {offsets = [0, 0], sizes = [2, 16], strides = [1, 1]} : vector<2x128xf32> to vector<2x16xf32>
    %2 = vector.extract_strided_slice %0 {offsets = [0, 16], sizes = [2, 16], strides = [1, 1]} : vector<2x128xf32> to vector<2x16xf32>
    %3 = vector.extract_strided_slice %0 {offsets = [0, 32], sizes = [2, 16], strides = [1, 1]} : vector<2x128xf32> to vector<2x16xf32>
    %4 = vector.extract_strided_slice %0 {offsets = [0, 48], sizes = [2, 16], strides = [1, 1]} : vector<2x128xf32> to vector<2x16xf32>
    %5 = vector.extract_strided_slice %0 {offsets = [0, 64], sizes = [2, 16], strides = [1, 1]} : vector<2x128xf32> to vector<2x16xf32>
    %6 = vector.extract_strided_slice %0 {offsets = [0, 80], sizes = [2, 16], strides = [1, 1]} : vector<2x128xf32> to vector<2x16xf32>
    %7 = vector.extract_strided_slice %0 {offsets = [0, 96], sizes = [2, 16], strides = [1, 1]} : vector<2x128xf32> to vector<2x16xf32>
    %8 = vector.extract_strided_slice %0 {offsets = [0, 112], sizes = [2, 16], strides = [1, 1]} : vector<2x128xf32> to vector<2x16xf32>
    %c0_1 = arith.constant 0 : index
    %c0_2 = arith.constant 0 : index
    %9 = vector.load %arg1[%c0_1, %c0_2] : memref<16x128xf32, #tpu.memory_space<vmem>>, vector<16x128xf32>
    %c0_3 = arith.constant 0 : index
    %c0_4 = arith.constant 0 : index
    %10 = vector.load %arg2[%c0_3, %c0_4] : memref<32x128xf32, #tpu.memory_space<vmem>>, vector<32x128xf32>
    %c0_5 = arith.constant 0 : index
    %c0_6 = arith.constant 0 : index
    %11 = vector.load %arg3[%c0_5, %c0_6] : memref<1x128xf32, #tpu.memory_space<vmem>>, vector<1x128xf32>
    %cst = arith.constant dense<0.000000e+00> : vector<2x128xf32>
    %12 = tpu.matmul %1, %9, %cst {dimension_numbers = #tpu.dot_dimension_numbers<[1], [0], [0], [1], [0, 0, 1, 1], [], []>} : vector<2x16xf32>, vector<16x128xf32>, vector<2x128xf32> -> vector<2x128xf32>
    %13 = vector.broadcast %11 : vector<1x128xf32> to vector<2x128xf32>
    %14 = arith.addf %12, %13 : vector<2x128xf32>
    %cst_7 = arith.constant dense<0.000000e+00> : vector<2x128xf32>
    %15 = tpu.matmul %2, %9, %cst_7 {dimension_numbers = #tpu.dot_dimension_numbers<[1], [0], [0], [1], [0, 0, 1, 1], [], []>} : vector<2x16xf32>, vector<16x128xf32>, vector<2x128xf32> -> vector<2x128xf32>
    %16 = vector.broadcast %11 : vector<1x128xf32> to vector<2x128xf32>
    %17 = arith.addf %15, %16 : vector<2x128xf32>
    %cst_8 = arith.constant dense<0.000000e+00> : vector<2x128xf32>
    %18 = tpu.matmul %3, %9, %cst_8 {dimension_numbers = #tpu.dot_dimension_numbers<[1], [0], [0], [1], [0, 0, 1, 1], [], []>} : vector<2x16xf32>, vector<16x128xf32>, vector<2x128xf32> -> vector<2x128xf32>
    %19 = vector.broadcast %11 : vector<1x128xf32> to vector<2x128xf32>
    %20 = arith.addf %18, %19 : vector<2x128xf32>
    %cst_9 = arith.constant dense<0.000000e+00> : vector<2x128xf32>
    %21 = tpu.matmul %4, %9, %cst_9 {dimension_numbers = #tpu.dot_dimension_numbers<[1], [0], [0], [1], [0, 0, 1, 1], [], []>} : vector<2x16xf32>, vector<16x128xf32>, vector<2x128xf32> -> vector<2x128xf32>
    %22 = vector.broadcast %11 : vector<1x128xf32> to vector<2x128xf32>
    %23 = arith.addf %21, %22 : vector<2x128xf32>
    %cst_10 = arith.constant dense<0.000000e+00> : vector<2x128xf32>
    %24 = tpu.matmul %5, %9, %cst_10 {dimension_numbers = #tpu.dot_dimension_numbers<[1], [0], [0], [1], [0, 0, 1, 1], [], []>} : vector<2x16xf32>, vector<16x128xf32>, vector<2x128xf32> -> vector<2x128xf32>
    %25 = vector.broadcast %11 : vector<1x128xf32> to vector<2x128xf32>
    %26 = arith.addf %24, %25 : vector<2x128xf32>
    %cst_11 = arith.constant dense<0.000000e+00> : vector<2x128xf32>
    %27 = tpu.matmul %6, %9, %cst_11 {dimension_numbers = #tpu.dot_dimension_numbers<[1], [0], [0], [1], [0, 0, 1, 1], [], []>} : vector<2x16xf32>, vector<16x128xf32>, vector<2x128xf32> -> vector<2x128xf32>
    %28 = vector.broadcast %11 : vector<1x128xf32> to vector<2x128xf32>
    %29 = arith.addf %27, %28 : vector<2x128xf32>
    %cst_12 = arith.constant dense<0.000000e+00> : vector<2x128xf32>
    %30 = tpu.matmul %7, %9, %cst_12 {dimension_numbers = #tpu.dot_dimension_numbers<[1], [0], [0], [1], [0, 0, 1, 1], [], []>} : vector<2x16xf32>, vector<16x128xf32>, vector<2x128xf32> -> vector<2x128xf32>
    %31 = vector.broadcast %11 : vector<1x128xf32> to vector<2x128xf32>
    %32 = arith.addf %30, %31 : vector<2x128xf32>
    %cst_13 = arith.constant dense<0.000000e+00> : vector<2x128xf32>
    %33 = tpu.matmul %8, %9, %cst_13 {dimension_numbers = #tpu.dot_dimension_numbers<[1], [0], [0], [1], [0, 0, 1, 1], [], []>} : vector<2x16xf32>, vector<16x128xf32>, vector<2x128xf32> -> vector<2x128xf32>
    %34 = vector.broadcast %11 : vector<1x128xf32> to vector<2x128xf32>
    %35 = arith.addf %33, %34 : vector<2x128xf32>
    %c0_14 = arith.constant 0 : index
    %c0_15 = arith.constant 0 : index
    %c0_16 = arith.constant 0 : index
    %36 = vector.load %arg9[%c0_14, %c0_15, %c0_16] : memref<2x2x32xf32, #tpu.memory_space<vmem>>, vector<1x2x32xf32>
    %37 = vector.shape_cast %36 : vector<1x2x32xf32> to vector<2x32xf32>
    %c0_17 = arith.constant 0 : index
    %c0_18 = arith.constant 0 : index
    %c0_19 = arith.constant 0 : index
    %38 = vector.load %arg10[%c0_17, %c0_18, %c0_19] : memref<2x2x32xf32, #tpu.memory_space<vmem>>, vector<1x2x32xf32>
    %39 = vector.shape_cast %38 : vector<1x2x32xf32> to vector<2x32xf32>
    %cst_20 = arith.constant dense<0.000000e+00> : vector<2x128xf32>
    %40 = tpu.matmul %37, %10, %cst_20 {dimension_numbers = #tpu.dot_dimension_numbers<[1], [0], [0], [1], [0, 0, 1, 1], [], []>} : vector<2x32xf32>, vector<32x128xf32>, vector<2x128xf32> -> vector<2x128xf32>
    %41 = arith.addf %14, %40 : vector<2x128xf32>
    %42 = vector.extract_strided_slice %41 {offsets = [0, 0], sizes = [2, 32], strides = [1, 1]} : vector<2x128xf32> to vector<2x32xf32>
    %43 = arith.negf %42 : vector<2x32xf32>
    %44 = math.exp %43 : vector<2x32xf32>
    %cst_21 = arith.constant 1.000000e+00 : f32
    %45 = vector.broadcast %cst_21 : f32 to vector<2x32xf32>
    %46 = arith.addf %45, %44 : vector<2x32xf32>
    %47 = arith.divf %45, %46 : vector<2x32xf32>
    %48 = vector.extract_strided_slice %41 {offsets = [0, 32], sizes = [2, 32], strides = [1, 1]} : vector<2x128xf32> to vector<2x32xf32>
    %49 = arith.negf %48 : vector<2x32xf32>
    %50 = math.exp %49 : vector<2x32xf32>
    %cst_22 = arith.constant 1.000000e+00 : f32
    %51 = vector.broadcast %cst_22 : f32 to vector<2x32xf32>
    %52 = arith.addf %51, %50 : vector<2x32xf32>
    %53 = arith.divf %51, %52 : vector<2x32xf32>
    %54 = vector.extract_strided_slice %41 {offsets = [0, 64], sizes = [2, 32], strides = [1, 1]} : vector<2x128xf32> to vector<2x32xf32>
    %55 = math.tanh %54 : vector<2x32xf32>
    %56 = vector.extract_strided_slice %41 {offsets = [0, 96], sizes = [2, 32], strides = [1, 1]} : vector<2x128xf32> to vector<2x32xf32>
    %57 = arith.negf %56 : vector<2x32xf32>
    %58 = math.exp %57 : vector<2x32xf32>
    %cst_23 = arith.constant 1.000000e+00 : f32
    %59 = vector.broadcast %cst_23 : f32 to vector<2x32xf32>
    %60 = arith.addf %59, %58 : vector<2x32xf32>
    %61 = arith.divf %59, %60 : vector<2x32xf32>
    %62 = arith.mulf %53, %39 : vector<2x32xf32>
    %63 = arith.mulf %47, %55 : vector<2x32xf32>
    %64 = arith.addf %62, %63 : vector<2x32xf32>
    %65 = math.tanh %64 : vector<2x32xf32>
    %66 = arith.mulf %61, %65 : vector<2x32xf32>
    %cst_24 = arith.constant dense<0.000000e+00> : vector<2x128xf32>
    %67 = tpu.matmul %66, %10, %cst_24 {dimension_numbers = #tpu.dot_dimension_numbers<[1], [0], [0], [1], [0, 0, 1, 1], [], []>} : vector<2x32xf32>, vector<32x128xf32>, vector<2x128xf32> -> vector<2x128xf32>
    %68 = arith.addf %17, %67 : vector<2x128xf32>
    %69 = vector.extract_strided_slice %68 {offsets = [0, 0], sizes = [2, 32], strides = [1, 1]} : vector<2x128xf32> to vector<2x32xf32>
    %70 = arith.negf %69 : vector<2x32xf32>
    %71 = math.exp %70 : vector<2x32xf32>
    %cst_25 = arith.constant 1.000000e+00 : f32
    %72 = vector.broadcast %cst_25 : f32 to vector<2x32xf32>
    %73 = arith.addf %72, %71 : vector<2x32xf32>
    %74 = arith.divf %72, %73 : vector<2x32xf32>
    %75 = vector.extract_strided_slice %68 {offsets = [0, 32], sizes = [2, 32], strides = [1, 1]} : vector<2x128xf32> to vector<2x32xf32>
    %76 = arith.negf %75 : vector<2x32xf32>
    %77 = math.exp %76 : vector<2x32xf32>
    %cst_26 = arith.constant 1.000000e+00 : f32
    %78 = vector.broadcast %cst_26 : f32 to vector<2x32xf32>
    %79 = arith.addf %78, %77 : vector<2x32xf32>
    %80 = arith.divf %78, %79 : vector<2x32xf32>
    %81 = vector.extract_strided_slice %68 {offsets = [0, 64], sizes = [2, 32], strides = [1, 1]} : vector<2x128xf32> to vector<2x32xf32>
    %82 = math.tanh %81 : vector<2x32xf32>
    %83 = vector.extract_strided_slice %68 {offsets = [0, 96], sizes = [2, 32], strides = [1, 1]} : vector<2x128xf32> to vector<2x32xf32>
    %84 = arith.negf %83 : vector<2x32xf32>
    %85 = math.exp %84 : vector<2x32xf32>
    %cst_27 = arith.constant 1.000000e+00 : f32
    %86 = vector.broadcast %cst_27 : f32 to vector<2x32xf32>
    %87 = arith.addf %86, %85 : vector<2x32xf32>
    %88 = arith.divf %86, %87 : vector<2x32xf32>
    %89 = arith.mulf %80, %64 : vector<2x32xf32>
    %90 = arith.mulf %74, %82 : vector<2x32xf32>
    %91 = arith.addf %89, %90 : vector<2x32xf32>
    %92 = math.tanh %91 : vector<2x32xf32>
    %93 = arith.mulf %88, %92 : vector<2x32xf32>
    %cst_28 = arith.constant dense<0.000000e+00> : vector<2x128xf32>
    %94 = tpu.matmul %93, %10, %cst_28 {dimension_numbers = #tpu.dot_dimension_numbers<[1], [0], [0], [1], [0, 0, 1, 1], [], []>} : vector<2x32xf32>, vector<32x128xf32>, vector<2x128xf32> -> vector<2x128xf32>
    %95 = arith.addf %20, %94 : vector<2x128xf32>
    %96 = vector.extract_strided_slice %95 {offsets = [0, 0], sizes = [2, 32], strides = [1, 1]} : vector<2x128xf32> to vector<2x32xf32>
    %97 = arith.negf %96 : vector<2x32xf32>
    %98 = math.exp %97 : vector<2x32xf32>
    %cst_29 = arith.constant 1.000000e+00 : f32
    %99 = vector.broadcast %cst_29 : f32 to vector<2x32xf32>
    %100 = arith.addf %99, %98 : vector<2x32xf32>
    %101 = arith.divf %99, %100 : vector<2x32xf32>
    %102 = vector.extract_strided_slice %95 {offsets = [0, 32], sizes = [2, 32], strides = [1, 1]} : vector<2x128xf32> to vector<2x32xf32>
    %103 = arith.negf %102 : vector<2x32xf32>
    %104 = math.exp %103 : vector<2x32xf32>
    %cst_30 = arith.constant 1.000000e+00 : f32
    %105 = vector.broadcast %cst_30 : f32 to vector<2x32xf32>
    %106 = arith.addf %105, %104 : vector<2x32xf32>
    %107 = arith.divf %105, %106 : vector<2x32xf32>
    %108 = vector.extract_strided_slice %95 {offsets = [0, 64], sizes = [2, 32], strides = [1, 1]} : vector<2x128xf32> to vector<2x32xf32>
    %109 = math.tanh %108 : vector<2x32xf32>
    %110 = vector.extract_strided_slice %95 {offsets = [0, 96], sizes = [2, 32], strides = [1, 1]} : vector<2x128xf32> to vector<2x32xf32>
    %111 = arith.negf %110 : vector<2x32xf32>
    %112 = math.exp %111 : vector<2x32xf32>
    %cst_31 = arith.constant 1.000000e+00 : f32
    %113 = vector.broadcast %cst_31 : f32 to vector<2x32xf32>
    %114 = arith.addf %113, %112 : vector<2x32xf32>
    %115 = arith.divf %113, %114 : vector<2x32xf32>
    %116 = arith.mulf %107, %91 : vector<2x32xf32>
    %117 = arith.mulf %101, %109 : vector<2x32xf32>
    %118 = arith.addf %116, %117 : vector<2x32xf32>
    %119 = math.tanh %118 : vector<2x32xf32>
    %120 = arith.mulf %115, %119 : vector<2x32xf32>
    %cst_32 = arith.constant dense<0.000000e+00> : vector<2x128xf32>
    %121 = tpu.matmul %120, %10, %cst_32 {dimension_numbers = #tpu.dot_dimension_numbers<[1], [0], [0], [1], [0, 0, 1, 1], [], []>} : vector<2x32xf32>, vector<32x128xf32>, vector<2x128xf32> -> vector<2x128xf32>
    %122 = arith.addf %23, %121 : vector<2x128xf32>
    %123 = vector.extract_strided_slice %122 {offsets = [0, 0], sizes = [2, 32], strides = [1, 1]} : vector<2x128xf32> to vector<2x32xf32>
    %124 = arith.negf %123 : vector<2x32xf32>
    %125 = math.exp %124 : vector<2x32xf32>
    %cst_33 = arith.constant 1.000000e+00 : f32
    %126 = vector.broadcast %cst_33 : f32 to vector<2x32xf32>
    %127 = arith.addf %126, %125 : vector<2x32xf32>
    %128 = arith.divf %126, %127 : vector<2x32xf32>
    %129 = vector.extract_strided_slice %122 {offsets = [0, 32], sizes = [2, 32], strides = [1, 1]} : vector<2x128xf32> to vector<2x32xf32>
    %130 = arith.negf %129 : vector<2x32xf32>
    %131 = math.exp %130 : vector<2x32xf32>
    %cst_34 = arith.constant 1.000000e+00 : f32
    %132 = vector.broadcast %cst_34 : f32 to vector<2x32xf32>
    %133 = arith.addf %132, %131 : vector<2x32xf32>
    %134 = arith.divf %132, %133 : vector<2x32xf32>
    %135 = vector.extract_strided_slice %122 {offsets = [0, 64], sizes = [2, 32], strides = [1, 1]} : vector<2x128xf32> to vector<2x32xf32>
    %136 = math.tanh %135 : vector<2x32xf32>
    %137 = vector.extract_strided_slice %122 {offsets = [0, 96], sizes = [2, 32], strides = [1, 1]} : vector<2x128xf32> to vector<2x32xf32>
    %138 = arith.negf %137 : vector<2x32xf32>
    %139 = math.exp %138 : vector<2x32xf32>
    %cst_35 = arith.constant 1.000000e+00 : f32
    %140 = vector.broadcast %cst_35 : f32 to vector<2x32xf32>
    %141 = arith.addf %140, %139 : vector<2x32xf32>
    %142 = arith.divf %140, %141 : vector<2x32xf32>
    %143 = arith.mulf %134, %118 : vector<2x32xf32>
    %144 = arith.mulf %128, %136 : vector<2x32xf32>
    %145 = arith.addf %143, %144 : vector<2x32xf32>
    %146 = math.tanh %145 : vector<2x32xf32>
    %147 = arith.mulf %142, %146 : vector<2x32xf32>
    %cst_36 = arith.constant dense<0.000000e+00> : vector<2x128xf32>
    %148 = tpu.matmul %147, %10, %cst_36 {dimension_numbers = #tpu.dot_dimension_numbers<[1], [0], [0], [1], [0, 0, 1, 1], [], []>} : vector<2x32xf32>, vector<32x128xf32>, vector<2x128xf32> -> vector<2x128xf32>
    %149 = arith.addf %26, %148 : vector<2x128xf32>
    %150 = vector.extract_strided_slice %149 {offsets = [0, 0], sizes = [2, 32], strides = [1, 1]} : vector<2x128xf32> to vector<2x32xf32>
    %151 = arith.negf %150 : vector<2x32xf32>
    %152 = math.exp %151 : vector<2x32xf32>
    %cst_37 = arith.constant 1.000000e+00 : f32
    %153 = vector.broadcast %cst_37 : f32 to vector<2x32xf32>
    %154 = arith.addf %153, %152 : vector<2x32xf32>
    %155 = arith.divf %153, %154 : vector<2x32xf32>
    %156 = vector.extract_strided_slice %149 {offsets = [0, 32], sizes = [2, 32], strides = [1, 1]} : vector<2x128xf32> to vector<2x32xf32>
    %157 = arith.negf %156 : vector<2x32xf32>
    %158 = math.exp %157 : vector<2x32xf32>
    %cst_38 = arith.constant 1.000000e+00 : f32
    %159 = vector.broadcast %cst_38 : f32 to vector<2x32xf32>
    %160 = arith.addf %159, %158 : vector<2x32xf32>
    %161 = arith.divf %159, %160 : vector<2x32xf32>
    %162 = vector.extract_strided_slice %149 {offsets = [0, 64], sizes = [2, 32], strides = [1, 1]} : vector<2x128xf32> to vector<2x32xf32>
    %163 = math.tanh %162 : vector<2x32xf32>
    %164 = vector.extract_strided_slice %149 {offsets = [0, 96], sizes = [2, 32], strides = [1, 1]} : vector<2x128xf32> to vector<2x32xf32>
    %165 = arith.negf %164 : vector<2x32xf32>
    %166 = math.exp %165 : vector<2x32xf32>
    %cst_39 = arith.constant 1.000000e+00 : f32
    %167 = vector.broadcast %cst_39 : f32 to vector<2x32xf32>
    %168 = arith.addf %167, %166 : vector<2x32xf32>
    %169 = arith.divf %167, %168 : vector<2x32xf32>
    %170 = arith.mulf %161, %145 : vector<2x32xf32>
    %171 = arith.mulf %155, %163 : vector<2x32xf32>
    %172 = arith.addf %170, %171 : vector<2x32xf32>
    %173 = math.tanh %172 : vector<2x32xf32>
    %174 = arith.mulf %169, %173 : vector<2x32xf32>
    %cst_40 = arith.constant dense<0.000000e+00> : vector<2x128xf32>
    %175 = tpu.matmul %174, %10, %cst_40 {dimension_numbers = #tpu.dot_dimension_numbers<[1], [0], [0], [1], [0, 0, 1, 1], [], []>} : vector<2x32xf32>, vector<32x128xf32>, vector<2x128xf32> -> vector<2x128xf32>
    %176 = arith.addf %29, %175 : vector<2x128xf32>
    %177 = vector.extract_strided_slice %176 {offsets = [0, 0], sizes = [2, 32], strides = [1, 1]} : vector<2x128xf32> to vector<2x32xf32>
    %178 = arith.negf %177 : vector<2x32xf32>
    %179 = math.exp %178 : vector<2x32xf32>
    %cst_41 = arith.constant 1.000000e+00 : f32
    %180 = vector.broadcast %cst_41 : f32 to vector<2x32xf32>
    %181 = arith.addf %180, %179 : vector<2x32xf32>
    %182 = arith.divf %180, %181 : vector<2x32xf32>
    %183 = vector.extract_strided_slice %176 {offsets = [0, 32], sizes = [2, 32], strides = [1, 1]} : vector<2x128xf32> to vector<2x32xf32>
    %184 = arith.negf %183 : vector<2x32xf32>
    %185 = math.exp %184 : vector<2x32xf32>
    %cst_42 = arith.constant 1.000000e+00 : f32
    %186 = vector.broadcast %cst_42 : f32 to vector<2x32xf32>
    %187 = arith.addf %186, %185 : vector<2x32xf32>
    %188 = arith.divf %186, %187 : vector<2x32xf32>
    %189 = vector.extract_strided_slice %176 {offsets = [0, 64], sizes = [2, 32], strides = [1, 1]} : vector<2x128xf32> to vector<2x32xf32>
    %190 = math.tanh %189 : vector<2x32xf32>
    %191 = vector.extract_strided_slice %176 {offsets = [0, 96], sizes = [2, 32], strides = [1, 1]} : vector<2x128xf32> to vector<2x32xf32>
    %192 = arith.negf %191 : vector<2x32xf32>
    %193 = math.exp %192 : vector<2x32xf32>
    %cst_43 = arith.constant 1.000000e+00 : f32
    %194 = vector.broadcast %cst_43 : f32 to vector<2x32xf32>
    %195 = arith.addf %194, %193 : vector<2x32xf32>
    %196 = arith.divf %194, %195 : vector<2x32xf32>
    %197 = arith.mulf %188, %172 : vector<2x32xf32>
    %198 = arith.mulf %182, %190 : vector<2x32xf32>
    %199 = arith.addf %197, %198 : vector<2x32xf32>
    %200 = math.tanh %199 : vector<2x32xf32>
    %201 = arith.mulf %196, %200 : vector<2x32xf32>
    %cst_44 = arith.constant dense<0.000000e+00> : vector<2x128xf32>
    %202 = tpu.matmul %201, %10, %cst_44 {dimension_numbers = #tpu.dot_dimension_numbers<[1], [0], [0], [1], [0, 0, 1, 1], [], []>} : vector<2x32xf32>, vector<32x128xf32>, vector<2x128xf32> -> vector<2x128xf32>
    %203 = arith.addf %32, %202 : vector<2x128xf32>
    %204 = vector.extract_strided_slice %203 {offsets = [0, 0], sizes = [2, 32], strides = [1, 1]} : vector<2x128xf32> to vector<2x32xf32>
    %205 = arith.negf %204 : vector<2x32xf32>
    %206 = math.exp %205 : vector<2x32xf32>
    %cst_45 = arith.constant 1.000000e+00 : f32
    %207 = vector.broadcast %cst_45 : f32 to vector<2x32xf32>
    %208 = arith.addf %207, %206 : vector<2x32xf32>
    %209 = arith.divf %207, %208 : vector<2x32xf32>
    %210 = vector.extract_strided_slice %203 {offsets = [0, 32], sizes = [2, 32], strides = [1, 1]} : vector<2x128xf32> to vector<2x32xf32>
    %211 = arith.negf %210 : vector<2x32xf32>
    %212 = math.exp %211 : vector<2x32xf32>
    %cst_46 = arith.constant 1.000000e+00 : f32
    %213 = vector.broadcast %cst_46 : f32 to vector<2x32xf32>
    %214 = arith.addf %213, %212 : vector<2x32xf32>
    %215 = arith.divf %213, %214 : vector<2x32xf32>
    %216 = vector.extract_strided_slice %203 {offsets = [0, 64], sizes = [2, 32], strides = [1, 1]} : vector<2x128xf32> to vector<2x32xf32>
    %217 = math.tanh %216 : vector<2x32xf32>
    %218 = vector.extract_strided_slice %203 {offsets = [0, 96], sizes = [2, 32], strides = [1, 1]} : vector<2x128xf32> to vector<2x32xf32>
    %219 = arith.negf %218 : vector<2x32xf32>
    %220 = math.exp %219 : vector<2x32xf32>
    %cst_47 = arith.constant 1.000000e+00 : f32
    %221 = vector.broadcast %cst_47 : f32 to vector<2x32xf32>
    %222 = arith.addf %221, %220 : vector<2x32xf32>
    %223 = arith.divf %221, %222 : vector<2x32xf32>
    %224 = arith.mulf %215, %199 : vector<2x32xf32>
    %225 = arith.mulf %209, %217 : vector<2x32xf32>
    %226 = arith.addf %224, %225 : vector<2x32xf32>
    %227 = math.tanh %226 : vector<2x32xf32>
    %228 = arith.mulf %223, %227 : vector<2x32xf32>
    %cst_48 = arith.constant dense<0.000000e+00> : vector<2x128xf32>
    %229 = tpu.matmul %228, %10, %cst_48 {dimension_numbers = #tpu.dot_dimension_numbers<[1], [0], [0], [1], [0, 0, 1, 1], [], []>} : vector<2x32xf32>, vector<32x128xf32>, vector<2x128xf32> -> vector<2x128xf32>
    %230 = arith.addf %35, %229 : vector<2x128xf32>
    %231 = vector.extract_strided_slice %230 {offsets = [0, 0], sizes = [2, 32], strides = [1, 1]} : vector<2x128xf32> to vector<2x32xf32>
    %232 = arith.negf %231 : vector<2x32xf32>
    %233 = math.exp %232 : vector<2x32xf32>
    %cst_49 = arith.constant 1.000000e+00 : f32
    %234 = vector.broadcast %cst_49 : f32 to vector<2x32xf32>
    %235 = arith.addf %234, %233 : vector<2x32xf32>
    %236 = arith.divf %234, %235 : vector<2x32xf32>
    %237 = vector.extract_strided_slice %230 {offsets = [0, 32], sizes = [2, 32], strides = [1, 1]} : vector<2x128xf32> to vector<2x32xf32>
    %238 = arith.negf %237 : vector<2x32xf32>
    %239 = math.exp %238 : vector<2x32xf32>
    %cst_50 = arith.constant 1.000000e+00 : f32
    %240 = vector.broadcast %cst_50 : f32 to vector<2x32xf32>
    %241 = arith.addf %240, %239 : vector<2x32xf32>
    %242 = arith.divf %240, %241 : vector<2x32xf32>
    %243 = vector.extract_strided_slice %230 {offsets = [0, 64], sizes = [2, 32], strides = [1, 1]} : vector<2x128xf32> to vector<2x32xf32>
    %244 = math.tanh %243 : vector<2x32xf32>
    %245 = vector.extract_strided_slice %230 {offsets = [0, 96], sizes = [2, 32], strides = [1, 1]} : vector<2x128xf32> to vector<2x32xf32>
    %246 = arith.negf %245 : vector<2x32xf32>
    %247 = math.exp %246 : vector<2x32xf32>
    %cst_51 = arith.constant 1.000000e+00 : f32
    %248 = vector.broadcast %cst_51 : f32 to vector<2x32xf32>
    %249 = arith.addf %248, %247 : vector<2x32xf32>
    %250 = arith.divf %248, %249 : vector<2x32xf32>
    %251 = arith.mulf %242, %226 : vector<2x32xf32>
    %252 = arith.mulf %236, %244 : vector<2x32xf32>
    %253 = arith.addf %251, %252 : vector<2x32xf32>
    %254 = math.tanh %253 : vector<2x32xf32>
    %255 = arith.mulf %250, %254 : vector<2x32xf32>
    %c0_52 = arith.constant 0 : index
    %c0_53 = arith.constant 0 : index
    %c0_54 = arith.constant 0 : index
    %256 = vector.load %arg12[%c0_52, %c0_53, %c0_54] : memref<2x2x32xf32, #tpu.memory_space<vmem>>, vector<1x2x32xf32>
    %257 = vector.shape_cast %256 : vector<1x2x32xf32> to vector<2x32xf32>
    %258 = vector.shape_cast %255 : vector<2x32xf32> to vector<1x2x32xf32>
    tpu.vector_store %arg12[%c0_52, %c0_53, %c0_54], %258 {strides = array<i32>} : memref<2x2x32xf32, #tpu.memory_space<vmem>>, vector<1x2x32xf32>,
    %c0_55 = arith.constant 0 : index
    %c0_56 = arith.constant 0 : index
    %c0_57 = arith.constant 0 : index
    %259 = vector.load %arg13[%c0_55, %c0_56, %c0_57] : memref<2x2x32xf32, #tpu.memory_space<vmem>>, vector<1x2x32xf32>
    %260 = vector.shape_cast %259 : vector<1x2x32xf32> to vector<2x32xf32>
    %261 = vector.shape_cast %253 : vector<2x32xf32> to vector<1x2x32xf32>
    tpu.vector_store %arg13[%c0_55, %c0_56, %c0_57], %261 {strides = array<i32>} : memref<2x2x32xf32, #tpu.memory_space<vmem>>, vector<1x2x32xf32>,
    %c0_58 = arith.constant 0 : index
    %c0_59 = arith.constant 0 : index
    %262 = vector.load %arg4[%c0_58, %c0_59] : memref<32x128xf32, #tpu.memory_space<vmem>>, vector<32x128xf32>
    %c0_60 = arith.constant 0 : index
    %c0_61 = arith.constant 0 : index
    %263 = vector.load %arg5[%c0_60, %c0_61] : memref<32x128xf32, #tpu.memory_space<vmem>>, vector<32x128xf32>
    %c0_62 = arith.constant 0 : index
    %c0_63 = arith.constant 0 : index
    %264 = vector.load %arg6[%c0_62, %c0_63] : memref<1x128xf32, #tpu.memory_space<vmem>>, vector<1x128xf32>
    %cst_64 = arith.constant dense<0.000000e+00> : vector<2x128xf32>
    %265 = tpu.matmul %66, %262, %cst_64 {dimension_numbers = #tpu.dot_dimension_numbers<[1], [0], [0], [1], [0, 0, 1, 1], [], []>} : vector<2x32xf32>, vector<32x128xf32>, vector<2x128xf32> -> vector<2x128xf32>
    %266 = vector.broadcast %264 : vector<1x128xf32> to vector<2x128xf32>
    %267 = arith.addf %265, %266 : vector<2x128xf32>
    %cst_65 = arith.constant dense<0.000000e+00> : vector<2x128xf32>
    %268 = tpu.matmul %93, %262, %cst_65 {dimension_numbers = #tpu.dot_dimension_numbers<[1], [0], [0], [1], [0, 0, 1, 1], [], []>} : vector<2x32xf32>, vector<32x128xf32>, vector<2x128xf32> -> vector<2x128xf32>
    %269 = vector.broadcast %264 : vector<1x128xf32> to vector<2x128xf32>
    %270 = arith.addf %268, %269 : vector<2x128xf32>
    %cst_66 = arith.constant dense<0.000000e+00> : vector<2x128xf32>
    %271 = tpu.matmul %120, %262, %cst_66 {dimension_numbers = #tpu.dot_dimension_numbers<[1], [0], [0], [1], [0, 0, 1, 1], [], []>} : vector<2x32xf32>, vector<32x128xf32>, vector<2x128xf32> -> vector<2x128xf32>
    %272 = vector.broadcast %264 : vector<1x128xf32> to vector<2x128xf32>
    %273 = arith.addf %271, %272 : vector<2x128xf32>
    %cst_67 = arith.constant dense<0.000000e+00> : vector<2x128xf32>
    %274 = tpu.matmul %147, %262, %cst_67 {dimension_numbers = #tpu.dot_dimension_numbers<[1], [0], [0], [1], [0, 0, 1, 1], [], []>} : vector<2x32xf32>, vector<32x128xf32>, vector<2x128xf32> -> vector<2x128xf32>
    %275 = vector.broadcast %264 : vector<1x128xf32> to vector<2x128xf32>
    %276 = arith.addf %274, %275 : vector<2x128xf32>
    %cst_68 = arith.constant dense<0.000000e+00> : vector<2x128xf32>
    %277 = tpu.matmul %174, %262, %cst_68 {dimension_numbers = #tpu.dot_dimension_numbers<[1], [0], [0], [1], [0, 0, 1, 1], [], []>} : vector<2x32xf32>, vector<32x128xf32>, vector<2x128xf32> -> vector<2x128xf32>
    %278 = vector.broadcast %264 : vector<1x128xf32> to vector<2x128xf32>
    %279 = arith.addf %277, %278 : vector<2x128xf32>
    %cst_69 = arith.constant dense<0.000000e+00> : vector<2x128xf32>
    %280 = tpu.matmul %201, %262, %cst_69 {dimension_numbers = #tpu.dot_dimension_numbers<[1], [0], [0], [1], [0, 0, 1, 1], [], []>} : vector<2x32xf32>, vector<32x128xf32>, vector<2x128xf32> -> vector<2x128xf32>
    %281 = vector.broadcast %264 : vector<1x128xf32> to vector<2x128xf32>
    %282 = arith.addf %280, %281 : vector<2x128xf32>
    %cst_70 = arith.constant dense<0.000000e+00> : vector<2x128xf32>
    %283 = tpu.matmul %228, %262, %cst_70 {dimension_numbers = #tpu.dot_dimension_numbers<[1], [0], [0], [1], [0, 0, 1, 1], [], []>} : vector<2x32xf32>, vector<32x128xf32>, vector<2x128xf32> -> vector<2x128xf32>
    %284 = vector.broadcast %264 : vector<1x128xf32> to vector<2x128xf32>
    %285 = arith.addf %283, %284 : vector<2x128xf32>
    %cst_71 = arith.constant dense<0.000000e+00> : vector<2x128xf32>
    %286 = tpu.matmul %255, %262, %cst_71 {dimension_numbers = #tpu.dot_dimension_numbers<[1], [0], [0], [1], [0, 0, 1, 1], [], []>} : vector<2x32xf32>, vector<32x128xf32>, vector<2x128xf32> -> vector<2x128xf32>
    %287 = vector.broadcast %264 : vector<1x128xf32> to vector<2x128xf32>
    %288 = arith.addf %286, %287 : vector<2x128xf32>
    %c1 = arith.constant 1 : index
    %c0_72 = arith.constant 0 : index
    %c0_73 = arith.constant 0 : index
    %289 = vector.load %arg9[%c1, %c0_72, %c0_73] : memref<2x2x32xf32, #tpu.memory_space<vmem>>, vector<1x2x32xf32>
    %290 = vector.shape_cast %289 : vector<1x2x32xf32> to vector<2x32xf32>
    %c1_74 = arith.constant 1 : index
    %c0_75 = arith.constant 0 : index
    %c0_76 = arith.constant 0 : index
    %291 = vector.load %arg10[%c1_74, %c0_75, %c0_76] : memref<2x2x32xf32, #tpu.memory_space<vmem>>, vector<1x2x32xf32>
    %292 = vector.shape_cast %291 : vector<1x2x32xf32> to vector<2x32xf32>
    %cst_77 = arith.constant dense<0.000000e+00> : vector<2x128xf32>
    %293 = tpu.matmul %290, %263, %cst_77 {dimension_numbers = #tpu.dot_dimension_numbers<[1], [0], [0], [1], [0, 0, 1, 1], [], []>} : vector<2x32xf32>, vector<32x128xf32>, vector<2x128xf32> -> vector<2x128xf32>
    %294 = arith.addf %267, %293 : vector<2x128xf32>
    %295 = vector.extract_strided_slice %294 {offsets = [0, 0], sizes = [2, 32], strides = [1, 1]} : vector<2x128xf32> to vector<2x32xf32>
    %296 = arith.negf %295 : vector<2x32xf32>
    %297 = math.exp %296 : vector<2x32xf32>
    %cst_78 = arith.constant 1.000000e+00 : f32
    %298 = vector.broadcast %cst_78 : f32 to vector<2x32xf32>
    %299 = arith.addf %298, %297 : vector<2x32xf32>
    %300 = arith.divf %298, %299 : vector<2x32xf32>
    %301 = vector.extract_strided_slice %294 {offsets = [0, 32], sizes = [2, 32], strides = [1, 1]} : vector<2x128xf32> to vector<2x32xf32>
    %302 = arith.negf %301 : vector<2x32xf32>
    %303 = math.exp %302 : vector<2x32xf32>
    %cst_79 = arith.constant 1.000000e+00 : f32
    %304 = vector.broadcast %cst_79 : f32 to vector<2x32xf32>
    %305 = arith.addf %304, %303 : vector<2x32xf32>
    %306 = arith.divf %304, %305 : vector<2x32xf32>
    %307 = vector.extract_strided_slice %294 {offsets = [0, 64], sizes = [2, 32], strides = [1, 1]} : vector<2x128xf32> to vector<2x32xf32>
    %308 = math.tanh %307 : vector<2x32xf32>
    %309 = vector.extract_strided_slice %294 {offsets = [0, 96], sizes = [2, 32], strides = [1, 1]} : vector<2x128xf32> to vector<2x32xf32>
    %310 = arith.negf %309 : vector<2x32xf32>
    %311 = math.exp %310 : vector<2x32xf32>
    %cst_80 = arith.constant 1.000000e+00 : f32
    %312 = vector.broadcast %cst_80 : f32 to vector<2x32xf32>
    %313 = arith.addf %312, %311 : vector<2x32xf32>
    %314 = arith.divf %312, %313 : vector<2x32xf32>
    %315 = arith.mulf %306, %292 : vector<2x32xf32>
    %316 = arith.mulf %300, %308 : vector<2x32xf32>
    %317 = arith.addf %315, %316 : vector<2x32xf32>
    %318 = math.tanh %317 : vector<2x32xf32>
    %319 = arith.mulf %314, %318 : vector<2x32xf32>
    %cst_81 = arith.constant dense<0.000000e+00> : vector<2x128xf32>
    %320 = tpu.matmul %319, %263, %cst_81 {dimension_numbers = #tpu.dot_dimension_numbers<[1], [0], [0], [1], [0, 0, 1, 1], [], []>} : vector<2x32xf32>, vector<32x128xf32>, vector<2x128xf32> -> vector<2x128xf32>
    %321 = arith.addf %270, %320 : vector<2x128xf32>
    %322 = vector.extract_strided_slice %321 {offsets = [0, 0], sizes = [2, 32], strides = [1, 1]} : vector<2x128xf32> to vector<2x32xf32>
    %323 = arith.negf %322 : vector<2x32xf32>
    %324 = math.exp %323 : vector<2x32xf32>
    %cst_82 = arith.constant 1.000000e+00 : f32
    %325 = vector.broadcast %cst_82 : f32 to vector<2x32xf32>
    %326 = arith.addf %325, %324 : vector<2x32xf32>
    %327 = arith.divf %325, %326 : vector<2x32xf32>
    %328 = vector.extract_strided_slice %321 {offsets = [0, 32], sizes = [2, 32], strides = [1, 1]} : vector<2x128xf32> to vector<2x32xf32>
    %329 = arith.negf %328 : vector<2x32xf32>
    %330 = math.exp %329 : vector<2x32xf32>
    %cst_83 = arith.constant 1.000000e+00 : f32
    %331 = vector.broadcast %cst_83 : f32 to vector<2x32xf32>
    %332 = arith.addf %331, %330 : vector<2x32xf32>
    %333 = arith.divf %331, %332 : vector<2x32xf32>
    %334 = vector.extract_strided_slice %321 {offsets = [0, 64], sizes = [2, 32], strides = [1, 1]} : vector<2x128xf32> to vector<2x32xf32>
    %335 = math.tanh %334 : vector<2x32xf32>
    %336 = vector.extract_strided_slice %321 {offsets = [0, 96], sizes = [2, 32], strides = [1, 1]} : vector<2x128xf32> to vector<2x32xf32>
    %337 = arith.negf %336 : vector<2x32xf32>
    %338 = math.exp %337 : vector<2x32xf32>
    %cst_84 = arith.constant 1.000000e+00 : f32
    %339 = vector.broadcast %cst_84 : f32 to vector<2x32xf32>
    %340 = arith.addf %339, %338 : vector<2x32xf32>
    %341 = arith.divf %339, %340 : vector<2x32xf32>
    %342 = arith.mulf %333, %317 : vector<2x32xf32>
    %343 = arith.mulf %327, %335 : vector<2x32xf32>
    %344 = arith.addf %342, %343 : vector<2x32xf32>
    %345 = math.tanh %344 : vector<2x32xf32>
    %346 = arith.mulf %341, %345 : vector<2x32xf32>
    %cst_85 = arith.constant dense<0.000000e+00> : vector<2x128xf32>
    %347 = tpu.matmul %346, %263, %cst_85 {dimension_numbers = #tpu.dot_dimension_numbers<[1], [0], [0], [1], [0, 0, 1, 1], [], []>} : vector<2x32xf32>, vector<32x128xf32>, vector<2x128xf32> -> vector<2x128xf32>
    %348 = arith.addf %273, %347 : vector<2x128xf32>
    %349 = vector.extract_strided_slice %348 {offsets = [0, 0], sizes = [2, 32], strides = [1, 1]} : vector<2x128xf32> to vector<2x32xf32>
    %350 = arith.negf %349 : vector<2x32xf32>
    %351 = math.exp %350 : vector<2x32xf32>
    %cst_86 = arith.constant 1.000000e+00 : f32
    %352 = vector.broadcast %cst_86 : f32 to vector<2x32xf32>
    %353 = arith.addf %352, %351 : vector<2x32xf32>
    %354 = arith.divf %352, %353 : vector<2x32xf32>
    %355 = vector.extract_strided_slice %348 {offsets = [0, 32], sizes = [2, 32], strides = [1, 1]} : vector<2x128xf32> to vector<2x32xf32>
    %356 = arith.negf %355 : vector<2x32xf32>
    %357 = math.exp %356 : vector<2x32xf32>
    %cst_87 = arith.constant 1.000000e+00 : f32
    %358 = vector.broadcast %cst_87 : f32 to vector<2x32xf32>
    %359 = arith.addf %358, %357 : vector<2x32xf32>
    %360 = arith.divf %358, %359 : vector<2x32xf32>
    %361 = vector.extract_strided_slice %348 {offsets = [0, 64], sizes = [2, 32], strides = [1, 1]} : vector<2x128xf32> to vector<2x32xf32>
    %362 = math.tanh %361 : vector<2x32xf32>
    %363 = vector.extract_strided_slice %348 {offsets = [0, 96], sizes = [2, 32], strides = [1, 1]} : vector<2x128xf32> to vector<2x32xf32>
    %364 = arith.negf %363 : vector<2x32xf32>
    %365 = math.exp %364 : vector<2x32xf32>
    %cst_88 = arith.constant 1.000000e+00 : f32
    %366 = vector.broadcast %cst_88 : f32 to vector<2x32xf32>
    %367 = arith.addf %366, %365 : vector<2x32xf32>
    %368 = arith.divf %366, %367 : vector<2x32xf32>
    %369 = arith.mulf %360, %344 : vector<2x32xf32>
    %370 = arith.mulf %354, %362 : vector<2x32xf32>
    %371 = arith.addf %369, %370 : vector<2x32xf32>
    %372 = math.tanh %371 : vector<2x32xf32>
    %373 = arith.mulf %368, %372 : vector<2x32xf32>
    %cst_89 = arith.constant dense<0.000000e+00> : vector<2x128xf32>
    %374 = tpu.matmul %373, %263, %cst_89 {dimension_numbers = #tpu.dot_dimension_numbers<[1], [0], [0], [1], [0, 0, 1, 1], [], []>} : vector<2x32xf32>, vector<32x128xf32>, vector<2x128xf32> -> vector<2x128xf32>
    %375 = arith.addf %276, %374 : vector<2x128xf32>
    %376 = vector.extract_strided_slice %375 {offsets = [0, 0], sizes = [2, 32], strides = [1, 1]} : vector<2x128xf32> to vector<2x32xf32>
    %377 = arith.negf %376 : vector<2x32xf32>
    %378 = math.exp %377 : vector<2x32xf32>
    %cst_90 = arith.constant 1.000000e+00 : f32
    %379 = vector.broadcast %cst_90 : f32 to vector<2x32xf32>
    %380 = arith.addf %379, %378 : vector<2x32xf32>
    %381 = arith.divf %379, %380 : vector<2x32xf32>
    %382 = vector.extract_strided_slice %375 {offsets = [0, 32], sizes = [2, 32], strides = [1, 1]} : vector<2x128xf32> to vector<2x32xf32>
    %383 = arith.negf %382 : vector<2x32xf32>
    %384 = math.exp %383 : vector<2x32xf32>
    %cst_91 = arith.constant 1.000000e+00 : f32
    %385 = vector.broadcast %cst_91 : f32 to vector<2x32xf32>
    %386 = arith.addf %385, %384 : vector<2x32xf32>
    %387 = arith.divf %385, %386 : vector<2x32xf32>
    %388 = vector.extract_strided_slice %375 {offsets = [0, 64], sizes = [2, 32], strides = [1, 1]} : vector<2x128xf32> to vector<2x32xf32>
    %389 = math.tanh %388 : vector<2x32xf32>
    %390 = vector.extract_strided_slice %375 {offsets = [0, 96], sizes = [2, 32], strides = [1, 1]} : vector<2x128xf32> to vector<2x32xf32>
    %391 = arith.negf %390 : vector<2x32xf32>
    %392 = math.exp %391 : vector<2x32xf32>
    %cst_92 = arith.constant 1.000000e+00 : f32
    %393 = vector.broadcast %cst_92 : f32 to vector<2x32xf32>
    %394 = arith.addf %393, %392 : vector<2x32xf32>
    %395 = arith.divf %393, %394 : vector<2x32xf32>
    %396 = arith.mulf %387, %371 : vector<2x32xf32>
    %397 = arith.mulf %381, %389 : vector<2x32xf32>
    %398 = arith.addf %396, %397 : vector<2x32xf32>
    %399 = math.tanh %398 : vector<2x32xf32>
    %400 = arith.mulf %395, %399 : vector<2x32xf32>
    %cst_93 = arith.constant dense<0.000000e+00> : vector<2x128xf32>
    %401 = tpu.matmul %400, %263, %cst_93 {dimension_numbers = #tpu.dot_dimension_numbers<[1], [0], [0], [1], [0, 0, 1, 1], [], []>} : vector<2x32xf32>, vector<32x128xf32>, vector<2x128xf32> -> vector<2x128xf32>
    %402 = arith.addf %279, %401 : vector<2x128xf32>
    %403 = vector.extract_strided_slice %402 {offsets = [0, 0], sizes = [2, 32], strides = [1, 1]} : vector<2x128xf32> to vector<2x32xf32>
    %404 = arith.negf %403 : vector<2x32xf32>
    %405 = math.exp %404 : vector<2x32xf32>
    %cst_94 = arith.constant 1.000000e+00 : f32
    %406 = vector.broadcast %cst_94 : f32 to vector<2x32xf32>
    %407 = arith.addf %406, %405 : vector<2x32xf32>
    %408 = arith.divf %406, %407 : vector<2x32xf32>
    %409 = vector.extract_strided_slice %402 {offsets = [0, 32], sizes = [2, 32], strides = [1, 1]} : vector<2x128xf32> to vector<2x32xf32>
    %410 = arith.negf %409 : vector<2x32xf32>
    %411 = math.exp %410 : vector<2x32xf32>
    %cst_95 = arith.constant 1.000000e+00 : f32
    %412 = vector.broadcast %cst_95 : f32 to vector<2x32xf32>
    %413 = arith.addf %412, %411 : vector<2x32xf32>
    %414 = arith.divf %412, %413 : vector<2x32xf32>
    %415 = vector.extract_strided_slice %402 {offsets = [0, 64], sizes = [2, 32], strides = [1, 1]} : vector<2x128xf32> to vector<2x32xf32>
    %416 = math.tanh %415 : vector<2x32xf32>
    %417 = vector.extract_strided_slice %402 {offsets = [0, 96], sizes = [2, 32], strides = [1, 1]} : vector<2x128xf32> to vector<2x32xf32>
    %418 = arith.negf %417 : vector<2x32xf32>
    %419 = math.exp %418 : vector<2x32xf32>
    %cst_96 = arith.constant 1.000000e+00 : f32
    %420 = vector.broadcast %cst_96 : f32 to vector<2x32xf32>
    %421 = arith.addf %420, %419 : vector<2x32xf32>
    %422 = arith.divf %420, %421 : vector<2x32xf32>
    %423 = arith.mulf %414, %398 : vector<2x32xf32>
    %424 = arith.mulf %408, %416 : vector<2x32xf32>
    %425 = arith.addf %423, %424 : vector<2x32xf32>
    %426 = math.tanh %425 : vector<2x32xf32>
    %427 = arith.mulf %422, %426 : vector<2x32xf32>
    %cst_97 = arith.constant dense<0.000000e+00> : vector<2x128xf32>
    %428 = tpu.matmul %427, %263, %cst_97 {dimension_numbers = #tpu.dot_dimension_numbers<[1], [0], [0], [1], [0, 0, 1, 1], [], []>} : vector<2x32xf32>, vector<32x128xf32>, vector<2x128xf32> -> vector<2x128xf32>
    %429 = arith.addf %282, %428 : vector<2x128xf32>
    %430 = vector.extract_strided_slice %429 {offsets = [0, 0], sizes = [2, 32], strides = [1, 1]} : vector<2x128xf32> to vector<2x32xf32>
    %431 = arith.negf %430 : vector<2x32xf32>
    %432 = math.exp %431 : vector<2x32xf32>
    %cst_98 = arith.constant 1.000000e+00 : f32
    %433 = vector.broadcast %cst_98 : f32 to vector<2x32xf32>
    %434 = arith.addf %433, %432 : vector<2x32xf32>
    %435 = arith.divf %433, %434 : vector<2x32xf32>
    %436 = vector.extract_strided_slice %429 {offsets = [0, 32], sizes = [2, 32], strides = [1, 1]} : vector<2x128xf32> to vector<2x32xf32>
    %437 = arith.negf %436 : vector<2x32xf32>
    %438 = math.exp %437 : vector<2x32xf32>
    %cst_99 = arith.constant 1.000000e+00 : f32
    %439 = vector.broadcast %cst_99 : f32 to vector<2x32xf32>
    %440 = arith.addf %439, %438 : vector<2x32xf32>
    %441 = arith.divf %439, %440 : vector<2x32xf32>
    %442 = vector.extract_strided_slice %429 {offsets = [0, 64], sizes = [2, 32], strides = [1, 1]} : vector<2x128xf32> to vector<2x32xf32>
    %443 = math.tanh %442 : vector<2x32xf32>
    %444 = vector.extract_strided_slice %429 {offsets = [0, 96], sizes = [2, 32], strides = [1, 1]} : vector<2x128xf32> to vector<2x32xf32>
    %445 = arith.negf %444 : vector<2x32xf32>
    %446 = math.exp %445 : vector<2x32xf32>
    %cst_100 = arith.constant 1.000000e+00 : f32
    %447 = vector.broadcast %cst_100 : f32 to vector<2x32xf32>
    %448 = arith.addf %447, %446 : vector<2x32xf32>
    %449 = arith.divf %447, %448 : vector<2x32xf32>
    %450 = arith.mulf %441, %425 : vector<2x32xf32>
    %451 = arith.mulf %435, %443 : vector<2x32xf32>
    %452 = arith.addf %450, %451 : vector<2x32xf32>
    %453 = math.tanh %452 : vector<2x32xf32>
    %454 = arith.mulf %449, %453 : vector<2x32xf32>
    %cst_101 = arith.constant dense<0.000000e+00> : vector<2x128xf32>
    %455 = tpu.matmul %454, %263, %cst_101 {dimension_numbers = #tpu.dot_dimension_numbers<[1], [0], [0], [1], [0, 0, 1, 1], [], []>} : vector<2x32xf32>, vector<32x128xf32>, vector<2x128xf32> -> vector<2x128xf32>
    %456 = arith.addf %285, %455 : vector<2x128xf32>
    %457 = vector.extract_strided_slice %456 {offsets = [0, 0], sizes = [2, 32], strides = [1, 1]} : vector<2x128xf32> to vector<2x32xf32>
    %458 = arith.negf %457 : vector<2x32xf32>
    %459 = math.exp %458 : vector<2x32xf32>
    %cst_102 = arith.constant 1.000000e+00 : f32
    %460 = vector.broadcast %cst_102 : f32 to vector<2x32xf32>
    %461 = arith.addf %460, %459 : vector<2x32xf32>
    %462 = arith.divf %460, %461 : vector<2x32xf32>
    %463 = vector.extract_strided_slice %456 {offsets = [0, 32], sizes = [2, 32], strides = [1, 1]} : vector<2x128xf32> to vector<2x32xf32>
    %464 = arith.negf %463 : vector<2x32xf32>
    %465 = math.exp %464 : vector<2x32xf32>
    %cst_103 = arith.constant 1.000000e+00 : f32
    %466 = vector.broadcast %cst_103 : f32 to vector<2x32xf32>
    %467 = arith.addf %466, %465 : vector<2x32xf32>
    %468 = arith.divf %466, %467 : vector<2x32xf32>
    %469 = vector.extract_strided_slice %456 {offsets = [0, 64], sizes = [2, 32], strides = [1, 1]} : vector<2x128xf32> to vector<2x32xf32>
    %470 = math.tanh %469 : vector<2x32xf32>
    %471 = vector.extract_strided_slice %456 {offsets = [0, 96], sizes = [2, 32], strides = [1, 1]} : vector<2x128xf32> to vector<2x32xf32>
    %472 = arith.negf %471 : vector<2x32xf32>
    %473 = math.exp %472 : vector<2x32xf32>
    %cst_104 = arith.constant 1.000000e+00 : f32
    %474 = vector.broadcast %cst_104 : f32 to vector<2x32xf32>
    %475 = arith.addf %474, %473 : vector<2x32xf32>
    %476 = arith.divf %474, %475 : vector<2x32xf32>
    %477 = arith.mulf %468, %452 : vector<2x32xf32>
    %478 = arith.mulf %462, %470 : vector<2x32xf32>
    %479 = arith.addf %477, %478 : vector<2x32xf32>
    %480 = math.tanh %479 : vector<2x32xf32>
    %481 = arith.mulf %476, %480 : vector<2x32xf32>
    %cst_105 = arith.constant dense<0.000000e+00> : vector<2x128xf32>
    %482 = tpu.matmul %481, %263, %cst_105 {dimension_numbers = #tpu.dot_dimension_numbers<[1], [0], [0], [1], [0, 0, 1, 1], [], []>} : vector<2x32xf32>, vector<32x128xf32>, vector<2x128xf32> -> vector<2x128xf32>
    %483 = arith.addf %288, %482 : vector<2x128xf32>
    %484 = vector.extract_strided_slice %483 {offsets = [0, 0], sizes = [2, 32], strides = [1, 1]} : vector<2x128xf32> to vector<2x32xf32>
    %485 = arith.negf %484 : vector<2x32xf32>
    %486 = math.exp %485 : vector<2x32xf32>
    %cst_106 = arith.constant 1.000000e+00 : f32
    %487 = vector.broadcast %cst_106 : f32 to vector<2x32xf32>
    %488 = arith.addf %487, %486 : vector<2x32xf32>
    %489 = arith.divf %487, %488 : vector<2x32xf32>
    %490 = vector.extract_strided_slice %483 {offsets = [0, 32], sizes = [2, 32], strides = [1, 1]} : vector<2x128xf32> to vector<2x32xf32>
    %491 = arith.negf %490 : vector<2x32xf32>
    %492 = math.exp %491 : vector<2x32xf32>
    %cst_107 = arith.constant 1.000000e+00 : f32
    %493 = vector.broadcast %cst_107 : f32 to vector<2x32xf32>
    %494 = arith.addf %493, %492 : vector<2x32xf32>
    %495 = arith.divf %493, %494 : vector<2x32xf32>
    %496 = vector.extract_strided_slice %483 {offsets = [0, 64], sizes = [2, 32], strides = [1, 1]} : vector<2x128xf32> to vector<2x32xf32>
    %497 = math.tanh %496 : vector<2x32xf32>
    %498 = vector.extract_strided_slice %483 {offsets = [0, 96], sizes = [2, 32], strides = [1, 1]} : vector<2x128xf32> to vector<2x32xf32>
    %499 = arith.negf %498 : vector<2x32xf32>
    %500 = math.exp %499 : vector<2x32xf32>
    %cst_108 = arith.constant 1.000000e+00 : f32
    %501 = vector.broadcast %cst_108 : f32 to vector<2x32xf32>
    %502 = arith.addf %501, %500 : vector<2x32xf32>
    %503 = arith.divf %501, %502 : vector<2x32xf32>
    %504 = arith.mulf %495, %479 : vector<2x32xf32>
    %505 = arith.mulf %489, %497 : vector<2x32xf32>
    %506 = arith.addf %504, %505 : vector<2x32xf32>
    %507 = math.tanh %506 : vector<2x32xf32>
    %508 = arith.mulf %503, %507 : vector<2x32xf32>
    %c1_109 = arith.constant 1 : index
    %c0_110 = arith.constant 0 : index
    %c0_111 = arith.constant 0 : index
    %509 = vector.load %arg12[%c1_109, %c0_110, %c0_111] : memref<2x2x32xf32, #tpu.memory_space<vmem>>, vector<1x2x32xf32>
    %510 = vector.shape_cast %509 : vector<1x2x32xf32> to vector<2x32xf32>
    %511 = vector.shape_cast %508 : vector<2x32xf32> to vector<1x2x32xf32>
    tpu.vector_store %arg12[%c1_109, %c0_110, %c0_111], %511 {strides = array<i32>} : memref<2x2x32xf32, #tpu.memory_space<vmem>>, vector<1x2x32xf32>,
    %c1_112 = arith.constant 1 : index
    %c0_113 = arith.constant 0 : index
    %c0_114 = arith.constant 0 : index
    %512 = vector.load %arg13[%c1_112, %c0_113, %c0_114] : memref<2x2x32xf32, #tpu.memory_space<vmem>>, vector<1x2x32xf32>
    %513 = vector.shape_cast %512 : vector<1x2x32xf32> to vector<2x32xf32>
    %514 = vector.shape_cast %506 : vector<2x32xf32> to vector<1x2x32xf32>
    tpu.vector_store %arg13[%c1_112, %c0_113, %c0_114], %514 {strides = array<i32>} : memref<2x2x32xf32, #tpu.memory_space<vmem>>, vector<1x2x32xf32>,
    %c0_115 = arith.constant 0 : index
    %c0_116 = arith.constant 0 : index
    %515 = vector.load %arg7[%c0_115, %c0_116] : memref<32x16xf32, #tpu.memory_space<vmem>>, vector<32x16xf32>
    %c0_117 = arith.constant 0 : index
    %c0_118 = arith.constant 0 : index
    %516 = vector.load %arg8[%c0_117, %c0_118] : memref<1x16xf32, #tpu.memory_space<vmem>>, vector<1x16xf32>
    %cst_119 = arith.constant dense<0.000000e+00> : vector<2x16xf32>
    %517 = tpu.matmul %319, %515, %cst_119 {dimension_numbers = #tpu.dot_dimension_numbers<[1], [0], [0], [1], [0, 0, 1, 1], [], []>} : vector<2x32xf32>, vector<32x16xf32>, vector<2x16xf32> -> vector<2x16xf32>
    %518 = vector.broadcast %516 : vector<1x16xf32> to vector<2x16xf32>
    %519 = arith.addf %517, %518 : vector<2x16xf32>
    %c0_120 = arith.constant 0 : index
    %c0_121 = arith.constant 0 : index
    %520 = vector.load %arg11[%c0_120, %c0_121] : memref<2x128xf32, #tpu.memory_space<vmem>>, vector<2x16xf32>
    tpu.vector_store %arg11[%c0_120, %c0_121], %519 {strides = array<i32>} : memref<2x128xf32, #tpu.memory_space<vmem>>, vector<2x16xf32>,
    %cst_122 = arith.constant dense<0.000000e+00> : vector<2x16xf32>
    %521 = tpu.matmul %346, %515, %cst_122 {dimension_numbers = #tpu.dot_dimension_numbers<[1], [0], [0], [1], [0, 0, 1, 1], [], []>} : vector<2x32xf32>, vector<32x16xf32>, vector<2x16xf32> -> vector<2x16xf32>
    %522 = vector.broadcast %516 : vector<1x16xf32> to vector<2x16xf32>
    %523 = arith.addf %521, %522 : vector<2x16xf32>
    %c0_123 = arith.constant 0 : index
    %c16 = arith.constant 16 : index
    %524 = vector.load %arg11[%c0_123, %c16] : memref<2x128xf32, #tpu.memory_space<vmem>>, vector<2x16xf32>
    tpu.vector_store %arg11[%c0_123, %c16], %523 {strides = array<i32>} : memref<2x128xf32, #tpu.memory_space<vmem>>, vector<2x16xf32>,
    %cst_124 = arith.constant dense<0.000000e+00> : vector<2x16xf32>
    %525 = tpu.matmul %373, %515, %cst_124 {dimension_numbers = #tpu.dot_dimension_numbers<[1], [0], [0], [1], [0, 0, 1, 1], [], []>} : vector<2x32xf32>, vector<32x16xf32>, vector<2x16xf32> -> vector<2x16xf32>
    %526 = vector.broadcast %516 : vector<1x16xf32> to vector<2x16xf32>
    %527 = arith.addf %525, %526 : vector<2x16xf32>
    %c0_125 = arith.constant 0 : index
    %c32 = arith.constant 32 : index
    %528 = vector.load %arg11[%c0_125, %c32] : memref<2x128xf32, #tpu.memory_space<vmem>>, vector<2x16xf32>
    tpu.vector_store %arg11[%c0_125, %c32], %527 {strides = array<i32>} : memref<2x128xf32, #tpu.memory_space<vmem>>, vector<2x16xf32>,
    %cst_126 = arith.constant dense<0.000000e+00> : vector<2x16xf32>
    %529 = tpu.matmul %400, %515, %cst_126 {dimension_numbers = #tpu.dot_dimension_numbers<[1], [0], [0], [1], [0, 0, 1, 1], [], []>} : vector<2x32xf32>, vector<32x16xf32>, vector<2x16xf32> -> vector<2x16xf32>
    %530 = vector.broadcast %516 : vector<1x16xf32> to vector<2x16xf32>
    %531 = arith.addf %529, %530 : vector<2x16xf32>
    %c0_127 = arith.constant 0 : index
    %c48 = arith.constant 48 : index
    %532 = vector.load %arg11[%c0_127, %c48] : memref<2x128xf32, #tpu.memory_space<vmem>>, vector<2x16xf32>
    tpu.vector_store %arg11[%c0_127, %c48], %531 {strides = array<i32>} : memref<2x128xf32, #tpu.memory_space<vmem>>, vector<2x16xf32>,
    %cst_128 = arith.constant dense<0.000000e+00> : vector<2x16xf32>
    %533 = tpu.matmul %427, %515, %cst_128 {dimension_numbers = #tpu.dot_dimension_numbers<[1], [0], [0], [1], [0, 0, 1, 1], [], []>} : vector<2x32xf32>, vector<32x16xf32>, vector<2x16xf32> -> vector<2x16xf32>
    %534 = vector.broadcast %516 : vector<1x16xf32> to vector<2x16xf32>
    %535 = arith.addf %533, %534 : vector<2x16xf32>
    %c0_129 = arith.constant 0 : index
    %c64 = arith.constant 64 : index
    %536 = vector.load %arg11[%c0_129, %c64] : memref<2x128xf32, #tpu.memory_space<vmem>>, vector<2x16xf32>
    tpu.vector_store %arg11[%c0_129, %c64], %535 {strides = array<i32>} : memref<2x128xf32, #tpu.memory_space<vmem>>, vector<2x16xf32>,
    %cst_130 = arith.constant dense<0.000000e+00> : vector<2x16xf32>
    %537 = tpu.matmul %454, %515, %cst_130 {dimension_numbers = #tpu.dot_dimension_numbers<[1], [0], [0], [1], [0, 0, 1, 1], [], []>} : vector<2x32xf32>, vector<32x16xf32>, vector<2x16xf32> -> vector<2x16xf32>
    %538 = vector.broadcast %516 : vector<1x16xf32> to vector<2x16xf32>
    %539 = arith.addf %537, %538 : vector<2x16xf32>
    %c0_131 = arith.constant 0 : index
    %c80 = arith.constant 80 : index
    %540 = vector.load %arg11[%c0_131, %c80] : memref<2x128xf32, #tpu.memory_space<vmem>>, vector<2x16xf32>
    tpu.vector_store %arg11[%c0_131, %c80], %539 {strides = array<i32>} : memref<2x128xf32, #tpu.memory_space<vmem>>, vector<2x16xf32>,
    %cst_132 = arith.constant dense<0.000000e+00> : vector<2x16xf32>
    %541 = tpu.matmul %481, %515, %cst_132 {dimension_numbers = #tpu.dot_dimension_numbers<[1], [0], [0], [1], [0, 0, 1, 1], [], []>} : vector<2x32xf32>, vector<32x16xf32>, vector<2x16xf32> -> vector<2x16xf32>
    %542 = vector.broadcast %516 : vector<1x16xf32> to vector<2x16xf32>
    %543 = arith.addf %541, %542 : vector<2x16xf32>
    %c0_133 = arith.constant 0 : index
    %c96 = arith.constant 96 : index
    %544 = vector.load %arg11[%c0_133, %c96] : memref<2x128xf32, #tpu.memory_space<vmem>>, vector<2x16xf32>
    tpu.vector_store %arg11[%c0_133, %c96], %543 {strides = array<i32>} : memref<2x128xf32, #tpu.memory_space<vmem>>, vector<2x16xf32>,
    %cst_134 = arith.constant dense<0.000000e+00> : vector<2x16xf32>
    %545 = tpu.matmul %508, %515, %cst_134 {dimension_numbers = #tpu.dot_dimension_numbers<[1], [0], [0], [1], [0, 0, 1, 1], [], []>} : vector<2x32xf32>, vector<32x16xf32>, vector<2x16xf32> -> vector<2x16xf32>
    %546 = vector.broadcast %516 : vector<1x16xf32> to vector<2x16xf32>
    %547 = arith.addf %545, %546 : vector<2x16xf32>
    %c0_135 = arith.constant 0 : index
    %c112 = arith.constant 112 : index
    %548 = vector.load %arg11[%c0_135, %c112] : memref<2x128xf32, #tpu.memory_space<vmem>>, vector<2x16xf32>
    tpu.vector_store %arg11[%c0_135, %c112], %547 {strides = array<i32>} : memref<2x128xf32, #tpu.memory_space<vmem>>, vector<2x16xf32>,
    return
  }
}

</mosaic_0001>

<llo_original>
// kernel: decoder_forward.1
$region0: #{decoder_forward.1}
  #allocation0 [shape = 'u32[]', space=smem, size = 0x4, offset = 0x4, fixed_abs, tag = 'smem constant byte address 0x4 - core index']
  #allocation1 [shape = 'u32[144,128]{1,0:T(1,128)}', space=vmem, size = 0x12000, scoped, tag = 'internal scratch']
  %s0 = inlined_call_operand.vmem [shape: f32[2,128], index: 0, kind: input, shape index: {}]
  %s1 = inlined_call_operand.hbm [shape: f32[16,128], index: 1, kind: input, shape index: {}]
  %s2 = inlined_call_operand.vmem [shape: f32[32,128], index: 2, kind: input, shape index: {}]
  %s3 = inlined_call_operand.vmem [shape: f32[1,128], index: 3, kind: input, shape index: {}]
  %s4 = inlined_call_operand.vmem [shape: f32[32,128], index: 4, kind: input, shape index: {}]
  %s5 = inlined_call_operand.hbm [shape: f32[32,128], index: 5, kind: input, shape index: {}]
  %s6 = inlined_call_operand.vmem [shape: f32[1,128], index: 6, kind: input, shape index: {}]
  %s7 = inlined_call_operand.vmem [shape: f32[32,16], index: 7, kind: input, shape index: {}]
  %s8 = inlined_call_operand.hbm [shape: f32[1,16], index: 8, kind: input, shape index: {}]
  %s9 = inlined_call_operand.vmem [shape: f32[2,2,32], index: 9, kind: input, shape index: {}]
  %s10 = inlined_call_operand.vmem [shape: f32[2,2,32], index: 10, kind: input, shape index: {}]
  %s11 = inlined_call_operand.vmem [shape: f32[2,128], index: 11, kind: output, shape index: {0}]
  %s12 = inlined_call_operand.hbm [shape: f32[2,2,32], index: 12, kind: output, shape index: {1}]
  %s13 = inlined_call_operand.hbm [shape: f32[2,2,32], index: 13, kind: output, shape index: {2}]
  %14 = xla_tuple %s11, %s12, %s13
  %s15 = sld [smem:[#allocation0]]
  $region82: #{decoder_forward.1} parent=0
    _
  %s17 = ssub.s32 1, %s15
  %s18 = scalar_select 0, %s17, %s15
  $region1: #{decoder_forward.1} parent=0
    #allocation2 [shape = 'u8[8192]{0}', space=vmem, size = 0x2000, scoped, tag = 'input window, operand 1, single buffered']
    #allocation3 [shape = 's32[1]{0}', space=sflag, size = 0x4, scoped, tag = 'scoped memory for decoder_forward.1']
    #allocation4 [shape = 's32[1]{0}', space=sflag, size = 0x4, scoped, tag = 'scoped memory for decoder_forward.1']
    #allocation5 [shape = 'u8[16384]{0}', space=vmem, size = 0x4000, scoped, tag = 'input window, operand 5, single buffered']
    #allocation6 [shape = 's32[1]{0}', space=sflag, size = 0x4, scoped, tag = 'scoped memory for decoder_forward.1']
    #allocation7 [shape = 'u8[512]{0}', space=vmem, size = 0x400, scoped, tag = 'input window, operand 8, single buffered']
    #allocation8 [shape = 'u8[2048]{0}', space=vmem, size = 0x800, scoped, tag = 'output window, operand 1, single buffered']
    #allocation9 [shape = 'u8[2048]{0}', space=vmem, size = 0x800, scoped, tag = 'output window, operand 2, single buffered']
    #allocation10 [shape = 's32[1]{0}', space=sflag, size = 0x4, scoped, tag = 'scoped memory for decoder_forward.1']
    %19 = vsyncpa [#allocation3], 0
    %20 = vsyncpa [#allocation6], 0
    %21 = vsyncpa [#allocation4], 0
    %22 = vsyncpa [#allocation10], 0
    // Predicated region
    $region2: #{decoder_forward.1} parent=1 // pred_check
      _
    $region3: #{decoder_forward.1} parent=1 // pred_check_branch
      %24 = sbr.rel (0) target = $region5
    $region4: #{decoder_forward.1} parent=1 // pred_region
      _
    $region5: #{decoder_forward.1} parent=1 // pred_fallthru
      _
    // Predicated region
    $region6: #{decoder_forward.1} parent=1 // pred_check
      _
    $region7: #{decoder_forward.1} parent=1 // pred_check_branch
      %26 = sbr.rel (0) target = $region9
    $region8: #{decoder_forward.1} parent=1 // pred_region
      %s28 = ssub.s32 256, 256
      %29 = vsyncadd [#allocation3], %s28
      %s30 = sshll.u32 [#allocation2], 4
      %s31 = int_to_ptr.vmem [resolvable:$true] %s30
      %36 = dma.hbm_to_vmem [thread:$0]  %s1, 256, %s31, [#allocation3], 128, 128, 8
    $region9: #{decoder_forward.1} parent=1 // pred_fallthru
      _
    // Predicated region
    $region10: #{decoder_forward.1} parent=1 // pred_check
      _
    $region11: #{decoder_forward.1} parent=1 // pred_check_branch
      %38 = sbr.rel (0) target = $region13
    $region12: #{decoder_forward.1} parent=1 // pred_region
      _
    $region13: #{decoder_forward.1} parent=1 // pred_fallthru
      _
    // Predicated region
    $region14: #{decoder_forward.1} parent=1 // pred_check
      _
    $region15: #{decoder_forward.1} parent=1 // pred_check_branch
      %40 = sbr.rel (0) target = $region17
    $region16: #{decoder_forward.1} parent=1 // pred_region
      _
    $region17: #{decoder_forward.1} parent=1 // pred_fallthru
      _
    // Predicated region
    $region18: #{decoder_forward.1} parent=1 // pred_check
      _
    $region19: #{decoder_forward.1} parent=1 // pred_check_branch
      %42 = sbr.rel (0) target = $region21
    $region20: #{decoder_forward.1} parent=1 // pred_region
      _
    $region21: #{decoder_forward.1} parent=1 // pred_fallthru
      _
    // Predicated region
    $region22: #{decoder_forward.1} parent=1 // pred_check
      _
    $region23: #{decoder_forward.1} parent=1 // pred_check_branch
      %44 = sbr.rel (0) target = $region25
    $region24: #{decoder_forward.1} parent=1 // pred_region
      %s46 = ssub.s32 512, 512
      %47 = vsyncadd [#allocation6], %s46
      %s48 = sshll.u32 [#allocation5], 4
      %s49 = int_to_ptr.vmem [resolvable:$true] %s48
      %54 = dma.hbm_to_vmem [thread:$0]  %s5, 512, %s49, [#allocation6], 128, 128, 8
    $region25: #{decoder_forward.1} parent=1 // pred_fallthru
      _
    // Predicated region
    $region26: #{decoder_forward.1} parent=1 // pred_check
      _
    $region27: #{decoder_forward.1} parent=1 // pred_check_branch
      %56 = sbr.rel (0) target = $region29
    $region28: #{decoder_forward.1} parent=1 // pred_region
      _
    $region29: #{decoder_forward.1} parent=1 // pred_fallthru
      _
    // Predicated region
    $region30: #{decoder_forward.1} parent=1 // pred_check
      _
    $region31: #{decoder_forward.1} parent=1 // pred_check_branch
      %58 = sbr.rel (0) target = $region33
    $region32: #{decoder_forward.1} parent=1 // pred_region
      _
    $region33: #{decoder_forward.1} parent=1 // pred_fallthru
      _
    // Predicated region
    $region34: #{decoder_forward.1} parent=1 // pred_check
      _
    $region35: #{decoder_forward.1} parent=1 // pred_check_branch
      %60 = sbr.rel (0) target = $region37
    $region36: #{decoder_forward.1} parent=1 // pred_region
      %s62 = ssub.s32 16, 16
      %63 = vsyncadd [#allocation6], %s62
      %s65 = sshll.u32 [#allocation7], 4
      %s66 = int_to_ptr.vmem [resolvable:$true] %s65
      %68 = dma.hbm_to_vmem [thread:$0]  %s8, 16, %s66, [#allocation6]
    $region37: #{decoder_forward.1} parent=1 // pred_fallthru
      _
    // Predicated region
    $region38: #{decoder_forward.1} parent=1 // pred_check
      _
    $region39: #{decoder_forward.1} parent=1 // pred_check_branch
      %70 = sbr.rel (0) target = $region41
    $region40: #{decoder_forward.1} parent=1 // pred_region
      _
    $region41: #{decoder_forward.1} parent=1 // pred_fallthru
      _
    // Predicated region
    $region42: #{decoder_forward.1} parent=1 // pred_check
      _
    $region43: #{decoder_forward.1} parent=1 // pred_check_branch
      %72 = sbr.rel (0) target = $region45
    $region44: #{decoder_forward.1} parent=1 // pred_region
      _
    $region45: #{decoder_forward.1} parent=1 // pred_fallthru
      _
    // Predicated region
    $region46: #{decoder_forward.1} parent=1 // pred_check
      _
    $region47: #{decoder_forward.1} parent=1 // pred_check_branch
      %74 = sbr.rel (0) target = $region49
    $region48: #{decoder_forward.1} parent=1 // pred_region
      %75 = dma.done [#allocation3], 256
    $region49: #{decoder_forward.1} parent=1 // pred_fallthru
      _
    // Predicated region
    $region50: #{decoder_forward.1} parent=1 // pred_check
      _
    $region51: #{decoder_forward.1} parent=1 // pred_check_branch
      %77 = sbr.rel (0) target = $region53
    $region52: #{decoder_forward.1} parent=1 // pred_region
      %78 = dma.done [#allocation6], 512
    $region53: #{decoder_forward.1} parent=1 // pred_fallthru
      _
    // Predicated region
    $region54: #{decoder_forward.1} parent=1 // pred_check
      _
    $region55: #{decoder_forward.1} parent=1 // pred_check_branch
      %80 = sbr.rel (0) target = $region57
    $region56: #{decoder_forward.1} parent=1 // pred_region
      %81 = dma.done [#allocation6], 16
    $region57: #{decoder_forward.1} parent=1 // pred_fallthru
      _
    %v82 = vld [vmem:[%s0] sm:$0x3]
    %v83 = vld [vmem:[#allocation2] sm:$0xff]
    %v84 = vld [vmem:[#allocation2 + $0x8] sm:$0xff]
    %v85 = vld [vmem:[%s2] sm:$0xff]
    %v86 = vld [vmem:[%s2 + $0x8] sm:$0xff]
    %v87 = vld [vmem:[%s2 + $0x10] sm:$0xff]
    %v88 = vld [vmem:[%s2 + $0x18] sm:$0xff]
    %v89 = vld [vmem:[%s3] sm:$0x1]
    %v91 = vlaneseq
    %v92 = vshrl.u32 %v91, 7
    %v93 = vsub.s32 0, %v92
    %v94 = vrot.slane %v89, %v93
    %vm96 = vcmask 130048
    %v98 = vsel %vm96, %v82, 0
    %100 = vmatprep.subr.mxu0 0.0
    %101 = vmatpush1.msra.mxu0 %v83
    %102 = vmatprep.subr.mxu0 0.0
    %103 = vmatpush1.msra.mxu0 %v84
    %104 = vmatprep.subr.mxu0 0.0
    %105 = vmatpush1.msra.mxu0 0.0
    %106 = vmatprep.subr.mxu0 0.0
    %107 = vmatpush1.msra.mxu0 0.0
    %108 = vmatprep.subr.mxu0 0.0
    %109 = vmatpush1.msra.mxu0 0.0
    %110 = vmatprep.subr.mxu0 0.0
    %111 = vmatpush1.msra.mxu0 0.0
    %112 = vmatprep.subr.mxu0 0.0
    %113 = vmatpush1.msra.mxu0 0.0
    %114 = vmatprep.subr.mxu0 0.0
    %115 = vmatpush1.msra.mxu0 0.0
    %116 = vmatprep.subr.mxu0 0.0
    %117 = vmatpush1.msra.mxu0 0.0
    %118 = vmatprep.subr.mxu0 0.0
    %119 = vmatpush1.msra.mxu0 0.0
    %120 = vmatprep.subr.mxu0 0.0
    %121 = vmatpush1.msra.mxu0 0.0
    %122 = vmatprep.subr.mxu0 0.0
    %123 = vmatpush1.msra.mxu0 0.0
    %124 = vmatprep.subr.mxu0 0.0
    %125 = vmatpush1.msra.mxu0 0.0
    %126 = vmatprep.subr.mxu0 0.0
    %127 = vmatpush1.msra.mxu0 0.0
    %128 = vmatprep.subr.mxu0 0.0
    %129 = vmatpush1.msra.mxu0 0.0
    %130 = vmatprep.subr.mxu0 0.0
    %131 = vmatpush1.msra.mxu0 0.0
    %132 = vmatprep.subr.mxu0 0.0
    %133 = vmatpush1.msra.mxu0 0.0
    %134 = vmatprep.subr.mxu0 0.0
    %135 = vmatpush1.msra.mxu0 0.0
    %136 = vmatprep.subr.mxu0 0.0
    %137 = vmatpush1.msra.mxu0 0.0
    %138 = vmatprep.subr.mxu0 0.0
    %139 = vmatpush1.msra.mxu0 0.0
    %140 = vmatprep.subr.mxu0 0.0
    %141 = vmatpush1.msra.mxu0 0.0
    %142 = vmatprep.subr.mxu0 0.0
    %143 = vmatpush1.msra.mxu0 0.0
    %144 = vmatprep.subr.mxu0 0.0
    %145 = vmatpush1.msra.mxu0 0.0
    %146 = vmatprep.subr.mxu0 0.0
    %147 = vmatpush1.msra.mxu0 0.0
    %148 = vmatprep.subr.mxu0 0.0
    %149 = vmatpush1.msra.mxu0 0.0
    %150 = vmatprep.subr.mxu0 0.0
    %151 = vmatpush1.msra.mxu0 0.0
    %152 = vmatprep.subr.mxu0 0.0
    %153 = vmatpush1.msra.mxu0 0.0
    %154 = vmatprep.subr.mxu0 0.0
    %155 = vmatpush1.msra.mxu0 0.0
    %156 = vmatprep.subr.mxu0 0.0
    %157 = vmatpush1.msra.mxu0 0.0
    %158 = vmatprep.subr.mxu0 0.0
    %159 = vmatpush1.msra.mxu0 0.0
    %160 = vmatprep.subr.mxu0 0.0
    %161 = vmatpush1.msra.mxu0 0.0
    %162 = vmatprep.subr.mxu0 0.0
    %163 = vmatpush1.msra.mxu0 0.0
    %164 = vmatprep.mubr.f32.mxu0 0.0
    %165 = vmatmul.mubr.f32.gmra.mrb[0].mxu0 %v98
    %v166 = vpop.f32.mrb[0].mxu0
    %v167 = vadd.f32 %v94, %v166
    %v168 = vpop.f32.mrb[0].mxu0
    %169 = vdwg.mxu0
    %170 = vrot.lane.b32.xlu0 %v82, 112
    %v171 = vpop.permute.xlu0 %170
    %v172 = vsel %vm96, %v171, 0
    %174 = vmatprep.subr.mxu0 0.0
    %175 = vmatpush1.msra.mxu0 %v83
    %176 = vmatprep.subr.mxu0 0.0
    %177 = vmatpush1.msra.mxu0 %v84
    %178 = vmatprep.subr.mxu0 0.0
    %179 = vmatpush1.msra.mxu0 0.0
    %180 = vmatprep.subr.mxu0 0.0
    %181 = vmatpush1.msra.mxu0 0.0
    %182 = vmatprep.subr.mxu0 0.0
    %183 = vmatpush1.msra.mxu0 0.0
    %184 = vmatprep.subr.mxu0 0.0
    %185 = vmatpush1.msra.mxu0 0.0
    %186 = vmatprep.subr.mxu0 0.0
    %187 = vmatpush1.msra.mxu0 0.0
    %188 = vmatprep.subr.mxu0 0.0
    %189 = vmatpush1.msra.mxu0 0.0
    %190 = vmatprep.subr.mxu0 0.0
    %191 = vmatpush1.msra.mxu0 0.0
    %192 = vmatprep.subr.mxu0 0.0
    %193 = vmatpush1.msra.mxu0 0.0
    %194 = vmatprep.subr.mxu0 0.0
    %195 = vmatpush1.msra.mxu0 0.0
    %196 = vmatprep.subr.mxu0 0.0
    %197 = vmatpush1.msra.mxu0 0.0
    %198 = vmatprep.subr.mxu0 0.0
    %199 = vmatpush1.msra.mxu0 0.0
    %200 = vmatprep.subr.mxu0 0.0
    %201 = vmatpush1.msra.mxu0 0.0
    %202 = vmatprep.subr.mxu0 0.0
    %203 = vmatpush1.msra.mxu0 0.0
    %204 = vmatprep.subr.mxu0 0.0
    %205 = vmatpush1.msra.mxu0 0.0
    %206 = vmatprep.subr.mxu0 0.0
    %207 = vmatpush1.msra.mxu0 0.0
    %208 = vmatprep.subr.mxu0 0.0
    %209 = vmatpush1.msra.mxu0 0.0
    %210 = vmatprep.subr.mxu0 0.0
    %211 = vmatpush1.msra.mxu0 0.0
    %212 = vmatprep.subr.mxu0 0.0
    %213 = vmatpush1.msra.mxu0 0.0
    %214 = vmatprep.subr.mxu0 0.0
    %215 = vmatpush1.msra.mxu0 0.0
    %216 = vmatprep.subr.mxu0 0.0
    %217 = vmatpush1.msra.mxu0 0.0
    %218 = vmatprep.subr.mxu0 0.0
    %219 = vmatpush1.msra.mxu0 0.0
    %220 = vmatprep.subr.mxu0 0.0
    %221 = vmatpush1.msra.mxu0 0.0
    %222 = vmatprep.subr.mxu0 0.0
    %223 = vmatpush1.msra.mxu0 0.0
    %224 = vmatprep.subr.mxu0 0.0
    %225 = vmatpush1.msra.mxu0 0.0
    %226 = vmatprep.subr.mxu0 0.0
    %227 = vmatpush1.msra.mxu0 0.0
    %228 = vmatprep.subr.mxu0 0.0
    %229 = vmatpush1.msra.mxu0 0.0
    %230 = vmatprep.subr.mxu0 0.0
    %231 = vmatpush1.msra.mxu0 0.0
    %232 = vmatprep.subr.mxu0 0.0
    %233 = vmatpush1.msra.mxu0 0.0
    %234 = vmatprep.subr.mxu0 0.0
    %235 = vmatpush1.msra.mxu0 0.0
    %236 = vmatprep.subr.mxu0 0.0
    %237 = vmatpush1.msra.mxu0 0.0
    %238 = vmatprep.mubr.f32.mxu0 0.0
    %239 = vmatmul.mubr.f32.gmra.mrb[0].mxu0 %v172
    %v240 = vpop.f32.mrb[0].mxu0
    %v241 = vadd.f32 %v94, %v240
    %v242 = vpop.f32.mrb[0].mxu0
    %243 = vdwg.mxu0
    %244 = vrot.lane.b32.xlu0 %v82, 96
    %v245 = vpop.permute.xlu0 %244
    %v246 = vsel %vm96, %v245, 0
    %248 = vmatprep.subr.mxu0 0.0
    %249 = vmatpush1.msra.mxu0 %v83
    %250 = vmatprep.subr.mxu0 0.0
    %251 = vmatpush1.msra.mxu0 %v84
    %252 = vmatprep.subr.mxu0 0.0
    %253 = vmatpush1.msra.mxu0 0.0
    %254 = vmatprep.subr.mxu0 0.0
    %255 = vmatpush1.msra.mxu0 0.0
    %256 = vmatprep.subr.mxu0 0.0
    %257 = vmatpush1.msra.mxu0 0.0
    %258 = vmatprep.subr.mxu0 0.0
    %259 = vmatpush1.msra.mxu0 0.0
    %260 = vmatprep.subr.mxu0 0.0
    %261 = vmatpush1.msra.mxu0 0.0
    %262 = vmatprep.subr.mxu0 0.0
    %263 = vmatpush1.msra.mxu0 0.0
    %264 = vmatprep.subr.mxu0 0.0
    %265 = vmatpush1.msra.mxu0 0.0
    %266 = vmatprep.subr.mxu0 0.0
    %267 = vmatpush1.msra.mxu0 0.0
    %268 = vmatprep.subr.mxu0 0.0
    %269 = vmatpush1.msra.mxu0 0.0
    %270 = vmatprep.subr.mxu0 0.0
    %271 = vmatpush1.msra.mxu0 0.0
    %272 = vmatprep.subr.mxu0 0.0
    %273 = vmatpush1.msra.mxu0 0.0
    %274 = vmatprep.subr.mxu0 0.0
    %275 = vmatpush1.msra.mxu0 0.0
    %276 = vmatprep.subr.mxu0 0.0
    %277 = vmatpush1.msra.mxu0 0.0
    %278 = vmatprep.subr.mxu0 0.0
    %279 = vmatpush1.msra.mxu0 0.0
    %280 = vmatprep.subr.mxu0 0.0
    %281 = vmatpush1.msra.mxu0 0.0
    %282 = vmatprep.subr.mxu0 0.0
    %283 = vmatpush1.msra.mxu0 0.0
    %284 = vmatprep.subr.mxu0 0.0
    %285 = vmatpush1.msra.mxu0 0.0
    %286 = vmatprep.subr.mxu0 0.0
    %287 = vmatpush1.msra.mxu0 0.0
    %288 = vmatprep.subr.mxu0 0.0
    %289 = vmatpush1.msra.mxu0 0.0
    %290 = vmatprep.subr.mxu0 0.0
    %291 = vmatpush1.msra.mxu0 0.0
    %292 = vmatprep.subr.mxu0 0.0
    %293 = vmatpush1.msra.mxu0 0.0
    %294 = vmatprep.subr.mxu0 0.0
    %295 = vmatpush1.msra.mxu0 0.0
    %296 = vmatprep.subr.mxu0 0.0
    %297 = vmatpush1.msra.mxu0 0.0
    %298 = vmatprep.subr.mxu0 0.0
    %299 = vmatpush1.msra.mxu0 0.0
    %300 = vmatprep.subr.mxu0 0.0
    %301 = vmatpush1.msra.mxu0 0.0
    %302 = vmatprep.subr.mxu0 0.0
    %303 = vmatpush1.msra.mxu0 0.0
    %304 = vmatprep.subr.mxu0 0.0
    %305 = vmatpush1.msra.mxu0 0.0
    %306 = vmatprep.subr.mxu0 0.0
    %307 = vmatpush1.msra.mxu0 0.0
    %308 = vmatprep.subr.mxu0 0.0
    %309 = vmatpush1.msra.mxu0 0.0
    %310 = vmatprep.subr.mxu0 0.0
    %311 = vmatpush1.msra.mxu0 0.0
    %312 = vmatprep.mubr.f32.mxu0 0.0
    %313 = vmatmul.mubr.f32.gmra.mrb[0].mxu0 %v246
    %v314 = vpop.f32.mrb[0].mxu0
    %v315 = vadd.f32 %v94, %v314
    %v316 = vpop.f32.mrb[0].mxu0
    %317 = vdwg.mxu0
    %318 = vrot.lane.b32.xlu0 %v82, 80
    %v319 = vpop.permute.xlu0 %318
    %v320 = vsel %vm96, %v319, 0
    %322 = vmatprep.subr.mxu0 0.0
    %323 = vmatpush1.msra.mxu0 %v83
    %324 = vmatprep.subr.mxu0 0.0
    %325 = vmatpush1.msra.mxu0 %v84
    %326 = vmatprep.subr.mxu0 0.0
    %327 = vmatpush1.msra.mxu0 0.0
    %328 = vmatprep.subr.mxu0 0.0
    %329 = vmatpush1.msra.mxu0 0.0
    %330 = vmatprep.subr.mxu0 0.0
    %331 = vmatpush1.msra.mxu0 0.0
    %332 = vmatprep.subr.mxu0 0.0
    %333 = vmatpush1.msra.mxu0 0.0
    %334 = vmatprep.subr.mxu0 0.0
    %335 = vmatpush1.msra.mxu0 0.0
    %336 = vmatprep.subr.mxu0 0.0
    %337 = vmatpush1.msra.mxu0 0.0
    %338 = vmatprep.subr.mxu0 0.0
    %339 = vmatpush1.msra.mxu0 0.0
    %340 = vmatprep.subr.mxu0 0.0
    %341 = vmatpush1.msra.mxu0 0.0
    %342 = vmatprep.subr.mxu0 0.0
    %343 = vmatpush1.msra.mxu0 0.0
    %344 = vmatprep.subr.mxu0 0.0
    %345 = vmatpush1.msra.mxu0 0.0
    %346 = vmatprep.subr.mxu0 0.0
    %347 = vmatpush1.msra.mxu0 0.0
    %348 = vmatprep.subr.mxu0 0.0
    %349 = vmatpush1.msra.mxu0 0.0
    %350 = vmatprep.subr.mxu0 0.0
    %351 = vmatpush1.msra.mxu0 0.0
    %352 = vmatprep.subr.mxu0 0.0
    %353 = vmatpush1.msra.mxu0 0.0
    %354 = vmatprep.subr.mxu0 0.0
    %355 = vmatpush1.msra.mxu0 0.0
    %356 = vmatprep.subr.mxu0 0.0
    %357 = vmatpush1.msra.mxu0 0.0
    %358 = vmatprep.subr.mxu0 0.0
    %359 = vmatpush1.msra.mxu0 0.0
    %360 = vmatprep.subr.mxu0 0.0
    %361 = vmatpush1.msra.mxu0 0.0
    %362 = vmatprep.subr.mxu0 0.0
    %363 = vmatpush1.msra.mxu0 0.0
    %364 = vmatprep.subr.mxu0 0.0
    %365 = vmatpush1.msra.mxu0 0.0
    %366 = vmatprep.subr.mxu0 0.0
    %367 = vmatpush1.msra.mxu0 0.0
    %368 = vmatprep.subr.mxu0 0.0
    %369 = vmatpush1.msra.mxu0 0.0
    %370 = vmatprep.subr.mxu0 0.0
    %371 = vmatpush1.msra.mxu0 0.0
    %372 = vmatprep.subr.mxu0 0.0
    %373 = vmatpush1.msra.mxu0 0.0
    %374 = vmatprep.subr.mxu0 0.0
    %375 = vmatpush1.msra.mxu0 0.0
    %376 = vmatprep.subr.mxu0 0.0
    %377 = vmatpush1.msra.mxu0 0.0
    %378 = vmatprep.subr.mxu0 0.0
    %379 = vmatpush1.msra.mxu0 0.0
    %380 = vmatprep.subr.mxu0 0.0
    %381 = vmatpush1.msra.mxu0 0.0
    %382 = vmatprep.subr.mxu0 0.0
    %383 = vmatpush1.msra.mxu0 0.0
    %384 = vmatprep.subr.mxu0 0.0
    %385 = vmatpush1.msra.mxu0 0.0
    %386 = vmatprep.mubr.f32.mxu0 0.0
    %387 = vmatmul.mubr.f32.gmra.mrb[0].mxu0 %v320
    %v388 = vpop.f32.mrb[0].mxu0
    %v389 = vadd.f32 %v94, %v388
    %v390 = vpop.f32.mrb[0].mxu0
    %391 = vdwg.mxu0
    %392 = vrot.lane.b32.xlu0 %v82, 64
    %v393 = vpop.permute.xlu0 %392
    %v394 = vsel %vm96, %v393, 0
    %396 = vmatprep.subr.mxu0 0.0
    %397 = vmatpush1.msra.mxu0 %v83
    %398 = vmatprep.subr.mxu0 0.0
    %399 = vmatpush1.msra.mxu0 %v84
    %400 = vmatprep.subr.mxu0 0.0
    %401 = vmatpush1.msra.mxu0 0.0
    %402 = vmatprep.subr.mxu0 0.0
    %403 = vmatpush1.msra.mxu0 0.0
    %404 = vmatprep.subr.mxu0 0.0
    %405 = vmatpush1.msra.mxu0 0.0
    %406 = vmatprep.subr.mxu0 0.0
    %407 = vmatpush1.msra.mxu0 0.0
    %408 = vmatprep.subr.mxu0 0.0
    %409 = vmatpush1.msra.mxu0 0.0
    %410 = vmatprep.subr.mxu0 0.0
    %411 = vmatpush1.msra.mxu0 0.0
    %412 = vmatprep.subr.mxu0 0.0
    %413 = vmatpush1.msra.mxu0 0.0
    %414 = vmatprep.subr.mxu0 0.0
    %415 = vmatpush1.msra.mxu0 0.0
    %416 = vmatprep.subr.mxu0 0.0
    %417 = vmatpush1.msra.mxu0 0.0
    %418 = vmatprep.subr.mxu0 0.0
    %419 = vmatpush1.msra.mxu0 0.0
    %420 = vmatprep.subr.mxu0 0.0
    %421 = vmatpush1.msra.mxu0 0.0
    %422 = vmatprep.subr.mxu0 0.0
    %423 = vmatpush1.msra.mxu0 0.0
    %424 = vmatprep.subr.mxu0 0.0
    %425 = vmatpush1.msra.mxu0 0.0
    %426 = vmatprep.subr.mxu0 0.0
    %427 = vmatpush1.msra.mxu0 0.0
    %428 = vmatprep.subr.mxu0 0.0
    %429 = vmatpush1.msra.mxu0 0.0
    %430 = vmatprep.subr.mxu0 0.0
    %431 = vmatpush1.msra.mxu0 0.0
    %432 = vmatprep.subr.mxu0 0.0
    %433 = vmatpush1.msra.mxu0 0.0
    %434 = vmatprep.subr.mxu0 0.0
    %435 = vmatpush1.msra.mxu0 0.0
    %436 = vmatprep.subr.mxu0 0.0
    %437 = vmatpush1.msra.mxu0 0.0
    %438 = vmatprep.subr.mxu0 0.0
    %439 = vmatpush1.msra.mxu0 0.0
    %440 = vmatprep.subr.mxu0 0.0
    %441 = vmatpush1.msra.mxu0 0.0
    %442 = vmatprep.subr.mxu0 0.0
    %443 = vmatpush1.msra.mxu0 0.0
    %444 = vmatprep.subr.mxu0 0.0
    %445 = vmatpush1.msra.mxu0 0.0
    %446 = vmatprep.subr.mxu0 0.0
    %447 = vmatpush1.msra.mxu0 0.0
    %448 = vmatprep.subr.mxu0 0.0
    %449 = vmatpush1.msra.mxu0 0.0
    %450 = vmatprep.subr.mxu0 0.0
    %451 = vmatpush1.msra.mxu0 0.0
    %452 = vmatprep.subr.mxu0 0.0
    %453 = vmatpush1.msra.mxu0 0.0
    %454 = vmatprep.subr.mxu0 0.0
    %455 = vmatpush1.msra.mxu0 0.0
    %456 = vmatprep.subr.mxu0 0.0
    %457 = vmatpush1.msra.mxu0 0.0
    %458 = vmatprep.subr.mxu0 0.0
    %459 = vmatpush1.msra.mxu0 0.0
    %460 = vmatprep.mubr.f32.mxu0 0.0
    %461 = vmatmul.mubr.f32.gmra.mrb[0].mxu0 %v394
    %v462 = vpop.f32.mrb[0].mxu0
    %v463 = vadd.f32 %v94, %v462
    %v464 = vpop.f32.mrb[0].mxu0
    %465 = vdwg.mxu0
    %466 = vrot.lane.b32.xlu0 %v82, 48
    %v467 = vpop.permute.xlu0 %466
    %v468 = vsel %vm96, %v467, 0
    %470 = vmatprep.subr.mxu0 0.0
    %471 = vmatpush1.msra.mxu0 %v83
    %472 = vmatprep.subr.mxu0 0.0
    %473 = vmatpush1.msra.mxu0 %v84
    %474 = vmatprep.subr.mxu0 0.0
    %475 = vmatpush1.msra.mxu0 0.0
    %476 = vmatprep.subr.mxu0 0.0
    %477 = vmatpush1.msra.mxu0 0.0
    %478 = vmatprep.subr.mxu0 0.0
    %479 = vmatpush1.msra.mxu0 0.0
    %480 = vmatprep.subr.mxu0 0.0
    %481 = vmatpush1.msra.mxu0 0.0
    %482 = vmatprep.subr.mxu0 0.0
    %483 = vmatpush1.msra.mxu0 0.0
    %484 = vmatprep.subr.mxu0 0.0
    %485 = vmatpush1.msra.mxu0 0.0
    %486 = vmatprep.subr.mxu0 0.0
    %487 = vmatpush1.msra.mxu0 0.0
    %488 = vmatprep.subr.mxu0 0.0
    %489 = vmatpush1.msra.mxu0 0.0
    %490 = vmatprep.subr.mxu0 0.0
    %491 = vmatpush1.msra.mxu0 0.0
    %492 = vmatprep.subr.mxu0 0.0
    %493 = vmatpush1.msra.mxu0 0.0
    %494 = vmatprep.subr.mxu0 0.0
    %495 = vmatpush1.msra.mxu0 0.0
    %496 = vmatprep.subr.mxu0 0.0
    %497 = vmatpush1.msra.mxu0 0.0
    %498 = vmatprep.subr.mxu0 0.0
    %499 = vmatpush1.msra.mxu0 0.0
    %500 = vmatprep.subr.mxu0 0.0
    %501 = vmatpush1.msra.mxu0 0.0
    %502 = vmatprep.subr.mxu0 0.0
    %503 = vmatpush1.msra.mxu0 0.0
    %504 = vmatprep.subr.mxu0 0.0
    %505 = vmatpush1.msra.mxu0 0.0
    %506 = vmatprep.subr.mxu0 0.0
    %507 = vmatpush1.msra.mxu0 0.0
    %508 = vmatprep.subr.mxu0 0.0
    %509 = vmatpush1.msra.mxu0 0.0
    %510 = vmatprep.subr.mxu0 0.0
    %511 = vmatpush1.msra.mxu0 0.0
    %512 = vmatprep.subr.mxu0 0.0
    %513 = vmatpush1.msra.mxu0 0.0
    %514 = vmatprep.subr.mxu0 0.0
    %515 = vmatpush1.msra.mxu0 0.0
    %516 = vmatprep.subr.mxu0 0.0
    %517 = vmatpush1.msra.mxu0 0.0
    %518 = vmatprep.subr.mxu0 0.0
    %519 = vmatpush1.msra.mxu0 0.0
    %520 = vmatprep.subr.mxu0 0.0
    %521 = vmatpush1.msra.mxu0 0.0
    %522 = vmatprep.subr.mxu0 0.0
    %523 = vmatpush1.msra.mxu0 0.0
    %524 = vmatprep.subr.mxu0 0.0
    %525 = vmatpush1.msra.mxu0 0.0
    %526 = vmatprep.subr.mxu0 0.0
    %527 = vmatpush1.msra.mxu0 0.0
    %528 = vmatprep.subr.mxu0 0.0
    %529 = vmatpush1.msra.mxu0 0.0
    %530 = vmatprep.subr.mxu0 0.0
    %531 = vmatpush1.msra.mxu0 0.0
    %532 = vmatprep.subr.mxu0 0.0
    %533 = vmatpush1.msra.mxu0 0.0
    %534 = vmatprep.mubr.f32.mxu0 0.0
    %535 = vmatmul.mubr.f32.gmra.mrb[0].mxu0 %v468
    %v536 = vpop.f32.mrb[0].mxu0
    %v537 = vadd.f32 %v94, %v536
    %v538 = vpop.f32.mrb[0].mxu0
    %539 = vdwg.mxu0
    %540 = vrot.lane.b32.xlu0 %v82, 32
    %v541 = vpop.permute.xlu0 %540
    %v542 = vsel %vm96, %v541, 0
    %544 = vmatprep.subr.mxu0 0.0
    %545 = vmatpush1.msra.mxu0 %v83
    %546 = vmatprep.subr.mxu0 0.0
    %547 = vmatpush1.msra.mxu0 %v84
    %548 = vmatprep.subr.mxu0 0.0
    %549 = vmatpush1.msra.mxu0 0.0
    %550 = vmatprep.subr.mxu0 0.0
    %551 = vmatpush1.msra.mxu0 0.0
    %552 = vmatprep.subr.mxu0 0.0
    %553 = vmatpush1.msra.mxu0 0.0
    %554 = vmatprep.subr.mxu0 0.0
    %555 = vmatpush1.msra.mxu0 0.0
    %556 = vmatprep.subr.mxu0 0.0
    %557 = vmatpush1.msra.mxu0 0.0
    %558 = vmatprep.subr.mxu0 0.0
    %559 = vmatpush1.msra.mxu0 0.0
    %560 = vmatprep.subr.mxu0 0.0
    %561 = vmatpush1.msra.mxu0 0.0
    %562 = vmatprep.subr.mxu0 0.0
    %563 = vmatpush1.msra.mxu0 0.0
    %564 = vmatprep.subr.mxu0 0.0
    %565 = vmatpush1.msra.mxu0 0.0
    %566 = vmatprep.subr.mxu0 0.0
    %567 = vmatpush1.msra.mxu0 0.0
    %568 = vmatprep.subr.mxu0 0.0
    %569 = vmatpush1.msra.mxu0 0.0
    %570 = vmatprep.subr.mxu0 0.0
    %571 = vmatpush1.msra.mxu0 0.0
    %572 = vmatprep.subr.mxu0 0.0
    %573 = vmatpush1.msra.mxu0 0.0
    %574 = vmatprep.subr.mxu0 0.0
    %575 = vmatpush1.msra.mxu0 0.0
    %576 = vmatprep.subr.mxu0 0.0
    %577 = vmatpush1.msra.mxu0 0.0
    %578 = vmatprep.subr.mxu0 0.0
    %579 = vmatpush1.msra.mxu0 0.0
    %580 = vmatprep.subr.mxu0 0.0
    %581 = vmatpush1.msra.mxu0 0.0
    %582 = vmatprep.subr.mxu0 0.0
    %583 = vmatpush1.msra.mxu0 0.0
    %584 = vmatprep.subr.mxu0 0.0
    %585 = vmatpush1.msra.mxu0 0.0
    %586 = vmatprep.subr.mxu0 0.0
    %587 = vmatpush1.msra.mxu0 0.0
    %588 = vmatprep.subr.mxu0 0.0
    %589 = vmatpush1.msra.mxu0 0.0
    %590 = vmatprep.subr.mxu0 0.0
    %591 = vmatpush1.msra.mxu0 0.0
    %592 = vmatprep.subr.mxu0 0.0
    %593 = vmatpush1.msra.mxu0 0.0
    %594 = vmatprep.subr.mxu0 0.0
    %595 = vmatpush1.msra.mxu0 0.0
    %596 = vmatprep.subr.mxu0 0.0
    %597 = vmatpush1.msra.mxu0 0.0
    %598 = vmatprep.subr.mxu0 0.0
    %599 = vmatpush1.msra.mxu0 0.0
    %600 = vmatprep.subr.mxu0 0.0
    %601 = vmatpush1.msra.mxu0 0.0
    %602 = vmatprep.subr.mxu0 0.0
    %603 = vmatpush1.msra.mxu0 0.0
    %604 = vmatprep.subr.mxu0 0.0
    %605 = vmatpush1.msra.mxu0 0.0
    %606 = vmatprep.subr.mxu0 0.0
    %607 = vmatpush1.msra.mxu0 0.0
    %608 = vmatprep.mubr.f32.mxu0 0.0
    %609 = vmatmul.mubr.f32.gmra.mrb[0].mxu0 %v542
    %v610 = vpop.f32.mrb[0].mxu0
    %v611 = vadd.f32 %v94, %v610
    %v612 = vpop.f32.mrb[0].mxu0
    %613 = vdwg.mxu0
    %614 = vrot.lane.b32.xlu0 %v82, 16
    %v615 = vpop.permute.xlu0 %614
    %v616 = vsel %vm96, %v615, 0
    %618 = vmatprep.subr.mxu0 0.0
    %619 = vmatpush1.msra.mxu0 %v83
    %620 = vmatprep.subr.mxu0 0.0
    %621 = vmatpush1.msra.mxu0 %v84
    %622 = vmatprep.subr.mxu0 0.0
    %623 = vmatpush1.msra.mxu0 0.0
    %624 = vmatprep.subr.mxu0 0.0
    %625 = vmatpush1.msra.mxu0 0.0
    %626 = vmatprep.subr.mxu0 0.0
    %627 = vmatpush1.msra.mxu0 0.0
    %628 = vmatprep.subr.mxu0 0.0
    %629 = vmatpush1.msra.mxu0 0.0
    %630 = vmatprep.subr.mxu0 0.0
    %631 = vmatpush1.msra.mxu0 0.0
    %632 = vmatprep.subr.mxu0 0.0
    %633 = vmatpush1.msra.mxu0 0.0
    %634 = vmatprep.subr.mxu0 0.0
    %635 = vmatpush1.msra.mxu0 0.0
    %636 = vmatprep.subr.mxu0 0.0
    %637 = vmatpush1.msra.mxu0 0.0
    %638 = vmatprep.subr.mxu0 0.0
    %639 = vmatpush1.msra.mxu0 0.0
    %640 = vmatprep.subr.mxu0 0.0
    %641 = vmatpush1.msra.mxu0 0.0
    %642 = vmatprep.subr.mxu0 0.0
    %643 = vmatpush1.msra.mxu0 0.0
    %644 = vmatprep.subr.mxu0 0.0
    %645 = vmatpush1.msra.mxu0 0.0
    %646 = vmatprep.subr.mxu0 0.0
    %647 = vmatpush1.msra.mxu0 0.0
    %648 = vmatprep.subr.mxu0 0.0
    %649 = vmatpush1.msra.mxu0 0.0
    %650 = vmatprep.subr.mxu0 0.0
    %651 = vmatpush1.msra.mxu0 0.0
    %652 = vmatprep.subr.mxu0 0.0
    %653 = vmatpush1.msra.mxu0 0.0
    %654 = vmatprep.subr.mxu0 0.0
    %655 = vmatpush1.msra.mxu0 0.0
    %656 = vmatprep.subr.mxu0 0.0
    %657 = vmatpush1.msra.mxu0 0.0
    %658 = vmatprep.subr.mxu0 0.0
    %659 = vmatpush1.msra.mxu0 0.0
    %660 = vmatprep.subr.mxu0 0.0
    %661 = vmatpush1.msra.mxu0 0.0
    %662 = vmatprep.subr.mxu0 0.0
    %663 = vmatpush1.msra.mxu0 0.0
    %664 = vmatprep.subr.mxu0 0.0
    %665 = vmatpush1.msra.mxu0 0.0
    %666 = vmatprep.subr.mxu0 0.0
    %667 = vmatpush1.msra.mxu0 0.0
    %668 = vmatprep.subr.mxu0 0.0
    %669 = vmatpush1.msra.mxu0 0.0
    %670 = vmatprep.subr.mxu0 0.0
    %671 = vmatpush1.msra.mxu0 0.0
    %672 = vmatprep.subr.mxu0 0.0
    %673 = vmatpush1.msra.mxu0 0.0
    %674 = vmatprep.subr.mxu0 0.0
    %675 = vmatpush1.msra.mxu0 0.0
    %676 = vmatprep.subr.mxu0 0.0
    %677 = vmatpush1.msra.mxu0 0.0
    %678 = vmatprep.subr.mxu0 0.0
    %679 = vmatpush1.msra.mxu0 0.0
    %680 = vmatprep.subr.mxu0 0.0
    %681 = vmatpush1.msra.mxu0 0.0
    %682 = vmatprep.mubr.f32.mxu0 0.0
    %683 = vmatmul.mubr.f32.gmra.mrb[0].mxu0 %v616
    %v684 = vpop.f32.mrb[0].mxu0
    %v685 = vadd.f32 %v94, %v684
    %v686 = vpop.f32.mrb[0].mxu0
    %687 = vdwg.mxu0
    %v688 = vld [vmem:[%s9] sm:$0x3]
    %v689 = vld [vmem:[%s10] sm:$0x3]
    %vm690 = vcmask 261120
    %v692 = vsel %vm690, %v688, 0
    %694 = vmatprep.subr.mxu0 0.0
    %695 = vmatpush1.msra.mxu0 %v85
    %696 = vmatprep.subr.mxu0 0.0
    %697 = vmatpush1.msra.mxu0 %v86
    %698 = vmatprep.subr.mxu0 0.0
    %699 = vmatpush1.msra.mxu0 %v87
    %700 = vmatprep.subr.mxu0 0.0
    %701 = vmatpush1.msra.mxu0 %v88
    %702 = vmatprep.subr.mxu0 0.0
    %703 = vmatpush1.msra.mxu0 0.0
    %704 = vmatprep.subr.mxu0 0.0
    %705 = vmatpush1.msra.mxu0 0.0
    %706 = vmatprep.subr.mxu0 0.0
    %707 = vmatpush1.msra.mxu0 0.0
    %708 = vmatprep.subr.mxu0 0.0
    %709 = vmatpush1.msra.mxu0 0.0
    %710 = vmatprep.subr.mxu0 0.0
    %711 = vmatpush1.msra.mxu0 0.0
    %712 = vmatprep.subr.mxu0 0.0
    %713 = vmatpush1.msra.mxu0 0.0
    %714 = vmatprep.subr.mxu0 0.0
    %715 = vmatpush1.msra.mxu0 0.0
    %716 = vmatprep.subr.mxu0 0.0
    %717 = vmatpush1.msra.mxu0 0.0
    %718 = vmatprep.subr.mxu0 0.0
    %719 = vmatpush1.msra.mxu0 0.0
    %720 = vmatprep.subr.mxu0 0.0
    %721 = vmatpush1.msra.mxu0 0.0
    %722 = vmatprep.subr.mxu0 0.0
    %723 = vmatpush1.msra.mxu0 0.0
    %724 = vmatprep.subr.mxu0 0.0
    %725 = vmatpush1.msra.mxu0 0.0
    %726 = vmatprep.subr.mxu0 0.0
    %727 = vmatpush1.msra.mxu0 0.0
    %728 = vmatprep.subr.mxu0 0.0
    %729 = vmatpush1.msra.mxu0 0.0
    %730 = vmatprep.subr.mxu0 0.0
    %731 = vmatpush1.msra.mxu0 0.0
    %732 = vmatprep.subr.mxu0 0.0
    %733 = vmatpush1.msra.mxu0 0.0
    %734 = vmatprep.subr.mxu0 0.0
    %735 = vmatpush1.msra.mxu0 0.0
    %736 = vmatprep.subr.mxu0 0.0
    %737 = vmatpush1.msra.mxu0 0.0
    %738 = vmatprep.subr.mxu0 0.0
    %739 = vmatpush1.msra.mxu0 0.0
    %740 = vmatprep.subr.mxu0 0.0
    %741 = vmatpush1.msra.mxu0 0.0
    %742 = vmatprep.subr.mxu0 0.0
    %743 = vmatpush1.msra.mxu0 0.0
    %744 = vmatprep.subr.mxu0 0.0
    %745 = vmatpush1.msra.mxu0 0.0
    %746 = vmatprep.subr.mxu0 0.0
    %747 = vmatpush1.msra.mxu0 0.0
    %748 = vmatprep.subr.mxu0 0.0
    %749 = vmatpush1.msra.mxu0 0.0
    %750 = vmatprep.subr.mxu0 0.0
    %751 = vmatpush1.msra.mxu0 0.0
    %752 = vmatprep.subr.mxu0 0.0
    %753 = vmatpush1.msra.mxu0 0.0
    %754 = vmatprep.subr.mxu0 0.0
    %755 = vmatpush1.msra.mxu0 0.0
    %756 = vmatprep.subr.mxu0 0.0
    %757 = vmatpush1.msra.mxu0 0.0
    %758 = vmatprep.mubr.f32.mxu0 0.0
    %759 = vmatmul.mubr.f32.gmra.mrb[0].mxu0 %v692
    %v760 = vpop.f32.mrb[0].mxu0
    %v761 = vadd.f32 0.0, %v760
    %v762 = vpop.f32.mrb[0].mxu0
    %763 = vdwg.mxu0
    %v764 = vadd.f32 %v167, %v761
    %v765 = vxor.u32 %v764, 2147483648
    %v766 = vmul.f32 %v765, 1.442695
    %v767 = vpow.pop %v766
    %v768 = vadd.f32 %v767, 1.0
    %v769 = vrcp.pop %v768
    %v770 = vmul.f32 1.0, %v769
    %v771 = vtanh.pop %v764
    %773 = vrot.lane.b32.xlu0 %v689, 32
    %v774 = vpop.permute.xlu0 %773
    %v776 = vmul.f32 %v770, %v774
    %778 = vrot.lane.b32.xlu0 %v771, 64
    %v779 = vpop.permute.xlu0 %778
    %v781 = vmul.f32 %v770, %v779
    %783 = vrot.lane.b32.xlu0 %v781, 32
    %v784 = vpop.permute.xlu0 %783
    %v786 = vadd.f32 %v776, %v784
    %v787 = vtanh.pop %v786
    %789 = vrot.lane.b32.xlu0 %v787, 64
    %v790 = vpop.permute.xlu0 %789
    %v792 = vmul.f32 %v770, %v790
    %794 = vrot.lane.b32.xlu0 %v792, 32
    %v795 = vpop.permute.xlu0 %794
    %v796 = vsel %vm690, %v795, 0
    %798 = vmatprep.subr.mxu0 0.0
    %799 = vmatpush1.msra.mxu0 %v85
    %800 = vmatprep.subr.mxu0 0.0
    %801 = vmatpush1.msra.mxu0 %v86
    %802 = vmatprep.subr.mxu0 0.0
    %803 = vmatpush1.msra.mxu0 %v87
    %804 = vmatprep.subr.mxu0 0.0
    %805 = vmatpush1.msra.mxu0 %v88
    %806 = vmatprep.subr.mxu0 0.0
    %807 = vmatpush1.msra.mxu0 0.0
    %808 = vmatprep.subr.mxu0 0.0
    %809 = vmatpush1.msra.mxu0 0.0
    %810 = vmatprep.subr.mxu0 0.0
    %811 = vmatpush1.msra.mxu0 0.0
    %812 = vmatprep.subr.mxu0 0.0
    %813 = vmatpush1.msra.mxu0 0.0
    %814 = vmatprep.subr.mxu0 0.0
    %815 = vmatpush1.msra.mxu0 0.0
    %816 = vmatprep.subr.mxu0 0.0
    %817 = vmatpush1.msra.mxu0 0.0
    %818 = vmatprep.subr.mxu0 0.0
    %819 = vmatpush1.msra.mxu0 0.0
    %820 = vmatprep.subr.mxu0 0.0
    %821 = vmatpush1.msra.mxu0 0.0
    %822 = vmatprep.subr.mxu0 0.0
    %823 = vmatpush1.msra.mxu0 0.0
    %824 = vmatprep.subr.mxu0 0.0
    %825 = vmatpush1.msra.mxu0 0.0
    %826 = vmatprep.subr.mxu0 0.0
    %827 = vmatpush1.msra.mxu0 0.0
    %828 = vmatprep.subr.mxu0 0.0
    %829 = vmatpush1.msra.mxu0 0.0
    %830 = vmatprep.subr.mxu0 0.0
    %831 = vmatpush1.msra.mxu0 0.0
    %832 = vmatprep.subr.mxu0 0.0
    %833 = vmatpush1.msra.mxu0 0.0
    %834 = vmatprep.subr.mxu0 0.0
    %835 = vmatpush1.msra.mxu0 0.0
    %836 = vmatprep.subr.mxu0 0.0
    %837 = vmatpush1.msra.mxu0 0.0
    %838 = vmatprep.subr.mxu0 0.0
    %839 = vmatpush1.msra.mxu0 0.0
    %840 = vmatprep.subr.mxu0 0.0
    %841 = vmatpush1.msra.mxu0 0.0
    %842 = vmatprep.subr.mxu0 0.0
    %843 = vmatpush1.msra.mxu0 0.0
    %844 = vmatprep.subr.mxu0 0.0
    %845 = vmatpush1.msra.mxu0 0.0
    %846 = vmatprep.subr.mxu0 0.0
    %847 = vmatpush1.msra.mxu0 0.0
    %848 = vmatprep.subr.mxu0 0.0
    %849 = vmatpush1.msra.mxu0 0.0
    %850 = vmatprep.subr.mxu0 0.0
    %851 = vmatpush1.msra.mxu0 0.0
    %852 = vmatprep.subr.mxu0 0.0
    %853 = vmatpush1.msra.mxu0 0.0
    %854 = vmatprep.subr.mxu0 0.0
    %855 = vmatpush1.msra.mxu0 0.0
    %856 = vmatprep.subr.mxu0 0.0
    %857 = vmatpush1.msra.mxu0 0.0
    %858 = vmatprep.subr.mxu0 0.0
    %859 = vmatpush1.msra.mxu0 0.0
    %860 = vmatprep.subr.mxu0 0.0
    %861 = vmatpush1.msra.mxu0 0.0
    %862 = vmatprep.mubr.f32.mxu0 0.0
    %863 = vmatmul.mubr.f32.gmra.mrb[0].mxu0 %v796
    %v864 = vpop.f32.mrb[0].mxu0
    %v865 = vadd.f32 0.0, %v864
    %v866 = vpop.f32.mrb[0].mxu0
    %867 = vdwg.mxu0
    %v868 = vadd.f32 %v241, %v865
    %v869 = vxor.u32 %v868, 2147483648
    %v870 = vmul.f32 %v869, 1.442695
    %v871 = vpow.pop %v870
    %v872 = vadd.f32 %v871, 1.0
    %v873 = vrcp.pop %v872
    %v874 = vmul.f32 1.0, %v873
    %v875 = vtanh.pop %v868
    %v876 = vmul.f32 %v874, %v786
    %878 = vrot.lane.b32.xlu0 %v875, 64
    %v879 = vpop.permute.xlu0 %878
    %v881 = vmul.f32 %v874, %v879
    %883 = vrot.lane.b32.xlu0 %v881, 32
    %v884 = vpop.permute.xlu0 %883
    %v886 = vadd.f32 %v876, %v884
    %v887 = vtanh.pop %v886
    %889 = vrot.lane.b32.xlu0 %v887, 64
    %v890 = vpop.permute.xlu0 %889
    %v892 = vmul.f32 %v874, %v890
    %894 = vrot.lane.b32.xlu0 %v892, 32
    %v895 = vpop.permute.xlu0 %894
    %v896 = vsel %vm690, %v895, 0
    %898 = vmatprep.subr.mxu0 0.0
    %899 = vmatpush1.msra.mxu0 %v85
    %900 = vmatprep.subr.mxu0 0.0
    %901 = vmatpush1.msra.mxu0 %v86
    %902 = vmatprep.subr.mxu0 0.0
    %903 = vmatpush1.msra.mxu0 %v87
    %904 = vmatprep.subr.mxu0 0.0
    %905 = vmatpush1.msra.mxu0 %v88
    %906 = vmatprep.subr.mxu0 0.0
    %907 = vmatpush1.msra.mxu0 0.0
    %908 = vmatprep.subr.mxu0 0.0
    %909 = vmatpush1.msra.mxu0 0.0
    %910 = vmatprep.subr.mxu0 0.0
    %911 = vmatpush1.msra.mxu0 0.0
    %912 = vmatprep.subr.mxu0 0.0
    %913 = vmatpush1.msra.mxu0 0.0
    %914 = vmatprep.subr.mxu0 0.0
    %915 = vmatpush1.msra.mxu0 0.0
    %916 = vmatprep.subr.mxu0 0.0
    %917 = vmatpush1.msra.mxu0 0.0
    %918 = vmatprep.subr.mxu0 0.0
    %919 = vmatpush1.msra.mxu0 0.0
    %920 = vmatprep.subr.mxu0 0.0
    %921 = vmatpush1.msra.mxu0 0.0
    %922 = vmatprep.subr.mxu0 0.0
    %923 = vmatpush1.msra.mxu0 0.0
    %924 = vmatprep.subr.mxu0 0.0
    %925 = vmatpush1.msra.mxu0 0.0
    %926 = vmatprep.subr.mxu0 0.0
    %927 = vmatpush1.msra.mxu0 0.0
    %928 = vmatprep.subr.mxu0 0.0
    %929 = vmatpush1.msra.mxu0 0.0
    %930 = vmatprep.subr.mxu0 0.0
    %931 = vmatpush1.msra.mxu0 0.0
    %932 = vmatprep.subr.mxu0 0.0
    %933 = vmatpush1.msra.mxu0 0.0
    %934 = vmatprep.subr.mxu0 0.0
    %935 = vmatpush1.msra.mxu0 0.0
    %936 = vmatprep.subr.mxu0 0.0
    %937 = vmatpush1.msra.mxu0 0.0
    %938 = vmatprep.subr.mxu0 0.0
    %939 = vmatpush1.msra.mxu0 0.0
    %940 = vmatprep.subr.mxu0 0.0
    %941 = vmatpush1.msra.mxu0 0.0
    %942 = vmatprep.subr.mxu0 0.0
    %943 = vmatpush1.msra.mxu0 0.0
    %944 = vmatprep.subr.mxu0 0.0
    %945 = vmatpush1.msra.mxu0 0.0
    %946 = vmatprep.subr.mxu0 0.0
    %947 = vmatpush1.msra.mxu0 0.0
    %948 = vmatprep.subr.mxu0 0.0
    %949 = vmatpush1.msra.mxu0 0.0
    %950 = vmatprep.subr.mxu0 0.0
    %951 = vmatpush1.msra.mxu0 0.0
    %952 = vmatprep.subr.mxu0 0.0
    %953 = vmatpush1.msra.mxu0 0.0
    %954 = vmatprep.subr.mxu0 0.0
    %955 = vmatpush1.msra.mxu0 0.0
    %956 = vmatprep.subr.mxu0 0.0
    %957 = vmatpush1.msra.mxu0 0.0
    %958 = vmatprep.subr.mxu0 0.0
    %959 = vmatpush1.msra.mxu0 0.0
    %960 = vmatprep.subr.mxu0 0.0
    %961 = vmatpush1.msra.mxu0 0.0
    %962 = vmatprep.mubr.f32.mxu0 0.0
    %963 = vmatmul.mubr.f32.gmra.mrb[0].mxu0 %v896
    %v964 = vpop.f32.mrb[0].mxu0
    %v965 = vadd.f32 0.0, %v964
    %v966 = vpop.f32.mrb[0].mxu0
    %967 = vdwg.mxu0
    %v968 = vadd.f32 %v315, %v965
    %v969 = vxor.u32 %v968, 2147483648
    %v970 = vmul.f32 %v969, 1.442695
    %v971 = vpow.pop %v970
    %v972 = vadd.f32 %v971, 1.0
    %v973 = vrcp.pop %v972
    %v974 = vmul.f32 1.0, %v973
    %v975 = vtanh.pop %v968
    %v976 = vmul.f32 %v974, %v886
    %978 = vrot.lane.b32.xlu0 %v975, 64
    %v979 = vpop.permute.xlu0 %978
    %v981 = vmul.f32 %v974, %v979
    %983 = vrot.lane.b32.xlu0 %v981, 32
    %v984 = vpop.permute.xlu0 %983
    %v986 = vadd.f32 %v976, %v984
    %v987 = vtanh.pop %v986
    %989 = vrot.lane.b32.xlu0 %v987, 64
    %v990 = vpop.permute.xlu0 %989
    %v992 = vmul.f32 %v974, %v990
    %994 = vrot.lane.b32.xlu0 %v992, 32
    %v995 = vpop.permute.xlu0 %994
    %v996 = vsel %vm690, %v995, 0
    %998 = vmatprep.subr.mxu0 0.0
    %999 = vmatpush1.msra.mxu0 %v85
    %1000 = vmatprep.subr.mxu0 0.0
    %1001 = vmatpush1.msra.mxu0 %v86
    %1002 = vmatprep.subr.mxu0 0.0
    %1003 = vmatpush1.msra.mxu0 %v87
    %1004 = vmatprep.subr.mxu0 0.0
    %1005 = vmatpush1.msra.mxu0 %v88
    %1006 = vmatprep.subr.mxu0 0.0
    %1007 = vmatpush1.msra.mxu0 0.0
    %1008 = vmatprep.subr.mxu0 0.0
    %1009 = vmatpush1.msra.mxu0 0.0
    %1010 = vmatprep.subr.mxu0 0.0
    %1011 = vmatpush1.msra.mxu0 0.0
    %1012 = vmatprep.subr.mxu0 0.0
    %1013 = vmatpush1.msra.mxu0 0.0
    %1014 = vmatprep.subr.mxu0 0.0
    %1015 = vmatpush1.msra.mxu0 0.0
    %1016 = vmatprep.subr.mxu0 0.0
    %1017 = vmatpush1.msra.mxu0 0.0
    %1018 = vmatprep.subr.mxu0 0.0
    %1019 = vmatpush1.msra.mxu0 0.0
    %1020 = vmatprep.subr.mxu0 0.0
    %1021 = vmatpush1.msra.mxu0 0.0
    %1022 = vmatprep.subr.mxu0 0.0
    %1023 = vmatpush1.msra.mxu0 0.0
    %1024 = vmatprep.subr.mxu0 0.0
    %1025 = vmatpush1.msra.mxu0 0.0
    %1026 = vmatprep.subr.mxu0 0.0
    %1027 = vmatpush1.msra.mxu0 0.0
    %1028 = vmatprep.subr.mxu0 0.0
    %1029 = vmatpush1.msra.mxu0 0.0
    %1030 = vmatprep.subr.mxu0 0.0
    %1031 = vmatpush1.msra.mxu0 0.0
    %1032 = vmatprep.subr.mxu0 0.0
    %1033 = vmatpush1.msra.mxu0 0.0
    %1034 = vmatprep.subr.mxu0 0.0
    %1035 = vmatpush1.msra.mxu0 0.0
    %1036 = vmatprep.subr.mxu0 0.0
    %1037 = vmatpush1.msra.mxu0 0.0
    %1038 = vmatprep.subr.mxu0 0.0
    %1039 = vmatpush1.msra.mxu0 0.0
    %1040 = vmatprep.subr.mxu0 0.0
    %1041 = vmatpush1.msra.mxu0 0.0
    %1042 = vmatprep.subr.mxu0 0.0
    %1043 = vmatpush1.msra.mxu0 0.0
    %1044 = vmatprep.subr.mxu0 0.0
    %1045 = vmatpush1.msra.mxu0 0.0
    %1046 = vmatprep.subr.mxu0 0.0
    %1047 = vmatpush1.msra.mxu0 0.0
    %1048 = vmatprep.subr.mxu0 0.0
    %1049 = vmatpush1.msra.mxu0 0.0
    %1050 = vmatprep.subr.mxu0 0.0
    %1051 = vmatpush1.msra.mxu0 0.0
    %1052 = vmatprep.subr.mxu0 0.0
    %1053 = vmatpush1.msra.mxu0 0.0
    %1054 = vmatprep.subr.mxu0 0.0
    %1055 = vmatpush1.msra.mxu0 0.0
    %1056 = vmatprep.subr.mxu0 0.0
    %1057 = vmatpush1.msra.mxu0 0.0
    %1058 = vmatprep.subr.mxu0 0.0
    %1059 = vmatpush1.msra.mxu0 0.0
    %1060 = vmatprep.subr.mxu0 0.0
    %1061 = vmatpush1.msra.mxu0 0.0
    %1062 = vmatprep.mubr.f32.mxu0 0.0
    %1063 = vmatmul.mubr.f32.gmra.mrb[0].mxu0 %v996
    %v1064 = vpop.f32.mrb[0].mxu0
    %v1065 = vadd.f32 0.0, %v1064
    %v1066 = vpop.f32.mrb[0].mxu0
    %1067 = vdwg.mxu0
    %v1068 = vadd.f32 %v389, %v1065
    %v1069 = vxor.u32 %v1068, 2147483648
    %v1070 = vmul.f32 %v1069, 1.442695
    %v1071 = vpow.pop %v1070
    %v1072 = vadd.f32 %v1071, 1.0
    %v1073 = vrcp.pop %v1072
    %v1074 = vmul.f32 1.0, %v1073
    %v1075 = vtanh.pop %v1068
    %v1076 = vmul.f32 %v1074, %v986
    %1078 = vrot.lane.b32.xlu0 %v1075, 64
    %v1079 = vpop.permute.xlu0 %1078
    %v1081 = vmul.f32 %v1074, %v1079
    %1083 = vrot.lane.b32.xlu0 %v1081, 32
    %v1084 = vpop.permute.xlu0 %1083
    %v1086 = vadd.f32 %v1076, %v1084
    %v1087 = vtanh.pop %v1086
    %1089 = vrot.lane.b32.xlu0 %v1087, 64
    %v1090 = vpop.permute.xlu0 %1089
    %v1092 = vmul.f32 %v1074, %v1090
    %1094 = vrot.lane.b32.xlu0 %v1092, 32
    %v1095 = vpop.permute.xlu0 %1094
    %v1096 = vsel %vm690, %v1095, 0
    %1098 = vmatprep.subr.mxu0 0.0
    %1099 = vmatpush1.msra.mxu0 %v85
    %1100 = vmatprep.subr.mxu0 0.0
    %1101 = vmatpush1.msra.mxu0 %v86
    %1102 = vmatprep.subr.mxu0 0.0
    %1103 = vmatpush1.msra.mxu0 %v87
    %1104 = vmatprep.subr.mxu0 0.0
    %1105 = vmatpush1.msra.mxu0 %v88
    %1106 = vmatprep.subr.mxu0 0.0
    %1107 = vmatpush1.msra.mxu0 0.0
    %1108 = vmatprep.subr.mxu0 0.0
    %1109 = vmatpush1.msra.mxu0 0.0
    %1110 = vmatprep.subr.mxu0 0.0
    %1111 = vmatpush1.msra.mxu0 0.0
    %1112 = vmatprep.subr.mxu0 0.0
    %1113 = vmatpush1.msra.mxu0 0.0
    %1114 = vmatprep.subr.mxu0 0.0
    %1115 = vmatpush1.msra.mxu0 0.0
    %1116 = vmatprep.subr.mxu0 0.0
    %1117 = vmatpush1.msra.mxu0 0.0
    %1118 = vmatprep.subr.mxu0 0.0
    %1119 = vmatpush1.msra.mxu0 0.0
    %1120 = vmatprep.subr.mxu0 0.0
    %1121 = vmatpush1.msra.mxu0 0.0
    %1122 = vmatprep.subr.mxu0 0.0
    %1123 = vmatpush1.msra.mxu0 0.0
    %1124 = vmatprep.subr.mxu0 0.0
    %1125 = vmatpush1.msra.mxu0 0.0
    %1126 = vmatprep.subr.mxu0 0.0
    %1127 = vmatpush1.msra.mxu0 0.0
    %1128 = vmatprep.subr.mxu0 0.0
    %1129 = vmatpush1.msra.mxu0 0.0
    %1130 = vmatprep.subr.mxu0 0.0
    %1131 = vmatpush1.msra.mxu0 0.0
    %1132 = vmatprep.subr.mxu0 0.0
    %1133 = vmatpush1.msra.mxu0 0.0
    %1134 = vmatprep.subr.mxu0 0.0
    %1135 = vmatpush1.msra.mxu0 0.0
    %1136 = vmatprep.subr.mxu0 0.0
    %1137 = vmatpush1.msra.mxu0 0.0
    %1138 = vmatprep.subr.mxu0 0.0
    %1139 = vmatpush1.msra.mxu0 0.0
    %1140 = vmatprep.subr.mxu0 0.0
    %1141 = vmatpush1.msra.mxu0 0.0
    %1142 = vmatprep.subr.mxu0 0.0
    %1143 = vmatpush1.msra.mxu0 0.0
    %1144 = vmatprep.subr.mxu0 0.0
    %1145 = vmatpush1.msra.mxu0 0.0
    %1146 = vmatprep.subr.mxu0 0.0
    %1147 = vmatpush1.msra.mxu0 0.0
    %1148 = vmatprep.subr.mxu0 0.0
    %1149 = vmatpush1.msra.mxu0 0.0
    %1150 = vmatprep.subr.mxu0 0.0
    %1151 = vmatpush1.msra.mxu0 0.0
    %1152 = vmatprep.subr.mxu0 0.0
    %1153 = vmatpush1.msra.mxu0 0.0
    %1154 = vmatprep.subr.mxu0 0.0
    %1155 = vmatpush1.msra.mxu0 0.0
    %1156 = vmatprep.subr.mxu0 0.0
    %1157 = vmatpush1.msra.mxu0 0.0
    %1158 = vmatprep.subr.mxu0 0.0
    %1159 = vmatpush1.msra.mxu0 0.0
    %1160 = vmatprep.subr.mxu0 0.0
    %1161 = vmatpush1.msra.mxu0 0.0
    %1162 = vmatprep.mubr.f32.mxu0 0.0
    %1163 = vmatmul.mubr.f32.gmra.mrb[0].mxu0 %v1096
    %v1164 = vpop.f32.mrb[0].mxu0
    %v1165 = vadd.f32 0.0, %v1164
    %v1166 = vpop.f32.mrb[0].mxu0
    %1167 = vdwg.mxu0
    %v1168 = vadd.f32 %v463, %v1165
    %v1169 = vxor.u32 %v1168, 2147483648
    %v1170 = vmul.f32 %v1169, 1.442695
    %v1171 = vpow.pop %v1170
    %v1172 = vadd.f32 %v1171, 1.0
    %v1173 = vrcp.pop %v1172
    %v1174 = vmul.f32 1.0, %v1173
    %v1175 = vtanh.pop %v1168
    %v1176 = vmul.f32 %v1174, %v1086
    %1178 = vrot.lane.b32.xlu0 %v1175, 64
    %v1179 = vpop.permute.xlu0 %1178
    %v1181 = vmul.f32 %v1174, %v1179
    %1183 = vrot.lane.b32.xlu0 %v1181, 32
    %v1184 = vpop.permute.xlu0 %1183
    %v1186 = vadd.f32 %v1176, %v1184
    %v1187 = vtanh.pop %v1186
    %1189 = vrot.lane.b32.xlu0 %v1187, 64
    %v1190 = vpop.permute.xlu0 %1189
    %v1192 = vmul.f32 %v1174, %v1190
    %1194 = vrot.lane.b32.xlu0 %v1192, 32
    %v1195 = vpop.permute.xlu0 %1194
    %v1196 = vsel %vm690, %v1195, 0
    %1198 = vmatprep.subr.mxu0 0.0
    %1199 = vmatpush1.msra.mxu0 %v85
    %1200 = vmatprep.subr.mxu0 0.0
    %1201 = vmatpush1.msra.mxu0 %v86
    %1202 = vmatprep.subr.mxu0 0.0
    %1203 = vmatpush1.msra.mxu0 %v87
    %1204 = vmatprep.subr.mxu0 0.0
    %1205 = vmatpush1.msra.mxu0 %v88
    %1206 = vmatprep.subr.mxu0 0.0
    %1207 = vmatpush1.msra.mxu0 0.0
    %1208 = vmatprep.subr.mxu0 0.0
    %1209 = vmatpush1.msra.mxu0 0.0
    %1210 = vmatprep.subr.mxu0 0.0
    %1211 = vmatpush1.msra.mxu0 0.0
    %1212 = vmatprep.subr.mxu0 0.0
    %1213 = vmatpush1.msra.mxu0 0.0
    %1214 = vmatprep.subr.mxu0 0.0
    %1215 = vmatpush1.msra.mxu0 0.0
    %1216 = vmatprep.subr.mxu0 0.0
    %1217 = vmatpush1.msra.mxu0 0.0
    %1218 = vmatprep.subr.mxu0 0.0
    %1219 = vmatpush1.msra.mxu0 0.0
    %1220 = vmatprep.subr.mxu0 0.0
    %1221 = vmatpush1.msra.mxu0 0.0
    %1222 = vmatprep.subr.mxu0 0.0
    %1223 = vmatpush1.msra.mxu0 0.0
    %1224 = vmatprep.subr.mxu0 0.0
    %1225 = vmatpush1.msra.mxu0 0.0
    %1226 = vmatprep.subr.mxu0 0.0
    %1227 = vmatpush1.msra.mxu0 0.0
    %1228 = vmatprep.subr.mxu0 0.0
    %1229 = vmatpush1.msra.mxu0 0.0
    %1230 = vmatprep.subr.mxu0 0.0
    %1231 = vmatpush1.msra.mxu0 0.0
    %1232 = vmatprep.subr.mxu0 0.0
    %1233 = vmatpush1.msra.mxu0 0.0
    %1234 = vmatprep.subr.mxu0 0.0
    %1235 = vmatpush1.msra.mxu0 0.0
    %1236 = vmatprep.subr.mxu0 0.0
    %1237 = vmatpush1.msra.mxu0 0.0
    %1238 = vmatprep.subr.mxu0 0.0
    %1239 = vmatpush1.msra.mxu0 0.0
    %1240 = vmatprep.subr.mxu0 0.0
    %1241 = vmatpush1.msra.mxu0 0.0
    %1242 = vmatprep.subr.mxu0 0.0
    %1243 = vmatpush1.msra.mxu0 0.0
    %1244 = vmatprep.subr.mxu0 0.0
    %1245 = vmatpush1.msra.mxu0 0.0
    %1246 = vmatprep.subr.mxu0 0.0
    %1247 = vmatpush1.msra.mxu0 0.0
    %1248 = vmatprep.subr.mxu0 0.0
    %1249 = vmatpush1.msra.mxu0 0.0
    %1250 = vmatprep.subr.mxu0 0.0
    %1251 = vmatpush1.msra.mxu0 0.0
    %1252 = vmatprep.subr.mxu0 0.0
    %1253 = vmatpush1.msra.mxu0 0.0
    %1254 = vmatprep.subr.mxu0 0.0
    %1255 = vmatpush1.msra.mxu0 0.0
    %1256 = vmatprep.subr.mxu0 0.0
    %1257 = vmatpush1.msra.mxu0 0.0
    %1258 = vmatprep.subr.mxu0 0.0
    %1259 = vmatpush1.msra.mxu0 0.0
    %1260 = vmatprep.subr.mxu0 0.0
    %1261 = vmatpush1.msra.mxu0 0.0
    %1262 = vmatprep.mubr.f32.mxu0 0.0
    %1263 = vmatmul.mubr.f32.gmra.mrb[0].mxu0 %v1196
    %v1264 = vpop.f32.mrb[0].mxu0
    %v1265 = vadd.f32 0.0, %v1264
    %v1266 = vpop.f32.mrb[0].mxu0
    %1267 = vdwg.mxu0
    %v1268 = vadd.f32 %v537, %v1265
    %v1269 = vxor.u32 %v1268, 2147483648
    %v1270 = vmul.f32 %v1269, 1.442695
    %v1271 = vpow.pop %v1270
    %v1272 = vadd.f32 %v1271, 1.0
    %v1273 = vrcp.pop %v1272
    %v1274 = vmul.f32 1.0, %v1273
    %v1275 = vtanh.pop %v1268
    %v1276 = vmul.f32 %v1274, %v1186
    %1278 = vrot.lane.b32.xlu0 %v1275, 64
    %v1279 = vpop.permute.xlu0 %1278
    %v1281 = vmul.f32 %v1274, %v1279
    %1283 = vrot.lane.b32.xlu0 %v1281, 32
    %v1284 = vpop.permute.xlu0 %1283
    %v1286 = vadd.f32 %v1276, %v1284
    %v1287 = vtanh.pop %v1286
    %1289 = vrot.lane.b32.xlu0 %v1287, 64
    %v1290 = vpop.permute.xlu0 %1289
    %v1292 = vmul.f32 %v1274, %v1290
    %1294 = vrot.lane.b32.xlu0 %v1292, 32
    %v1295 = vpop.permute.xlu0 %1294
    %v1296 = vsel %vm690, %v1295, 0
    %1298 = vmatprep.subr.mxu0 0.0
    %1299 = vmatpush1.msra.mxu0 %v85
    %1300 = vmatprep.subr.mxu0 0.0
    %1301 = vmatpush1.msra.mxu0 %v86
    %1302 = vmatprep.subr.mxu0 0.0
    %1303 = vmatpush1.msra.mxu0 %v87
    %1304 = vmatprep.subr.mxu0 0.0
    %1305 = vmatpush1.msra.mxu0 %v88
    %1306 = vmatprep.subr.mxu0 0.0
    %1307 = vmatpush1.msra.mxu0 0.0
    %1308 = vmatprep.subr.mxu0 0.0
    %1309 = vmatpush1.msra.mxu0 0.0
    %1310 = vmatprep.subr.mxu0 0.0
    %1311 = vmatpush1.msra.mxu0 0.0
    %1312 = vmatprep.subr.mxu0 0.0
    %1313 = vmatpush1.msra.mxu0 0.0
    %1314 = vmatprep.subr.mxu0 0.0
    %1315 = vmatpush1.msra.mxu0 0.0
    %1316 = vmatprep.subr.mxu0 0.0
    %1317 = vmatpush1.msra.mxu0 0.0
    %1318 = vmatprep.subr.mxu0 0.0
    %1319 = vmatpush1.msra.mxu0 0.0
    %1320 = vmatprep.subr.mxu0 0.0
    %1321 = vmatpush1.msra.mxu0 0.0
    %1322 = vmatprep.subr.mxu0 0.0
    %1323 = vmatpush1.msra.mxu0 0.0
    %1324 = vmatprep.subr.mxu0 0.0
    %1325 = vmatpush1.msra.mxu0 0.0
    %1326 = vmatprep.subr.mxu0 0.0
    %1327 = vmatpush1.msra.mxu0 0.0
    %1328 = vmatprep.subr.mxu0 0.0
    %1329 = vmatpush1.msra.mxu0 0.0
    %1330 = vmatprep.subr.mxu0 0.0
    %1331 = vmatpush1.msra.mxu0 0.0
    %1332 = vmatprep.subr.mxu0 0.0
    %1333 = vmatpush1.msra.mxu0 0.0
    %1334 = vmatprep.subr.mxu0 0.0
    %1335 = vmatpush1.msra.mxu0 0.0
    %1336 = vmatprep.subr.mxu0 0.0
    %1337 = vmatpush1.msra.mxu0 0.0
    %1338 = vmatprep.subr.mxu0 0.0
    %1339 = vmatpush1.msra.mxu0 0.0
    %1340 = vmatprep.subr.mxu0 0.0
    %1341 = vmatpush1.msra.mxu0 0.0
    %1342 = vmatprep.subr.mxu0 0.0
    %1343 = vmatpush1.msra.mxu0 0.0
    %1344 = vmatprep.subr.mxu0 0.0
    %1345 = vmatpush1.msra.mxu0 0.0
    %1346 = vmatprep.subr.mxu0 0.0
    %1347 = vmatpush1.msra.mxu0 0.0
    %1348 = vmatprep.subr.mxu0 0.0
    %1349 = vmatpush1.msra.mxu0 0.0
    %1350 = vmatprep.subr.mxu0 0.0
    %1351 = vmatpush1.msra.mxu0 0.0
    %1352 = vmatprep.subr.mxu0 0.0
    %1353 = vmatpush1.msra.mxu0 0.0
    %1354 = vmatprep.subr.mxu0 0.0
    %1355 = vmatpush1.msra.mxu0 0.0
    %1356 = vmatprep.subr.mxu0 0.0
    %1357 = vmatpush1.msra.mxu0 0.0
    %1358 = vmatprep.subr.mxu0 0.0
    %1359 = vmatpush1.msra.mxu0 0.0
    %1360 = vmatprep.subr.mxu0 0.0
    %1361 = vmatpush1.msra.mxu0 0.0
    %1362 = vmatprep.mubr.f32.mxu0 0.0
    %1363 = vmatmul.mubr.f32.gmra.mrb[0].mxu0 %v1296
    %v1364 = vpop.f32.mrb[0].mxu0
    %v1365 = vadd.f32 0.0, %v1364
    %v1366 = vpop.f32.mrb[0].mxu0
    %1367 = vdwg.mxu0
    %v1368 = vadd.f32 %v611, %v1365
    %v1369 = vxor.u32 %v1368, 2147483648
    %v1370 = vmul.f32 %v1369, 1.442695
    %v1371 = vpow.pop %v1370
    %v1372 = vadd.f32 %v1371, 1.0
    %v1373 = vrcp.pop %v1372
    %v1374 = vmul.f32 1.0, %v1373
    %v1375 = vtanh.pop %v1368
    %v1376 = vmul.f32 %v1374, %v1286
    %1378 = vrot.lane.b32.xlu0 %v1375, 64
    %v1379 = vpop.permute.xlu0 %1378
    %v1381 = vmul.f32 %v1374, %v1379
    %1383 = vrot.lane.b32.xlu0 %v1381, 32
    %v1384 = vpop.permute.xlu0 %1383
    %v1386 = vadd.f32 %v1376, %v1384
    %v1387 = vtanh.pop %v1386
    %1389 = vrot.lane.b32.xlu0 %v1387, 64
    %v1390 = vpop.permute.xlu0 %1389
    %v1392 = vmul.f32 %v1374, %v1390
    %1394 = vrot.lane.b32.xlu0 %v1392, 32
    %v1395 = vpop.permute.xlu0 %1394
    %v1396 = vsel %vm690, %v1395, 0
    %1398 = vmatprep.subr.mxu0 0.0
    %1399 = vmatpush1.msra.mxu0 %v85
    %1400 = vmatprep.subr.mxu0 0.0
    %1401 = vmatpush1.msra.mxu0 %v86
    %1402 = vmatprep.subr.mxu0 0.0
    %1403 = vmatpush1.msra.mxu0 %v87
    %1404 = vmatprep.subr.mxu0 0.0
    %1405 = vmatpush1.msra.mxu0 %v88
    %1406 = vmatprep.subr.mxu0 0.0
    %1407 = vmatpush1.msra.mxu0 0.0
    %1408 = vmatprep.subr.mxu0 0.0
    %1409 = vmatpush1.msra.mxu0 0.0
    %1410 = vmatprep.subr.mxu0 0.0
    %1411 = vmatpush1.msra.mxu0 0.0
    %1412 = vmatprep.subr.mxu0 0.0
    %1413 = vmatpush1.msra.mxu0 0.0
    %1414 = vmatprep.subr.mxu0 0.0
    %1415 = vmatpush1.msra.mxu0 0.0
    %1416 = vmatprep.subr.mxu0 0.0
    %1417 = vmatpush1.msra.mxu0 0.0
    %1418 = vmatprep.subr.mxu0 0.0
    %1419 = vmatpush1.msra.mxu0 0.0
    %1420 = vmatprep.subr.mxu0 0.0
    %1421 = vmatpush1.msra.mxu0 0.0
    %1422 = vmatprep.subr.mxu0 0.0
    %1423 = vmatpush1.msra.mxu0 0.0
    %1424 = vmatprep.subr.mxu0 0.0
    %1425 = vmatpush1.msra.mxu0 0.0
    %1426 = vmatprep.subr.mxu0 0.0
    %1427 = vmatpush1.msra.mxu0 0.0
    %1428 = vmatprep.subr.mxu0 0.0
    %1429 = vmatpush1.msra.mxu0 0.0
    %1430 = vmatprep.subr.mxu0 0.0
    %1431 = vmatpush1.msra.mxu0 0.0
    %1432 = vmatprep.subr.mxu0 0.0
    %1433 = vmatpush1.msra.mxu0 0.0
    %1434 = vmatprep.subr.mxu0 0.0
    %1435 = vmatpush1.msra.mxu0 0.0
    %1436 = vmatprep.subr.mxu0 0.0
    %1437 = vmatpush1.msra.mxu0 0.0
    %1438 = vmatprep.subr.mxu0 0.0
    %1439 = vmatpush1.msra.mxu0 0.0
    %1440 = vmatprep.subr.mxu0 0.0
    %1441 = vmatpush1.msra.mxu0 0.0
    %1442 = vmatprep.subr.mxu0 0.0
    %1443 = vmatpush1.msra.mxu0 0.0
    %1444 = vmatprep.subr.mxu0 0.0
    %1445 = vmatpush1.msra.mxu0 0.0
    %1446 = vmatprep.subr.mxu0 0.0
    %1447 = vmatpush1.msra.mxu0 0.0
    %1448 = vmatprep.subr.mxu0 0.0
    %1449 = vmatpush1.msra.mxu0 0.0
    %1450 = vmatprep.subr.mxu0 0.0
    %1451 = vmatpush1.msra.mxu0 0.0
    %1452 = vmatprep.subr.mxu0 0.0
    %1453 = vmatpush1.msra.mxu0 0.0
    %1454 = vmatprep.subr.mxu0 0.0
    %1455 = vmatpush1.msra.mxu0 0.0
    %1456 = vmatprep.subr.mxu0 0.0
    %1457 = vmatpush1.msra.mxu0 0.0
    %1458 = vmatprep.subr.mxu0 0.0
    %1459 = vmatpush1.msra.mxu0 0.0
    %1460 = vmatprep.subr.mxu0 0.0
    %1461 = vmatpush1.msra.mxu0 0.0
    %1462 = vmatprep.mubr.f32.mxu0 0.0
    %1463 = vmatmul.mubr.f32.gmra.mrb[0].mxu0 %v1396
    %v1464 = vpop.f32.mrb[0].mxu0
    %v1465 = vadd.f32 0.0, %v1464
    %v1466 = vpop.f32.mrb[0].mxu0
    %1467 = vdwg.mxu0
    %v1468 = vadd.f32 %v685, %v1465
    %v1469 = vxor.u32 %v1468, 2147483648
    %v1470 = vmul.f32 %v1469, 1.442695
    %v1471 = vpow.pop %v1470
    %v1472 = vadd.f32 %v1471, 1.0
    %v1473 = vrcp.pop %v1472
    %v1474 = vmul.f32 1.0, %v1473
    %v1475 = vtanh.pop %v1468
    %v1476 = vmul.f32 %v1474, %v1386
    %1478 = vrot.lane.b32.xlu0 %v1475, 64
    %v1479 = vpop.permute.xlu0 %1478
    %v1481 = vmul.f32 %v1474, %v1479
    %1483 = vrot.lane.b32.xlu0 %v1481, 32
    %v1484 = vpop.permute.xlu0 %1483
    %v1486 = vadd.f32 %v1476, %v1484
    %v1487 = vtanh.pop %v1486
    %1489 = vrot.lane.b32.xlu0 %v1487, 64
    %v1490 = vpop.permute.xlu0 %1489
    %v1492 = vmul.f32 %v1474, %v1490
    %1494 = vrot.lane.b32.xlu0 %v1492, 32
    %v1495 = vpop.permute.xlu0 %1494
    %vm1497 = vcmask 254976
    %1498 = vst.msk [vmem:[#allocation8] sm:$0x3] %vm1497, %v1495
    %1500 = vrot.lane.b32.xlu0 %v1486, 96
    %v1501 = vpop.permute.xlu0 %1500
    %1503 = vst.msk [vmem:[#allocation9] sm:$0x3] %vm1497, %v1501
    %v1504 = vld [vmem:[%s4] sm:$0xff]
    %v1505 = vld [vmem:[%s4 + $0x8] sm:$0xff]
    %v1506 = vld [vmem:[%s4 + $0x10] sm:$0xff]
    %v1507 = vld [vmem:[%s4 + $0x18] sm:$0xff]
    %v1508 = vld [vmem:[#allocation5] sm:$0xff]
    %v1509 = vld [vmem:[#allocation5 + $0x8] sm:$0xff]
    %v1510 = vld [vmem:[#allocation5 + $0x10] sm:$0xff]
    %v1511 = vld [vmem:[#allocation5 + $0x18] sm:$0xff]
    %v1512 = vld [vmem:[%s6] sm:$0x1]
    %v1514 = vlaneseq
    %v1515 = vshrl.u32 %v1514, 7
    %v1516 = vsub.s32 0, %v1515
    %v1517 = vrot.slane %v1512, %v1516
    %1519 = vmatprep.subr.mxu0 0.0
    %1520 = vmatpush1.msra.mxu0 %v1504
    %1521 = vmatprep.subr.mxu0 0.0
    %1522 = vmatpush1.msra.mxu0 %v1505
    %1523 = vmatprep.subr.mxu0 0.0
    %1524 = vmatpush1.msra.mxu0 %v1506
    %1525 = vmatprep.subr.mxu0 0.0
    %1526 = vmatpush1.msra.mxu0 %v1507
    %1527 = vmatprep.subr.mxu0 0.0
    %1528 = vmatpush1.msra.mxu0 0.0
    %1529 = vmatprep.subr.mxu0 0.0
    %1530 = vmatpush1.msra.mxu0 0.0
    %1531 = vmatprep.subr.mxu0 0.0
    %1532 = vmatpush1.msra.mxu0 0.0
    %1533 = vmatprep.subr.mxu0 0.0
    %1534 = vmatpush1.msra.mxu0 0.0
    %1535 = vmatprep.subr.mxu0 0.0
    %1536 = vmatpush1.msra.mxu0 0.0
    %1537 = vmatprep.subr.mxu0 0.0
    %1538 = vmatpush1.msra.mxu0 0.0
    %1539 = vmatprep.subr.mxu0 0.0
    %1540 = vmatpush1.msra.mxu0 0.0
    %1541 = vmatprep.subr.mxu0 0.0
    %1542 = vmatpush1.msra.mxu0 0.0
    %1543 = vmatprep.subr.mxu0 0.0
    %1544 = vmatpush1.msra.mxu0 0.0
    %1545 = vmatprep.subr.mxu0 0.0
    %1546 = vmatpush1.msra.mxu0 0.0
    %1547 = vmatprep.subr.mxu0 0.0
    %1548 = vmatpush1.msra.mxu0 0.0
    %1549 = vmatprep.subr.mxu0 0.0
    %1550 = vmatpush1.msra.mxu0 0.0
    %1551 = vmatprep.subr.mxu0 0.0
    %1552 = vmatpush1.msra.mxu0 0.0
    %1553 = vmatprep.subr.mxu0 0.0
    %1554 = vmatpush1.msra.mxu0 0.0
    %1555 = vmatprep.subr.mxu0 0.0
    %1556 = vmatpush1.msra.mxu0 0.0
    %1557 = vmatprep.subr.mxu0 0.0
    %1558 = vmatpush1.msra.mxu0 0.0
    %1559 = vmatprep.subr.mxu0 0.0
    %1560 = vmatpush1.msra.mxu0 0.0
    %1561 = vmatprep.subr.mxu0 0.0
    %1562 = vmatpush1.msra.mxu0 0.0
    %1563 = vmatprep.subr.mxu0 0.0
    %1564 = vmatpush1.msra.mxu0 0.0
    %1565 = vmatprep.subr.mxu0 0.0
    %1566 = vmatpush1.msra.mxu0 0.0
    %1567 = vmatprep.subr.mxu0 0.0
    %1568 = vmatpush1.msra.mxu0 0.0
    %1569 = vmatprep.subr.mxu0 0.0
    %1570 = vmatpush1.msra.mxu0 0.0
    %1571 = vmatprep.subr.mxu0 0.0
    %1572 = vmatpush1.msra.mxu0 0.0
    %1573 = vmatprep.subr.mxu0 0.0
    %1574 = vmatpush1.msra.mxu0 0.0
    %1575 = vmatprep.subr.mxu0 0.0
    %1576 = vmatpush1.msra.mxu0 0.0
    %1577 = vmatprep.subr.mxu0 0.0
    %1578 = vmatpush1.msra.mxu0 0.0
    %1579 = vmatprep.subr.mxu0 0.0
    %1580 = vmatpush1.msra.mxu0 0.0
    %1581 = vmatprep.subr.mxu0 0.0
    %1582 = vmatpush1.msra.mxu0 0.0
    %1583 = vmatprep.mubr.f32.mxu0 0.0
    %1584 = vmatmul.mubr.f32.gmra.mrb[0].mxu0 %v796
    %v1585 = vpop.f32.mrb[0].mxu0
    %v1586 = vadd.f32 %v1517, %v1585
    %v1587 = vpop.f32.mrb[0].mxu0
    %1588 = vdwg.mxu0
    %1589 = vmatprep.subr.mxu0 0.0
    %1590 = vmatpush1.msra.mxu0 %v1504
    %1591 = vmatprep.subr.mxu0 0.0
    %1592 = vmatpush1.msra.mxu0 %v1505
    %1593 = vmatprep.subr.mxu0 0.0
    %1594 = vmatpush1.msra.mxu0 %v1506
    %1595 = vmatprep.subr.mxu0 0.0
    %1596 = vmatpush1.msra.mxu0 %v1507
    %1597 = vmatprep.subr.mxu0 0.0
    %1598 = vmatpush1.msra.mxu0 0.0
    %1599 = vmatprep.subr.mxu0 0.0
    %1600 = vmatpush1.msra.mxu0 0.0
    %1601 = vmatprep.subr.mxu0 0.0
    %1602 = vmatpush1.msra.mxu0 0.0
    %1603 = vmatprep.subr.mxu0 0.0
    %1604 = vmatpush1.msra.mxu0 0.0
    %1605 = vmatprep.subr.mxu0 0.0
    %1606 = vmatpush1.msra.mxu0 0.0
    %1607 = vmatprep.subr.mxu0 0.0
    %1608 = vmatpush1.msra.mxu0 0.0
    %1609 = vmatprep.subr.mxu0 0.0
    %1610 = vmatpush1.msra.mxu0 0.0
    %1611 = vmatprep.subr.mxu0 0.0
    %1612 = vmatpush1.msra.mxu0 0.0
    %1613 = vmatprep.subr.mxu0 0.0
    %1614 = vmatpush1.msra.mxu0 0.0
    %1615 = vmatprep.subr.mxu0 0.0
    %1616 = vmatpush1.msra.mxu0 0.0
    %1617 = vmatprep.subr.mxu0 0.0
    %1618 = vmatpush1.msra.mxu0 0.0
    %1619 = vmatprep.subr.mxu0 0.0
    %1620 = vmatpush1.msra.mxu0 0.0
    %1621 = vmatprep.subr.mxu0 0.0
    %1622 = vmatpush1.msra.mxu0 0.0
    %1623 = vmatprep.subr.mxu0 0.0
    %1624 = vmatpush1.msra.mxu0 0.0
    %1625 = vmatprep.subr.mxu0 0.0
    %1626 = vmatpush1.msra.mxu0 0.0
    %1627 = vmatprep.subr.mxu0 0.0
    %1628 = vmatpush1.msra.mxu0 0.0
    %1629 = vmatprep.subr.mxu0 0.0
    %1630 = vmatpush1.msra.mxu0 0.0
    %1631 = vmatprep.subr.mxu0 0.0
    %1632 = vmatpush1.msra.mxu0 0.0
    %1633 = vmatprep.subr.mxu0 0.0
    %1634 = vmatpush1.msra.mxu0 0.0
    %1635 = vmatprep.subr.mxu0 0.0
    %1636 = vmatpush1.msra.mxu0 0.0
    %1637 = vmatprep.subr.mxu0 0.0
    %1638 = vmatpush1.msra.mxu0 0.0
    %1639 = vmatprep.subr.mxu0 0.0
    %1640 = vmatpush1.msra.mxu0 0.0
    %1641 = vmatprep.subr.mxu0 0.0
    %1642 = vmatpush1.msra.mxu0 0.0
    %1643 = vmatprep.subr.mxu0 0.0
    %1644 = vmatpush1.msra.mxu0 0.0
    %1645 = vmatprep.subr.mxu0 0.0
    %1646 = vmatpush1.msra.mxu0 0.0
    %1647 = vmatprep.subr.mxu0 0.0
    %1648 = vmatpush1.msra.mxu0 0.0
    %1649 = vmatprep.subr.mxu0 0.0
    %1650 = vmatpush1.msra.mxu0 0.0
    %1651 = vmatprep.subr.mxu0 0.0
    %1652 = vmatpush1.msra.mxu0 0.0
    %1653 = vmatprep.mubr.f32.mxu0 0.0
    %1654 = vmatmul.mubr.f32.gmra.mrb[0].mxu0 %v896
    %v1655 = vpop.f32.mrb[0].mxu0
    %v1656 = vadd.f32 %v1517, %v1655
    %v1657 = vpop.f32.mrb[0].mxu0
    %1658 = vdwg.mxu0
    %1659 = vmatprep.subr.mxu0 0.0
    %1660 = vmatpush1.msra.mxu0 %v1504
    %1661 = vmatprep.subr.mxu0 0.0
    %1662 = vmatpush1.msra.mxu0 %v1505
    %1663 = vmatprep.subr.mxu0 0.0
    %1664 = vmatpush1.msra.mxu0 %v1506
    %1665 = vmatprep.subr.mxu0 0.0
    %1666 = vmatpush1.msra.mxu0 %v1507
    %1667 = vmatprep.subr.mxu0 0.0
    %1668 = vmatpush1.msra.mxu0 0.0
    %1669 = vmatprep.subr.mxu0 0.0
    %1670 = vmatpush1.msra.mxu0 0.0
    %1671 = vmatprep.subr.mxu0 0.0
    %1672 = vmatpush1.msra.mxu0 0.0
    %1673 = vmatprep.subr.mxu0 0.0
    %1674 = vmatpush1.msra.mxu0 0.0
    %1675 = vmatprep.subr.mxu0 0.0
    %1676 = vmatpush1.msra.mxu0 0.0
    %1677 = vmatprep.subr.mxu0 0.0
    %1678 = vmatpush1.msra.mxu0 0.0
    %1679 = vmatprep.subr.mxu0 0.0
    %1680 = vmatpush1.msra.mxu0 0.0
    %1681 = vmatprep.subr.mxu0 0.0
    %1682 = vmatpush1.msra.mxu0 0.0
    %1683 = vmatprep.subr.mxu0 0.0
    %1684 = vmatpush1.msra.mxu0 0.0
    %1685 = vmatprep.subr.mxu0 0.0
    %1686 = vmatpush1.msra.mxu0 0.0
    %1687 = vmatprep.subr.mxu0 0.0
    %1688 = vmatpush1.msra.mxu0 0.0
    %1689 = vmatprep.subr.mxu0 0.0
    %1690 = vmatpush1.msra.mxu0 0.0
    %1691 = vmatprep.subr.mxu0 0.0
    %1692 = vmatpush1.msra.mxu0 0.0
    %1693 = vmatprep.subr.mxu0 0.0
    %1694 = vmatpush1.msra.mxu0 0.0
    %1695 = vmatprep.subr.mxu0 0.0
    %1696 = vmatpush1.msra.mxu0 0.0
    %1697 = vmatprep.subr.mxu0 0.0
    %1698 = vmatpush1.msra.mxu0 0.0
    %1699 = vmatprep.subr.mxu0 0.0
    %1700 = vmatpush1.msra.mxu0 0.0
    %1701 = vmatprep.subr.mxu0 0.0
    %1702 = vmatpush1.msra.mxu0 0.0
    %1703 = vmatprep.subr.mxu0 0.0
    %1704 = vmatpush1.msra.mxu0 0.0
    %1705 = vmatprep.subr.mxu0 0.0
    %1706 = vmatpush1.msra.mxu0 0.0
    %1707 = vmatprep.subr.mxu0 0.0
    %1708 = vmatpush1.msra.mxu0 0.0
    %1709 = vmatprep.subr.mxu0 0.0
    %1710 = vmatpush1.msra.mxu0 0.0
    %1711 = vmatprep.subr.mxu0 0.0
    %1712 = vmatpush1.msra.mxu0 0.0
    %1713 = vmatprep.subr.mxu0 0.0
    %1714 = vmatpush1.msra.mxu0 0.0
    %1715 = vmatprep.subr.mxu0 0.0
    %1716 = vmatpush1.msra.mxu0 0.0
    %1717 = vmatprep.subr.mxu0 0.0
    %1718 = vmatpush1.msra.mxu0 0.0
    %1719 = vmatprep.subr.mxu0 0.0
    %1720 = vmatpush1.msra.mxu0 0.0
    %1721 = vmatprep.subr.mxu0 0.0
    %1722 = vmatpush1.msra.mxu0 0.0
    %1723 = vmatprep.mubr.f32.mxu0 0.0
    %1724 = vmatmul.mubr.f32.gmra.mrb[0].mxu0 %v996
    %v1725 = vpop.f32.mrb[0].mxu0
    %v1726 = vadd.f32 %v1517, %v1725
    %v1727 = vpop.f32.mrb[0].mxu0
    %1728 = vdwg.mxu0
    %1729 = vmatprep.subr.mxu0 0.0
    %1730 = vmatpush1.msra.mxu0 %v1504
    %1731 = vmatprep.subr.mxu0 0.0
    %1732 = vmatpush1.msra.mxu0 %v1505
    %1733 = vmatprep.subr.mxu0 0.0
    %1734 = vmatpush1.msra.mxu0 %v1506
    %1735 = vmatprep.subr.mxu0 0.0
    %1736 = vmatpush1.msra.mxu0 %v1507
    %1737 = vmatprep.subr.mxu0 0.0
    %1738 = vmatpush1.msra.mxu0 0.0
    %1739 = vmatprep.subr.mxu0 0.0
    %1740 = vmatpush1.msra.mxu0 0.0
    %1741 = vmatprep.subr.mxu0 0.0
    %1742 = vmatpush1.msra.mxu0 0.0
    %1743 = vmatprep.subr.mxu0 0.0
    %1744 = vmatpush1.msra.mxu0 0.0
    %1745 = vmatprep.subr.mxu0 0.0
    %1746 = vmatpush1.msra.mxu0 0.0
    %1747 = vmatprep.subr.mxu0 0.0
    %1748 = vmatpush1.msra.mxu0 0.0
    %1749 = vmatprep.subr.mxu0 0.0
    %1750 = vmatpush1.msra.mxu0 0.0
    %1751 = vmatprep.subr.mxu0 0.0
    %1752 = vmatpush1.msra.mxu0 0.0
    %1753 = vmatprep.subr.mxu0 0.0
    %1754 = vmatpush1.msra.mxu0 0.0
    %1755 = vmatprep.subr.mxu0 0.0
    %1756 = vmatpush1.msra.mxu0 0.0
    %1757 = vmatprep.subr.mxu0 0.0
    %1758 = vmatpush1.msra.mxu0 0.0
    %1759 = vmatprep.subr.mxu0 0.0
    %1760 = vmatpush1.msra.mxu0 0.0
    %1761 = vmatprep.subr.mxu0 0.0
    %1762 = vmatpush1.msra.mxu0 0.0
    %1763 = vmatprep.subr.mxu0 0.0
    %1764 = vmatpush1.msra.mxu0 0.0
    %1765 = vmatprep.subr.mxu0 0.0
    %1766 = vmatpush1.msra.mxu0 0.0
    %1767 = vmatprep.subr.mxu0 0.0
    %1768 = vmatpush1.msra.mxu0 0.0
    %1769 = vmatprep.subr.mxu0 0.0
    %1770 = vmatpush1.msra.mxu0 0.0
    %1771 = vmatprep.subr.mxu0 0.0
    %1772 = vmatpush1.msra.mxu0 0.0
    %1773 = vmatprep.subr.mxu0 0.0
    %1774 = vmatpush1.msra.mxu0 0.0
    %1775 = vmatprep.subr.mxu0 0.0
    %1776 = vmatpush1.msra.mxu0 0.0
    %1777 = vmatprep.subr.mxu0 0.0
    %1778 = vmatpush1.msra.mxu0 0.0
    %1779 = vmatprep.subr.mxu0 0.0
    %1780 = vmatpush1.msra.mxu0 0.0
    %1781 = vmatprep.subr.mxu0 0.0
    %1782 = vmatpush1.msra.mxu0 0.0
    %1783 = vmatprep.subr.mxu0 0.0
    %1784 = vmatpush1.msra.mxu0 0.0
    %1785 = vmatprep.subr.mxu0 0.0
    %1786 = vmatpush1.msra.mxu0 0.0
    %1787 = vmatprep.subr.mxu0 0.0
    %1788 = vmatpush1.msra.mxu0 0.0
    %1789 = vmatprep.subr.mxu0 0.0
    %1790 = vmatpush1.msra.mxu0 0.0
    %1791 = vmatprep.subr.mxu0 0.0
    %1792 = vmatpush1.msra.mxu0 0.0
    %1793 = vmatprep.mubr.f32.mxu0 0.0
    %1794 = vmatmul.mubr.f32.gmra.mrb[0].mxu0 %v1096
    %v1795 = vpop.f32.mrb[0].mxu0
    %v1796 = vadd.f32 %v1517, %v1795
    %v1797 = vpop.f32.mrb[0].mxu0
    %1798 = vdwg.mxu0
    %1799 = vmatprep.subr.mxu0 0.0
    %1800 = vmatpush1.msra.mxu0 %v1504
    %1801 = vmatprep.subr.mxu0 0.0
    %1802 = vmatpush1.msra.mxu0 %v1505
    %1803 = vmatprep.subr.mxu0 0.0
    %1804 = vmatpush1.msra.mxu0 %v1506
    %1805 = vmatprep.subr.mxu0 0.0
    %1806 = vmatpush1.msra.mxu0 %v1507
    %1807 = vmatprep.subr.mxu0 0.0
    %1808 = vmatpush1.msra.mxu0 0.0
    %1809 = vmatprep.subr.mxu0 0.0
    %1810 = vmatpush1.msra.mxu0 0.0
    %1811 = vmatprep.subr.mxu0 0.0
    %1812 = vmatpush1.msra.mxu0 0.0
    %1813 = vmatprep.subr.mxu0 0.0
    %1814 = vmatpush1.msra.mxu0 0.0
    %1815 = vmatprep.subr.mxu0 0.0
    %1816 = vmatpush1.msra.mxu0 0.0
    %1817 = vmatprep.subr.mxu0 0.0
    %1818 = vmatpush1.msra.mxu0 0.0
    %1819 = vmatprep.subr.mxu0 0.0
    %1820 = vmatpush1.msra.mxu0 0.0
    %1821 = vmatprep.subr.mxu0 0.0
    %1822 = vmatpush1.msra.mxu0 0.0
    %1823 = vmatprep.subr.mxu0 0.0
    %1824 = vmatpush1.msra.mxu0 0.0
    %1825 = vmatprep.subr.mxu0 0.0
    %1826 = vmatpush1.msra.mxu0 0.0
    %1827 = vmatprep.subr.mxu0 0.0
    %1828 = vmatpush1.msra.mxu0 0.0
    %1829 = vmatprep.subr.mxu0 0.0
    %1830 = vmatpush1.msra.mxu0 0.0
    %1831 = vmatprep.subr.mxu0 0.0
    %1832 = vmatpush1.msra.mxu0 0.0
    %1833 = vmatprep.subr.mxu0 0.0
    %1834 = vmatpush1.msra.mxu0 0.0
    %1835 = vmatprep.subr.mxu0 0.0
    %1836 = vmatpush1.msra.mxu0 0.0
    %1837 = vmatprep.subr.mxu0 0.0
    %1838 = vmatpush1.msra.mxu0 0.0
    %1839 = vmatprep.subr.mxu0 0.0
    %1840 = vmatpush1.msra.mxu0 0.0
    %1841 = vmatprep.subr.mxu0 0.0
    %1842 = vmatpush1.msra.mxu0 0.0
    %1843 = vmatprep.subr.mxu0 0.0
    %1844 = vmatpush1.msra.mxu0 0.0
    %1845 = vmatprep.subr.mxu0 0.0
    %1846 = vmatpush1.msra.mxu0 0.0
    %1847 = vmatprep.subr.mxu0 0.0
    %1848 = vmatpush1.msra.mxu0 0.0
    %1849 = vmatprep.subr.mxu0 0.0
    %1850 = vmatpush1.msra.mxu0 0.0
    %1851 = vmatprep.subr.mxu0 0.0
    %1852 = vmatpush1.msra.mxu0 0.0
    %1853 = vmatprep.subr.mxu0 0.0
    %1854 = vmatpush1.msra.mxu0 0.0
    %1855 = vmatprep.subr.mxu0 0.0
    %1856 = vmatpush1.msra.mxu0 0.0
    %1857 = vmatprep.subr.mxu0 0.0
    %1858 = vmatpush1.msra.mxu0 0.0
    %1859 = vmatprep.subr.mxu0 0.0
    %1860 = vmatpush1.msra.mxu0 0.0
    %1861 = vmatprep.subr.mxu0 0.0
    %1862 = vmatpush1.msra.mxu0 0.0
    %1863 = vmatprep.mubr.f32.mxu0 0.0
    %1864 = vmatmul.mubr.f32.gmra.mrb[0].mxu0 %v1196
    %v1865 = vpop.f32.mrb[0].mxu0
    %v1866 = vadd.f32 %v1517, %v1865
    %v1867 = vpop.f32.mrb[0].mxu0
    %1868 = vdwg.mxu0
    %1869 = vmatprep.subr.mxu0 0.0
    %1870 = vmatpush1.msra.mxu0 %v1504
    %1871 = vmatprep.subr.mxu0 0.0
    %1872 = vmatpush1.msra.mxu0 %v1505
    %1873 = vmatprep.subr.mxu0 0.0
    %1874 = vmatpush1.msra.mxu0 %v1506
    %1875 = vmatprep.subr.mxu0 0.0
    %1876 = vmatpush1.msra.mxu0 %v1507
    %1877 = vmatprep.subr.mxu0 0.0
    %1878 = vmatpush1.msra.mxu0 0.0
    %1879 = vmatprep.subr.mxu0 0.0
    %1880 = vmatpush1.msra.mxu0 0.0
    %1881 = vmatprep.subr.mxu0 0.0
    %1882 = vmatpush1.msra.mxu0 0.0
    %1883 = vmatprep.subr.mxu0 0.0
    %1884 = vmatpush1.msra.mxu0 0.0
    %1885 = vmatprep.subr.mxu0 0.0
    %1886 = vmatpush1.msra.mxu0 0.0
    %1887 = vmatprep.subr.mxu0 0.0
    %1888 = vmatpush1.msra.mxu0 0.0
    %1889 = vmatprep.subr.mxu0 0.0
    %1890 = vmatpush1.msra.mxu0 0.0
    %1891 = vmatprep.subr.mxu0 0.0
    %1892 = vmatpush1.msra.mxu0 0.0
    %1893 = vmatprep.subr.mxu0 0.0
    %1894 = vmatpush1.msra.mxu0 0.0
    %1895 = vmatprep.subr.mxu0 0.0
    %1896 = vmatpush1.msra.mxu0 0.0
    %1897 = vmatprep.subr.mxu0 0.0
    %1898 = vmatpush1.msra.mxu0 0.0
    %1899 = vmatprep.subr.mxu0 0.0
    %1900 = vmatpush1.msra.mxu0 0.0
    %1901 = vmatprep.subr.mxu0 0.0
    %1902 = vmatpush1.msra.mxu0 0.0
    %1903 = vmatprep.subr.mxu0 0.0
    %1904 = vmatpush1.msra.mxu0 0.0
    %1905 = vmatprep.subr.mxu0 0.0
    %1906 = vmatpush1.msra.mxu0 0.0
    %1907 = vmatprep.subr.mxu0 0.0
    %1908 = vmatpush1.msra.mxu0 0.0
    %1909 = vmatprep.subr.mxu0 0.0
    %1910 = vmatpush1.msra.mxu0 0.0
    %1911 = vmatprep.subr.mxu0 0.0
    %1912 = vmatpush1.msra.mxu0 0.0
    %1913 = vmatprep.subr.mxu0 0.0
    %1914 = vmatpush1.msra.mxu0 0.0
    %1915 = vmatprep.subr.mxu0 0.0
    %1916 = vmatpush1.msra.mxu0 0.0
    %1917 = vmatprep.subr.mxu0 0.0
    %1918 = vmatpush1.msra.mxu0 0.0
    %1919 = vmatprep.subr.mxu0 0.0
    %1920 = vmatpush1.msra.mxu0 0.0
    %1921 = vmatprep.subr.mxu0 0.0
    %1922 = vmatpush1.msra.mxu0 0.0
    %1923 = vmatprep.subr.mxu0 0.0
    %1924 = vmatpush1.msra.mxu0 0.0
    %1925 = vmatprep.subr.mxu0 0.0
    %1926 = vmatpush1.msra.mxu0 0.0
    %1927 = vmatprep.subr.mxu0 0.0
    %1928 = vmatpush1.msra.mxu0 0.0
    %1929 = vmatprep.subr.mxu0 0.0
    %1930 = vmatpush1.msra.mxu0 0.0
    %1931 = vmatprep.subr.mxu0 0.0
    %1932 = vmatpush1.msra.mxu0 0.0
    %1933 = vmatprep.mubr.f32.mxu0 0.0
    %1934 = vmatmul.mubr.f32.gmra.mrb[0].mxu0 %v1296
    %v1935 = vpop.f32.mrb[0].mxu0
    %v1936 = vadd.f32 %v1517, %v1935
    %v1937 = vpop.f32.mrb[0].mxu0
    %1938 = vdwg.mxu0
    %1939 = vmatprep.subr.mxu0 0.0
    %1940 = vmatpush1.msra.mxu0 %v1504
    %1941 = vmatprep.subr.mxu0 0.0
    %1942 = vmatpush1.msra.mxu0 %v1505
    %1943 = vmatprep.subr.mxu0 0.0
    %1944 = vmatpush1.msra.mxu0 %v1506
    %1945 = vmatprep.subr.mxu0 0.0
    %1946 = vmatpush1.msra.mxu0 %v1507
    %1947 = vmatprep.subr.mxu0 0.0
    %1948 = vmatpush1.msra.mxu0 0.0
    %1949 = vmatprep.subr.mxu0 0.0
    %1950 = vmatpush1.msra.mxu0 0.0
    %1951 = vmatprep.subr.mxu0 0.0
    %1952 = vmatpush1.msra.mxu0 0.0
    %1953 = vmatprep.subr.mxu0 0.0
    %1954 = vmatpush1.msra.mxu0 0.0
    %1955 = vmatprep.subr.mxu0 0.0
    %1956 = vmatpush1.msra.mxu0 0.0
    %1957 = vmatprep.subr.mxu0 0.0
    %1958 = vmatpush1.msra.mxu0 0.0
    %1959 = vmatprep.subr.mxu0 0.0
    %1960 = vmatpush1.msra.mxu0 0.0
    %1961 = vmatprep.subr.mxu0 0.0
    %1962 = vmatpush1.msra.mxu0 0.0
    %1963 = vmatprep.subr.mxu0 0.0
    %1964 = vmatpush1.msra.mxu0 0.0
    %1965 = vmatprep.subr.mxu0 0.0
    %1966 = vmatpush1.msra.mxu0 0.0
    %1967 = vmatprep.subr.mxu0 0.0
    %1968 = vmatpush1.msra.mxu0 0.0
    %1969 = vmatprep.subr.mxu0 0.0
    %1970 = vmatpush1.msra.mxu0 0.0
    %1971 = vmatprep.subr.mxu0 0.0
    %1972 = vmatpush1.msra.mxu0 0.0
    %1973 = vmatprep.subr.mxu0 0.0
    %1974 = vmatpush1.msra.mxu0 0.0
    %1975 = vmatprep.subr.mxu0 0.0
    %1976 = vmatpush1.msra.mxu0 0.0
    %1977 = vmatprep.subr.mxu0 0.0
    %1978 = vmatpush1.msra.mxu0 0.0
    %1979 = vmatprep.subr.mxu0 0.0
    %1980 = vmatpush1.msra.mxu0 0.0
    %1981 = vmatprep.subr.mxu0 0.0
    %1982 = vmatpush1.msra.mxu0 0.0
    %1983 = vmatprep.subr.mxu0 0.0
    %1984 = vmatpush1.msra.mxu0 0.0
    %1985 = vmatprep.subr.mxu0 0.0
    %1986 = vmatpush1.msra.mxu0 0.0
    %1987 = vmatprep.subr.mxu0 0.0
    %1988 = vmatpush1.msra.mxu0 0.0
    %1989 = vmatprep.subr.mxu0 0.0
    %1990 = vmatpush1.msra.mxu0 0.0
    %1991 = vmatprep.subr.mxu0 0.0
    %1992 = vmatpush1.msra.mxu0 0.0
    %1993 = vmatprep.subr.mxu0 0.0
    %1994 = vmatpush1.msra.mxu0 0.0
    %1995 = vmatprep.subr.mxu0 0.0
    %1996 = vmatpush1.msra.mxu0 0.0
    %1997 = vmatprep.subr.mxu0 0.0
    %1998 = vmatpush1.msra.mxu0 0.0
    %1999 = vmatprep.subr.mxu0 0.0
    %2000 = vmatpush1.msra.mxu0 0.0
    %2001 = vmatprep.subr.mxu0 0.0
    %2002 = vmatpush1.msra.mxu0 0.0
    %2003 = vmatprep.mubr.f32.mxu0 0.0
    %2004 = vmatmul.mubr.f32.gmra.mrb[0].mxu0 %v1396
    %v2005 = vpop.f32.mrb[0].mxu0
    %v2006 = vadd.f32 %v1517, %v2005
    %v2007 = vpop.f32.mrb[0].mxu0
    %2008 = vdwg.mxu0
    %v2009 = vsel %vm690, %v1495, 0
    %2011 = vmatprep.subr.mxu0 0.0
    %2012 = vmatpush1.msra.mxu0 %v1504
    %2013 = vmatprep.subr.mxu0 0.0
    %2014 = vmatpush1.msra.mxu0 %v1505
    %2015 = vmatprep.subr.mxu0 0.0
    %2016 = vmatpush1.msra.mxu0 %v1506
    %2017 = vmatprep.subr.mxu0 0.0
    %2018 = vmatpush1.msra.mxu0 %v1507
    %2019 = vmatprep.subr.mxu0 0.0
    %2020 = vmatpush1.msra.mxu0 0.0
    %2021 = vmatprep.subr.mxu0 0.0
    %2022 = vmatpush1.msra.mxu0 0.0
    %2023 = vmatprep.subr.mxu0 0.0
    %2024 = vmatpush1.msra.mxu0 0.0
    %2025 = vmatprep.subr.mxu0 0.0
    %2026 = vmatpush1.msra.mxu0 0.0
    %2027 = vmatprep.subr.mxu0 0.0
    %2028 = vmatpush1.msra.mxu0 0.0
    %2029 = vmatprep.subr.mxu0 0.0
    %2030 = vmatpush1.msra.mxu0 0.0
    %2031 = vmatprep.subr.mxu0 0.0
    %2032 = vmatpush1.msra.mxu0 0.0
    %2033 = vmatprep.subr.mxu0 0.0
    %2034 = vmatpush1.msra.mxu0 0.0
    %2035 = vmatprep.subr.mxu0 0.0
    %2036 = vmatpush1.msra.mxu0 0.0
    %2037 = vmatprep.subr.mxu0 0.0
    %2038 = vmatpush1.msra.mxu0 0.0
    %2039 = vmatprep.subr.mxu0 0.0
    %2040 = vmatpush1.msra.mxu0 0.0
    %2041 = vmatprep.subr.mxu0 0.0
    %2042 = vmatpush1.msra.mxu0 0.0
    %2043 = vmatprep.subr.mxu0 0.0
    %2044 = vmatpush1.msra.mxu0 0.0
    %2045 = vmatprep.subr.mxu0 0.0
    %2046 = vmatpush1.msra.mxu0 0.0
    %2047 = vmatprep.subr.mxu0 0.0
    %2048 = vmatpush1.msra.mxu0 0.0
    %2049 = vmatprep.subr.mxu0 0.0
    %2050 = vmatpush1.msra.mxu0 0.0
    %2051 = vmatprep.subr.mxu0 0.0
    %2052 = vmatpush1.msra.mxu0 0.0
    %2053 = vmatprep.subr.mxu0 0.0
    %2054 = vmatpush1.msra.mxu0 0.0
    %2055 = vmatprep.subr.mxu0 0.0
    %2056 = vmatpush1.msra.mxu0 0.0
    %2057 = vmatprep.subr.mxu0 0.0
    %2058 = vmatpush1.msra.mxu0 0.0
    %2059 = vmatprep.subr.mxu0 0.0
    %2060 = vmatpush1.msra.mxu0 0.0
    %2061 = vmatprep.subr.mxu0 0.0
    %2062 = vmatpush1.msra.mxu0 0.0
    %2063 = vmatprep.subr.mxu0 0.0
    %2064 = vmatpush1.msra.mxu0 0.0
    %2065 = vmatprep.subr.mxu0 0.0
    %2066 = vmatpush1.msra.mxu0 0.0
    %2067 = vmatprep.subr.mxu0 0.0
    %2068 = vmatpush1.msra.mxu0 0.0
    %2069 = vmatprep.subr.mxu0 0.0
    %2070 = vmatpush1.msra.mxu0 0.0
    %2071 = vmatprep.subr.mxu0 0.0
    %2072 = vmatpush1.msra.mxu0 0.0
    %2073 = vmatprep.subr.mxu0 0.0
    %2074 = vmatpush1.msra.mxu0 0.0
    %2075 = vmatprep.mubr.f32.mxu0 0.0
    %2076 = vmatmul.mubr.f32.gmra.mrb[0].mxu0 %v2009
    %v2077 = vpop.f32.mrb[0].mxu0
    %v2078 = vadd.f32 %v1517, %v2077
    %v2079 = vpop.f32.mrb[0].mxu0
    %2080 = vdwg.mxu0
    %s2081 = scalar_lea.vmem %s9, 2
    %v2082 = vld [vmem:[%s2081] sm:$0x3]
    %s2083 = scalar_lea.vmem %s10, 2
    %v2084 = vld [vmem:[%s2083] sm:$0x3]
    %v2086 = vsel %vm690, %v2082, 0
    %2088 = vmatprep.subr.mxu0 0.0
    %2089 = vmatpush1.msra.mxu0 %v1508
    %2090 = vmatprep.subr.mxu0 0.0
    %2091 = vmatpush1.msra.mxu0 %v1509
    %2092 = vmatprep.subr.mxu0 0.0
    %2093 = vmatpush1.msra.mxu0 %v1510
    %2094 = vmatprep.subr.mxu0 0.0
    %2095 = vmatpush1.msra.mxu0 %v1511
    %2096 = vmatprep.subr.mxu0 0.0
    %2097 = vmatpush1.msra.mxu0 0.0
    %2098 = vmatprep.subr.mxu0 0.0
    %2099 = vmatpush1.msra.mxu0 0.0
    %2100 = vmatprep.subr.mxu0 0.0
    %2101 = vmatpush1.msra.mxu0 0.0
    %2102 = vmatprep.subr.mxu0 0.0
    %2103 = vmatpush1.msra.mxu0 0.0
    %2104 = vmatprep.subr.mxu0 0.0
    %2105 = vmatpush1.msra.mxu0 0.0
    %2106 = vmatprep.subr.mxu0 0.0
    %2107 = vmatpush1.msra.mxu0 0.0
    %2108 = vmatprep.subr.mxu0 0.0
    %2109 = vmatpush1.msra.mxu0 0.0
    %2110 = vmatprep.subr.mxu0 0.0
    %2111 = vmatpush1.msra.mxu0 0.0
    %2112 = vmatprep.subr.mxu0 0.0
    %2113 = vmatpush1.msra.mxu0 0.0
    %2114 = vmatprep.subr.mxu0 0.0
    %2115 = vmatpush1.msra.mxu0 0.0
    %2116 = vmatprep.subr.mxu0 0.0
    %2117 = vmatpush1.msra.mxu0 0.0
    %2118 = vmatprep.subr.mxu0 0.0
    %2119 = vmatpush1.msra.mxu0 0.0
    %2120 = vmatprep.subr.mxu0 0.0
    %2121 = vmatpush1.msra.mxu0 0.0
    %2122 = vmatprep.subr.mxu0 0.0
    %2123 = vmatpush1.msra.mxu0 0.0
    %2124 = vmatprep.subr.mxu0 0.0
    %2125 = vmatpush1.msra.mxu0 0.0
    %2126 = vmatprep.subr.mxu0 0.0
    %2127 = vmatpush1.msra.mxu0 0.0
    %2128 = vmatprep.subr.mxu0 0.0
    %2129 = vmatpush1.msra.mxu0 0.0
    %2130 = vmatprep.subr.mxu0 0.0
    %2131 = vmatpush1.msra.mxu0 0.0
    %2132 = vmatprep.subr.mxu0 0.0
    %2133 = vmatpush1.msra.mxu0 0.0
    %2134 = vmatprep.subr.mxu0 0.0
    %2135 = vmatpush1.msra.mxu0 0.0
    %2136 = vmatprep.subr.mxu0 0.0
    %2137 = vmatpush1.msra.mxu0 0.0
    %2138 = vmatprep.subr.mxu0 0.0
    %2139 = vmatpush1.msra.mxu0 0.0
    %2140 = vmatprep.subr.mxu0 0.0
    %2141 = vmatpush1.msra.mxu0 0.0
    %2142 = vmatprep.subr.mxu0 0.0
    %2143 = vmatpush1.msra.mxu0 0.0
    %2144 = vmatprep.subr.mxu0 0.0
    %2145 = vmatpush1.msra.mxu0 0.0
    %2146 = vmatprep.subr.mxu0 0.0
    %2147 = vmatpush1.msra.mxu0 0.0
    %2148 = vmatprep.subr.mxu0 0.0
    %2149 = vmatpush1.msra.mxu0 0.0
    %2150 = vmatprep.subr.mxu0 0.0
    %2151 = vmatpush1.msra.mxu0 0.0
    %2152 = vmatprep.mubr.f32.mxu0 0.0
    %2153 = vmatmul.mubr.f32.gmra.mrb[0].mxu0 %v2086
    %v2154 = vpop.f32.mrb[0].mxu0
    %v2155 = vadd.f32 0.0, %v2154
    %v2156 = vpop.f32.mrb[0].mxu0
    %2157 = vdwg.mxu0
    %v2158 = vadd.f32 %v1586, %v2155
    %v2159 = vxor.u32 %v2158, 2147483648
    %v2160 = vmul.f32 %v2159, 1.442695
    %v2161 = vpow.pop %v2160
    %v2162 = vadd.f32 %v2161, 1.0
    %v2163 = vrcp.pop %v2162
    %v2164 = vmul.f32 1.0, %v2163
    %v2165 = vtanh.pop %v2158
    %2167 = vrot.lane.b32.xlu0 %v2084, 32
    %v2168 = vpop.permute.xlu0 %2167
    %v2170 = vmul.f32 %v2164, %v2168
    %2172 = vrot.lane.b32.xlu0 %v2165, 64
    %v2173 = vpop.permute.xlu0 %2172
    %v2175 = vmul.f32 %v2164, %v2173
    %2177 = vrot.lane.b32.xlu0 %v2175, 32
    %v2178 = vpop.permute.xlu0 %2177
    %v2180 = vadd.f32 %v2170, %v2178
    %v2181 = vtanh.pop %v2180
    %2183 = vrot.lane.b32.xlu0 %v2181, 64
    %v2184 = vpop.permute.xlu0 %2183
    %v2186 = vmul.f32 %v2164, %v2184
    %2188 = vrot.lane.b32.xlu0 %v2186, 32
    %v2189 = vpop.permute.xlu0 %2188
    %v2190 = vsel %vm690, %v2189, 0
    %2192 = vmatprep.subr.mxu0 0.0
    %2193 = vmatpush1.msra.mxu0 %v1508
    %2194 = vmatprep.subr.mxu0 0.0
    %2195 = vmatpush1.msra.mxu0 %v1509
    %2196 = vmatprep.subr.mxu0 0.0
    %2197 = vmatpush1.msra.mxu0 %v1510
    %2198 = vmatprep.subr.mxu0 0.0
    %2199 = vmatpush1.msra.mxu0 %v1511
    %2200 = vmatprep.subr.mxu0 0.0
    %2201 = vmatpush1.msra.mxu0 0.0
    %2202 = vmatprep.subr.mxu0 0.0
    %2203 = vmatpush1.msra.mxu0 0.0
    %2204 = vmatprep.subr.mxu0 0.0
    %2205 = vmatpush1.msra.mxu0 0.0
    %2206 = vmatprep.subr.mxu0 0.0
    %2207 = vmatpush1.msra.mxu0 0.0
    %2208 = vmatprep.subr.mxu0 0.0
    %2209 = vmatpush1.msra.mxu0 0.0
    %2210 = vmatprep.subr.mxu0 0.0
    %2211 = vmatpush1.msra.mxu0 0.0
    %2212 = vmatprep.subr.mxu0 0.0
    %2213 = vmatpush1.msra.mxu0 0.0
    %2214 = vmatprep.subr.mxu0 0.0
    %2215 = vmatpush1.msra.mxu0 0.0
    %2216 = vmatprep.subr.mxu0 0.0
    %2217 = vmatpush1.msra.mxu0 0.0
    %2218 = vmatprep.subr.mxu0 0.0
    %2219 = vmatpush1.msra.mxu0 0.0
    %2220 = vmatprep.subr.mxu0 0.0
    %2221 = vmatpush1.msra.mxu0 0.0
    %2222 = vmatprep.subr.mxu0 0.0
    %2223 = vmatpush1.msra.mxu0 0.0
    %2224 = vmatprep.subr.mxu0 0.0
    %2225 = vmatpush1.msra.mxu0 0.0
    %2226 = vmatprep.subr.mxu0 0.0
    %2227 = vmatpush1.msra.mxu0 0.0
    %2228 = vmatprep.subr.mxu0 0.0
    %2229 = vmatpush1.msra.mxu0 0.0
    %2230 = vmatprep.subr.mxu0 0.0
    %2231 = vmatpush1.msra.mxu0 0.0
    %2232 = vmatprep.subr.mxu0 0.0
    %2233 = vmatpush1.msra.mxu0 0.0
    %2234 = vmatprep.subr.mxu0 0.0
    %2235 = vmatpush1.msra.mxu0 0.0
    %2236 = vmatprep.subr.mxu0 0.0
    %2237 = vmatpush1.msra.mxu0 0.0
    %2238 = vmatprep.subr.mxu0 0.0
    %2239 = vmatpush1.msra.mxu0 0.0
    %2240 = vmatprep.subr.mxu0 0.0
    %2241 = vmatpush1.msra.mxu0 0.0
    %2242 = vmatprep.subr.mxu0 0.0
    %2243 = vmatpush1.msra.mxu0 0.0
    %2244 = vmatprep.subr.mxu0 0.0
    %2245 = vmatpush1.msra.mxu0 0.0
    %2246 = vmatprep.subr.mxu0 0.0
    %2247 = vmatpush1.msra.mxu0 0.0
    %2248 = vmatprep.subr.mxu0 0.0
    %2249 = vmatpush1.msra.mxu0 0.0
    %2250 = vmatprep.subr.mxu0 0.0
    %2251 = vmatpush1.msra.mxu0 0.0
    %2252 = vmatprep.subr.mxu0 0.0
    %2253 = vmatpush1.msra.mxu0 0.0
    %2254 = vmatprep.subr.mxu0 0.0
    %2255 = vmatpush1.msra.mxu0 0.0
    %2256 = vmatprep.mubr.f32.mxu0 0.0
    %2257 = vmatmul.mubr.f32.gmra.mrb[0].mxu0 %v2190
    %v2258 = vpop.f32.mrb[0].mxu0
    %v2259 = vadd.f32 0.0, %v2258
    %v2260 = vpop.f32.mrb[0].mxu0
    %2261 = vdwg.mxu0
    %v2262 = vadd.f32 %v1656, %v2259
    %v2263 = vxor.u32 %v2262, 2147483648
    %v2264 = vmul.f32 %v2263, 1.442695
    %v2265 = vpow.pop %v2264
    %v2266 = vadd.f32 %v2265, 1.0
    %v2267 = vrcp.pop %v2266
    %v2268 = vmul.f32 1.0, %v2267
    %v2269 = vtanh.pop %v2262
    %v2270 = vmul.f32 %v2268, %v2180
    %2272 = vrot.lane.b32.xlu0 %v2269, 64
    %v2273 = vpop.permute.xlu0 %2272
    %v2275 = vmul.f32 %v2268, %v2273
    %2277 = vrot.lane.b32.xlu0 %v2275, 32
    %v2278 = vpop.permute.xlu0 %2277
    %v2280 = vadd.f32 %v2270, %v2278
    %v2281 = vtanh.pop %v2280
    %2283 = vrot.lane.b32.xlu0 %v2281, 64
    %v2284 = vpop.permute.xlu0 %2283
    %v2286 = vmul.f32 %v2268, %v2284
    %2288 = vrot.lane.b32.xlu0 %v2286, 32
    %v2289 = vpop.permute.xlu0 %2288
    %v2290 = vsel %vm690, %v2289, 0
    %2292 = vmatprep.subr.mxu0 0.0
    %2293 = vmatpush1.msra.mxu0 %v1508
    %2294 = vmatprep.subr.mxu0 0.0
    %2295 = vmatpush1.msra.mxu0 %v1509
    %2296 = vmatprep.subr.mxu0 0.0
    %2297 = vmatpush1.msra.mxu0 %v1510
    %2298 = vmatprep.subr.mxu0 0.0
    %2299 = vmatpush1.msra.mxu0 %v1511
    %2300 = vmatprep.subr.mxu0 0.0
    %2301 = vmatpush1.msra.mxu0 0.0
    %2302 = vmatprep.subr.mxu0 0.0
    %2303 = vmatpush1.msra.mxu0 0.0
    %2304 = vmatprep.subr.mxu0 0.0
    %2305 = vmatpush1.msra.mxu0 0.0
    %2306 = vmatprep.subr.mxu0 0.0
    %2307 = vmatpush1.msra.mxu0 0.0
    %2308 = vmatprep.subr.mxu0 0.0
    %2309 = vmatpush1.msra.mxu0 0.0
    %2310 = vmatprep.subr.mxu0 0.0
    %2311 = vmatpush1.msra.mxu0 0.0
    %2312 = vmatprep.subr.mxu0 0.0
    %2313 = vmatpush1.msra.mxu0 0.0
    %2314 = vmatprep.subr.mxu0 0.0
    %2315 = vmatpush1.msra.mxu0 0.0
    %2316 = vmatprep.subr.mxu0 0.0
    %2317 = vmatpush1.msra.mxu0 0.0
    %2318 = vmatprep.subr.mxu0 0.0
    %2319 = vmatpush1.msra.mxu0 0.0
    %2320 = vmatprep.subr.mxu0 0.0
    %2321 = vmatpush1.msra.mxu0 0.0
    %2322 = vmatprep.subr.mxu0 0.0
    %2323 = vmatpush1.msra.mxu0 0.0
    %2324 = vmatprep.subr.mxu0 0.0
    %2325 = vmatpush1.msra.mxu0 0.0
    %2326 = vmatprep.subr.mxu0 0.0
    %2327 = vmatpush1.msra.mxu0 0.0
    %2328 = vmatprep.subr.mxu0 0.0
    %2329 = vmatpush1.msra.mxu0 0.0
    %2330 = vmatprep.subr.mxu0 0.0
    %2331 = vmatpush1.msra.mxu0 0.0
    %2332 = vmatprep.subr.mxu0 0.0
    %2333 = vmatpush1.msra.mxu0 0.0
    %2334 = vmatprep.subr.mxu0 0.0
    %2335 = vmatpush1.msra.mxu0 0.0
    %2336 = vmatprep.subr.mxu0 0.0
    %2337 = vmatpush1.msra.mxu0 0.0
    %2338 = vmatprep.subr.mxu0 0.0
    %2339 = vmatpush1.msra.mxu0 0.0
    %2340 = vmatprep.subr.mxu0 0.0
    %2341 = vmatpush1.msra.mxu0 0.0
    %2342 = vmatprep.subr.mxu0 0.0
    %2343 = vmatpush1.msra.mxu0 0.0
    %2344 = vmatprep.subr.mxu0 0.0
    %2345 = vmatpush1.msra.mxu0 0.0
    %2346 = vmatprep.subr.mxu0 0.0
    %2347 = vmatpush1.msra.mxu0 0.0
    %2348 = vmatprep.subr.mxu0 0.0
    %2349 = vmatpush1.msra.mxu0 0.0
    %2350 = vmatprep.subr.mxu0 0.0
    %2351 = vmatpush1.msra.mxu0 0.0
    %2352 = vmatprep.subr.mxu0 0.0
    %2353 = vmatpush1.msra.mxu0 0.0
    %2354 = vmatprep.subr.mxu0 0.0
    %2355 = vmatpush1.msra.mxu0 0.0
    %2356 = vmatprep.mubr.f32.mxu0 0.0
    %2357 = vmatmul.mubr.f32.gmra.mrb[0].mxu0 %v2290
    %v2358 = vpop.f32.mrb[0].mxu0
    %v2359 = vadd.f32 0.0, %v2358
    %v2360 = vpop.f32.mrb[0].mxu0
    %2361 = vdwg.mxu0
    %v2362 = vadd.f32 %v1726, %v2359
    %v2363 = vxor.u32 %v2362, 2147483648
    %v2364 = vmul.f32 %v2363, 1.442695
    %v2365 = vpow.pop %v2364
    %v2366 = vadd.f32 %v2365, 1.0
    %v2367 = vrcp.pop %v2366
    %v2368 = vmul.f32 1.0, %v2367
    %v2369 = vtanh.pop %v2362
    %v2370 = vmul.f32 %v2368, %v2280
    %2372 = vrot.lane.b32.xlu0 %v2369, 64
    %v2373 = vpop.permute.xlu0 %2372
    %v2375 = vmul.f32 %v2368, %v2373
    %2377 = vrot.lane.b32.xlu0 %v2375, 32
    %v2378 = vpop.permute.xlu0 %2377
    %v2380 = vadd.f32 %v2370, %v2378
    %v2381 = vtanh.pop %v2380
    %2383 = vrot.lane.b32.xlu0 %v2381, 64
    %v2384 = vpop.permute.xlu0 %2383
    %v2386 = vmul.f32 %v2368, %v2384
    %2388 = vrot.lane.b32.xlu0 %v2386, 32
    %v2389 = vpop.permute.xlu0 %2388
    %v2390 = vsel %vm690, %v2389, 0
    %2392 = vmatprep.subr.mxu0 0.0
    %2393 = vmatpush1.msra.mxu0 %v1508
    %2394 = vmatprep.subr.mxu0 0.0
    %2395 = vmatpush1.msra.mxu0 %v1509
    %2396 = vmatprep.subr.mxu0 0.0
    %2397 = vmatpush1.msra.mxu0 %v1510
    %2398 = vmatprep.subr.mxu0 0.0
    %2399 = vmatpush1.msra.mxu0 %v1511
    %2400 = vmatprep.subr.mxu0 0.0
    %2401 = vmatpush1.msra.mxu0 0.0
    %2402 = vmatprep.subr.mxu0 0.0
    %2403 = vmatpush1.msra.mxu0 0.0
    %2404 = vmatprep.subr.mxu0 0.0
    %2405 = vmatpush1.msra.mxu0 0.0
    %2406 = vmatprep.subr.mxu0 0.0
    %2407 = vmatpush1.msra.mxu0 0.0
    %2408 = vmatprep.subr.mxu0 0.0
    %2409 = vmatpush1.msra.mxu0 0.0
    %2410 = vmatprep.subr.mxu0 0.0
    %2411 = vmatpush1.msra.mxu0 0.0
    %2412 = vmatprep.subr.mxu0 0.0
    %2413 = vmatpush1.msra.mxu0 0.0
    %2414 = vmatprep.subr.mxu0 0.0
    %2415 = vmatpush1.msra.mxu0 0.0
    %2416 = vmatprep.subr.mxu0 0.0
    %2417 = vmatpush1.msra.mxu0 0.0
    %2418 = vmatprep.subr.mxu0 0.0
    %2419 = vmatpush1.msra.mxu0 0.0
    %2420 = vmatprep.subr.mxu0 0.0
    %2421 = vmatpush1.msra.mxu0 0.0
    %2422 = vmatprep.subr.mxu0 0.0
    %2423 = vmatpush1.msra.mxu0 0.0
    %2424 = vmatprep.subr.mxu0 0.0
    %2425 = vmatpush1.msra.mxu0 0.0
    %2426 = vmatprep.subr.mxu0 0.0
    %2427 = vmatpush1.msra.mxu0 0.0
    %2428 = vmatprep.subr.mxu0 0.0
    %2429 = vmatpush1.msra.mxu0 0.0
    %2430 = vmatprep.subr.mxu0 0.0
    %2431 = vmatpush1.msra.mxu0 0.0
    %2432 = vmatprep.subr.mxu0 0.0
    %2433 = vmatpush1.msra.mxu0 0.0
    %2434 = vmatprep.subr.mxu0 0.0
    %2435 = vmatpush1.msra.mxu0 0.0
    %2436 = vmatprep.subr.mxu0 0.0
    %2437 = vmatpush1.msra.mxu0 0.0
    %2438 = vmatprep.subr.mxu0 0.0
    %2439 = vmatpush1.msra.mxu0 0.0
    %2440 = vmatprep.subr.mxu0 0.0
    %2441 = vmatpush1.msra.mxu0 0.0
    %2442 = vmatprep.subr.mxu0 0.0
    %2443 = vmatpush1.msra.mxu0 0.0
    %2444 = vmatprep.subr.mxu0 0.0
    %2445 = vmatpush1.msra.mxu0 0.0
    %2446 = vmatprep.subr.mxu0 0.0
    %2447 = vmatpush1.msra.mxu0 0.0
    %2448 = vmatprep.subr.mxu0 0.0
    %2449 = vmatpush1.msra.mxu0 0.0
    %2450 = vmatprep.subr.mxu0 0.0
    %2451 = vmatpush1.msra.mxu0 0.0
    %2452 = vmatprep.subr.mxu0 0.0
    %2453 = vmatpush1.msra.mxu0 0.0
    %2454 = vmatprep.subr.mxu0 0.0
    %2455 = vmatpush1.msra.mxu0 0.0
    %2456 = vmatprep.mubr.f32.mxu0 0.0
    %2457 = vmatmul.mubr.f32.gmra.mrb[0].mxu0 %v2390
    %v2458 = vpop.f32.mrb[0].mxu0
    %v2459 = vadd.f32 0.0, %v2458
    %v2460 = vpop.f32.mrb[0].mxu0
    %2461 = vdwg.mxu0
    %v2462 = vadd.f32 %v1796, %v2459
    %v2463 = vxor.u32 %v2462, 2147483648
    %v2464 = vmul.f32 %v2463, 1.442695
    %v2465 = vpow.pop %v2464
    %v2466 = vadd.f32 %v2465, 1.0
    %v2467 = vrcp.pop %v2466
    %v2468 = vmul.f32 1.0, %v2467
    %v2469 = vtanh.pop %v2462
    %v2470 = vmul.f32 %v2468, %v2380
    %2472 = vrot.lane.b32.xlu0 %v2469, 64
    %v2473 = vpop.permute.xlu0 %2472
    %v2475 = vmul.f32 %v2468, %v2473
    %2477 = vrot.lane.b32.xlu0 %v2475, 32
    %v2478 = vpop.permute.xlu0 %2477
    %v2480 = vadd.f32 %v2470, %v2478
    %v2481 = vtanh.pop %v2480
    %2483 = vrot.lane.b32.xlu0 %v2481, 64
    %v2484 = vpop.permute.xlu0 %2483
    %v2486 = vmul.f32 %v2468, %v2484
    %2488 = vrot.lane.b32.xlu0 %v2486, 32
    %v2489 = vpop.permute.xlu0 %2488
    %v2490 = vsel %vm690, %v2489, 0
    %2492 = vmatprep.subr.mxu0 0.0
    %2493 = vmatpush1.msra.mxu0 %v1508
    %2494 = vmatprep.subr.mxu0 0.0
    %2495 = vmatpush1.msra.mxu0 %v1509
    %2496 = vmatprep.subr.mxu0 0.0
    %2497 = vmatpush1.msra.mxu0 %v1510
    %2498 = vmatprep.subr.mxu0 0.0
    %2499 = vmatpush1.msra.mxu0 %v1511
    %2500 = vmatprep.subr.mxu0 0.0
    %2501 = vmatpush1.msra.mxu0 0.0
    %2502 = vmatprep.subr.mxu0 0.0
    %2503 = vmatpush1.msra.mxu0 0.0
    %2504 = vmatprep.subr.mxu0 0.0
    %2505 = vmatpush1.msra.mxu0 0.0
    %2506 = vmatprep.subr.mxu0 0.0
    %2507 = vmatpush1.msra.mxu0 0.0
    %2508 = vmatprep.subr.mxu0 0.0
    %2509 = vmatpush1.msra.mxu0 0.0
    %2510 = vmatprep.subr.mxu0 0.0
    %2511 = vmatpush1.msra.mxu0 0.0
    %2512 = vmatprep.subr.mxu0 0.0
    %2513 = vmatpush1.msra.mxu0 0.0
    %2514 = vmatprep.subr.mxu0 0.0
    %2515 = vmatpush1.msra.mxu0 0.0
    %2516 = vmatprep.subr.mxu0 0.0
    %2517 = vmatpush1.msra.mxu0 0.0
    %2518 = vmatprep.subr.mxu0 0.0
    %2519 = vmatpush1.msra.mxu0 0.0
    %2520 = vmatprep.subr.mxu0 0.0
    %2521 = vmatpush1.msra.mxu0 0.0
    %2522 = vmatprep.subr.mxu0 0.0
    %2523 = vmatpush1.msra.mxu0 0.0
    %2524 = vmatprep.subr.mxu0 0.0
    %2525 = vmatpush1.msra.mxu0 0.0
    %2526 = vmatprep.subr.mxu0 0.0
    %2527 = vmatpush1.msra.mxu0 0.0
    %2528 = vmatprep.subr.mxu0 0.0
    %2529 = vmatpush1.msra.mxu0 0.0
    %2530 = vmatprep.subr.mxu0 0.0
    %2531 = vmatpush1.msra.mxu0 0.0
    %2532 = vmatprep.subr.mxu0 0.0
    %2533 = vmatpush1.msra.mxu0 0.0
    %2534 = vmatprep.subr.mxu0 0.0
    %2535 = vmatpush1.msra.mxu0 0.0
    %2536 = vmatprep.subr.mxu0 0.0
    %2537 = vmatpush1.msra.mxu0 0.0
    %2538 = vmatprep.subr.mxu0 0.0
    %2539 = vmatpush1.msra.mxu0 0.0
    %2540 = vmatprep.subr.mxu0 0.0
    %2541 = vmatpush1.msra.mxu0 0.0
    %2542 = vmatprep.subr.mxu0 0.0
    %2543 = vmatpush1.msra.mxu0 0.0
    %2544 = vmatprep.subr.mxu0 0.0
    %2545 = vmatpush1.msra.mxu0 0.0
    %2546 = vmatprep.subr.mxu0 0.0
    %2547 = vmatpush1.msra.mxu0 0.0
    %2548 = vmatprep.subr.mxu0 0.0
    %2549 = vmatpush1.msra.mxu0 0.0
    %2550 = vmatprep.subr.mxu0 0.0
    %2551 = vmatpush1.msra.mxu0 0.0
    %2552 = vmatprep.subr.mxu0 0.0
    %2553 = vmatpush1.msra.mxu0 0.0
    %2554 = vmatprep.subr.mxu0 0.0
    %2555 = vmatpush1.msra.mxu0 0.0
    %2556 = vmatprep.mubr.f32.mxu0 0.0
    %2557 = vmatmul.mubr.f32.gmra.mrb[0].mxu0 %v2490
    %v2558 = vpop.f32.mrb[0].mxu0
    %v2559 = vadd.f32 0.0, %v2558
    %v2560 = vpop.f32.mrb[0].mxu0
    %2561 = vdwg.mxu0
    %v2562 = vadd.f32 %v1866, %v2559
    %v2563 = vxor.u32 %v2562, 2147483648
    %v2564 = vmul.f32 %v2563, 1.442695
    %v2565 = vpow.pop %v2564
    %v2566 = vadd.f32 %v2565, 1.0
    %v2567 = vrcp.pop %v2566
    %v2568 = vmul.f32 1.0, %v2567
    %v2569 = vtanh.pop %v2562
    %v2570 = vmul.f32 %v2568, %v2480
    %2572 = vrot.lane.b32.xlu0 %v2569, 64
    %v2573 = vpop.permute.xlu0 %2572
    %v2575 = vmul.f32 %v2568, %v2573
    %2577 = vrot.lane.b32.xlu0 %v2575, 32
    %v2578 = vpop.permute.xlu0 %2577
    %v2580 = vadd.f32 %v2570, %v2578
    %v2581 = vtanh.pop %v2580
    %2583 = vrot.lane.b32.xlu0 %v2581, 64
    %v2584 = vpop.permute.xlu0 %2583
    %v2586 = vmul.f32 %v2568, %v2584
    %2588 = vrot.lane.b32.xlu0 %v2586, 32
    %v2589 = vpop.permute.xlu0 %2588
    %v2590 = vsel %vm690, %v2589, 0
    %2592 = vmatprep.subr.mxu0 0.0
    %2593 = vmatpush1.msra.mxu0 %v1508
    %2594 = vmatprep.subr.mxu0 0.0
    %2595 = vmatpush1.msra.mxu0 %v1509
    %2596 = vmatprep.subr.mxu0 0.0
    %2597 = vmatpush1.msra.mxu0 %v1510
    %2598 = vmatprep.subr.mxu0 0.0
    %2599 = vmatpush1.msra.mxu0 %v1511
    %2600 = vmatprep.subr.mxu0 0.0
    %2601 = vmatpush1.msra.mxu0 0.0
    %2602 = vmatprep.subr.mxu0 0.0
    %2603 = vmatpush1.msra.mxu0 0.0
    %2604 = vmatprep.subr.mxu0 0.0
    %2605 = vmatpush1.msra.mxu0 0.0
    %2606 = vmatprep.subr.mxu0 0.0
    %2607 = vmatpush1.msra.mxu0 0.0
    %2608 = vmatprep.subr.mxu0 0.0
    %2609 = vmatpush1.msra.mxu0 0.0
    %2610 = vmatprep.subr.mxu0 0.0
    %2611 = vmatpush1.msra.mxu0 0.0
    %2612 = vmatprep.subr.mxu0 0.0
    %2613 = vmatpush1.msra.mxu0 0.0
    %2614 = vmatprep.subr.mxu0 0.0
    %2615 = vmatpush1.msra.mxu0 0.0
    %2616 = vmatprep.subr.mxu0 0.0
    %2617 = vmatpush1.msra.mxu0 0.0
    %2618 = vmatprep.subr.mxu0 0.0
    %2619 = vmatpush1.msra.mxu0 0.0
    %2620 = vmatprep.subr.mxu0 0.0
    %2621 = vmatpush1.msra.mxu0 0.0
    %2622 = vmatprep.subr.mxu0 0.0
    %2623 = vmatpush1.msra.mxu0 0.0
    %2624 = vmatprep.subr.mxu0 0.0
    %2625 = vmatpush1.msra.mxu0 0.0
    %2626 = vmatprep.subr.mxu0 0.0
    %2627 = vmatpush1.msra.mxu0 0.0
    %2628 = vmatprep.subr.mxu0 0.0
    %2629 = vmatpush1.msra.mxu0 0.0
    %2630 = vmatprep.subr.mxu0 0.0
    %2631 = vmatpush1.msra.mxu0 0.0
    %2632 = vmatprep.subr.mxu0 0.0
    %2633 = vmatpush1.msra.mxu0 0.0
    %2634 = vmatprep.subr.mxu0 0.0
    %2635 = vmatpush1.msra.mxu0 0.0
    %2636 = vmatprep.subr.mxu0 0.0
    %2637 = vmatpush1.msra.mxu0 0.0
    %2638 = vmatprep.subr.mxu0 0.0
    %2639 = vmatpush1.msra.mxu0 0.0
    %2640 = vmatprep.subr.mxu0 0.0
    %2641 = vmatpush1.msra.mxu0 0.0
    %2642 = vmatprep.subr.mxu0 0.0
    %2643 = vmatpush1.msra.mxu0 0.0
    %2644 = vmatprep.subr.mxu0 0.0
    %2645 = vmatpush1.msra.mxu0 0.0
    %2646 = vmatprep.subr.mxu0 0.0
    %2647 = vmatpush1.msra.mxu0 0.0
    %2648 = vmatprep.subr.mxu0 0.0
    %2649 = vmatpush1.msra.mxu0 0.0
    %2650 = vmatprep.subr.mxu0 0.0
    %2651 = vmatpush1.msra.mxu0 0.0
    %2652 = vmatprep.subr.mxu0 0.0
    %2653 = vmatpush1.msra.mxu0 0.0
    %2654 = vmatprep.subr.mxu0 0.0
    %2655 = vmatpush1.msra.mxu0 0.0
    %2656 = vmatprep.mubr.f32.mxu0 0.0
    %2657 = vmatmul.mubr.f32.gmra.mrb[0].mxu0 %v2590
    %v2658 = vpop.f32.mrb[0].mxu0
    %v2659 = vadd.f32 0.0, %v2658
    %v2660 = vpop.f32.mrb[0].mxu0
    %2661 = vdwg.mxu0
    %v2662 = vadd.f32 %v1936, %v2659
    %v2663 = vxor.u32 %v2662, 2147483648
    %v2664 = vmul.f32 %v2663, 1.442695
    %v2665 = vpow.pop %v2664
    %v2666 = vadd.f32 %v2665, 1.0
    %v2667 = vrcp.pop %v2666
    %v2668 = vmul.f32 1.0, %v2667
    %v2669 = vtanh.pop %v2662
    %v2670 = vmul.f32 %v2668, %v2580
    %2672 = vrot.lane.b32.xlu0 %v2669, 64
    %v2673 = vpop.permute.xlu0 %2672
    %v2675 = vmul.f32 %v2668, %v2673
    %2677 = vrot.lane.b32.xlu0 %v2675, 32
    %v2678 = vpop.permute.xlu0 %2677
    %v2680 = vadd.f32 %v2670, %v2678
    %v2681 = vtanh.pop %v2680
    %2683 = vrot.lane.b32.xlu0 %v2681, 64
    %v2684 = vpop.permute.xlu0 %2683
    %v2686 = vmul.f32 %v2668, %v2684
    %2688 = vrot.lane.b32.xlu0 %v2686, 32
    %v2689 = vpop.permute.xlu0 %2688
    %v2690 = vsel %vm690, %v2689, 0
    %2692 = vmatprep.subr.mxu0 0.0
    %2693 = vmatpush1.msra.mxu0 %v1508
    %2694 = vmatprep.subr.mxu0 0.0
    %2695 = vmatpush1.msra.mxu0 %v1509
    %2696 = vmatprep.subr.mxu0 0.0
    %2697 = vmatpush1.msra.mxu0 %v1510
    %2698 = vmatprep.subr.mxu0 0.0
    %2699 = vmatpush1.msra.mxu0 %v1511
    %2700 = vmatprep.subr.mxu0 0.0
    %2701 = vmatpush1.msra.mxu0 0.0
    %2702 = vmatprep.subr.mxu0 0.0
    %2703 = vmatpush1.msra.mxu0 0.0
    %2704 = vmatprep.subr.mxu0 0.0
    %2705 = vmatpush1.msra.mxu0 0.0
    %2706 = vmatprep.subr.mxu0 0.0
    %2707 = vmatpush1.msra.mxu0 0.0
    %2708 = vmatprep.subr.mxu0 0.0
    %2709 = vmatpush1.msra.mxu0 0.0
    %2710 = vmatprep.subr.mxu0 0.0
    %2711 = vmatpush1.msra.mxu0 0.0
    %2712 = vmatprep.subr.mxu0 0.0
    %2713 = vmatpush1.msra.mxu0 0.0
    %2714 = vmatprep.subr.mxu0 0.0
    %2715 = vmatpush1.msra.mxu0 0.0
    %2716 = vmatprep.subr.mxu0 0.0
    %2717 = vmatpush1.msra.mxu0 0.0
    %2718 = vmatprep.subr.mxu0 0.0
    %2719 = vmatpush1.msra.mxu0 0.0
    %2720 = vmatprep.subr.mxu0 0.0
    %2721 = vmatpush1.msra.mxu0 0.0
    %2722 = vmatprep.subr.mxu0 0.0
    %2723 = vmatpush1.msra.mxu0 0.0
    %2724 = vmatprep.subr.mxu0 0.0
    %2725 = vmatpush1.msra.mxu0 0.0
    %2726 = vmatprep.subr.mxu0 0.0
    %2727 = vmatpush1.msra.mxu0 0.0
    %2728 = vmatprep.subr.mxu0 0.0
    %2729 = vmatpush1.msra.mxu0 0.0
    %2730 = vmatprep.subr.mxu0 0.0
    %2731 = vmatpush1.msra.mxu0 0.0
    %2732 = vmatprep.subr.mxu0 0.0
    %2733 = vmatpush1.msra.mxu0 0.0
    %2734 = vmatprep.subr.mxu0 0.0
    %2735 = vmatpush1.msra.mxu0 0.0
    %2736 = vmatprep.subr.mxu0 0.0
    %2737 = vmatpush1.msra.mxu0 0.0
    %2738 = vmatprep.subr.mxu0 0.0
    %2739 = vmatpush1.msra.mxu0 0.0
    %2740 = vmatprep.subr.mxu0 0.0
    %2741 = vmatpush1.msra.mxu0 0.0
    %2742 = vmatprep.subr.mxu0 0.0
    %2743 = vmatpush1.msra.mxu0 0.0
    %2744 = vmatprep.subr.mxu0 0.0
    %2745 = vmatpush1.msra.mxu0 0.0
    %2746 = vmatprep.subr.mxu0 0.0
    %2747 = vmatpush1.msra.mxu0 0.0
    %2748 = vmatprep.subr.mxu0 0.0
    %2749 = vmatpush1.msra.mxu0 0.0
    %2750 = vmatprep.subr.mxu0 0.0
    %2751 = vmatpush1.msra.mxu0 0.0
    %2752 = vmatprep.subr.mxu0 0.0
    %2753 = vmatpush1.msra.mxu0 0.0
    %2754 = vmatprep.subr.mxu0 0.0
    %2755 = vmatpush1.msra.mxu0 0.0
    %2756 = vmatprep.mubr.f32.mxu0 0.0
    %2757 = vmatmul.mubr.f32.gmra.mrb[0].mxu0 %v2690
    %v2758 = vpop.f32.mrb[0].mxu0
    %v2759 = vadd.f32 0.0, %v2758
    %v2760 = vpop.f32.mrb[0].mxu0
    %2761 = vdwg.mxu0
    %v2762 = vadd.f32 %v2006, %v2759
    %v2763 = vxor.u32 %v2762, 2147483648
    %v2764 = vmul.f32 %v2763, 1.442695
    %v2765 = vpow.pop %v2764
    %v2766 = vadd.f32 %v2765, 1.0
    %v2767 = vrcp.pop %v2766
    %v2768 = vmul.f32 1.0, %v2767
    %v2769 = vtanh.pop %v2762
    %v2770 = vmul.f32 %v2768, %v2680
    %2772 = vrot.lane.b32.xlu0 %v2769, 64
    %v2773 = vpop.permute.xlu0 %2772
    %v2775 = vmul.f32 %v2768, %v2773
    %2777 = vrot.lane.b32.xlu0 %v2775, 32
    %v2778 = vpop.permute.xlu0 %2777
    %v2780 = vadd.f32 %v2770, %v2778
    %v2781 = vtanh.pop %v2780
    %2783 = vrot.lane.b32.xlu0 %v2781, 64
    %v2784 = vpop.permute.xlu0 %2783
    %v2786 = vmul.f32 %v2768, %v2784
    %2788 = vrot.lane.b32.xlu0 %v2786, 32
    %v2789 = vpop.permute.xlu0 %2788
    %v2790 = vsel %vm690, %v2789, 0
    %2792 = vmatprep.subr.mxu0 0.0
    %2793 = vmatpush1.msra.mxu0 %v1508
    %2794 = vmatprep.subr.mxu0 0.0
    %2795 = vmatpush1.msra.mxu0 %v1509
    %2796 = vmatprep.subr.mxu0 0.0
    %2797 = vmatpush1.msra.mxu0 %v1510
    %2798 = vmatprep.subr.mxu0 0.0
    %2799 = vmatpush1.msra.mxu0 %v1511
    %2800 = vmatprep.subr.mxu0 0.0
    %2801 = vmatpush1.msra.mxu0 0.0
    %2802 = vmatprep.subr.mxu0 0.0
    %2803 = vmatpush1.msra.mxu0 0.0
    %2804 = vmatprep.subr.mxu0 0.0
    %2805 = vmatpush1.msra.mxu0 0.0
    %2806 = vmatprep.subr.mxu0 0.0
    %2807 = vmatpush1.msra.mxu0 0.0
    %2808 = vmatprep.subr.mxu0 0.0
    %2809 = vmatpush1.msra.mxu0 0.0
    %2810 = vmatprep.subr.mxu0 0.0
    %2811 = vmatpush1.msra.mxu0 0.0
    %2812 = vmatprep.subr.mxu0 0.0
    %2813 = vmatpush1.msra.mxu0 0.0
    %2814 = vmatprep.subr.mxu0 0.0
    %2815 = vmatpush1.msra.mxu0 0.0
    %2816 = vmatprep.subr.mxu0 0.0
    %2817 = vmatpush1.msra.mxu0 0.0
    %2818 = vmatprep.subr.mxu0 0.0
    %2819 = vmatpush1.msra.mxu0 0.0
    %2820 = vmatprep.subr.mxu0 0.0
    %2821 = vmatpush1.msra.mxu0 0.0
    %2822 = vmatprep.subr.mxu0 0.0
    %2823 = vmatpush1.msra.mxu0 0.0
    %2824 = vmatprep.subr.mxu0 0.0
    %2825 = vmatpush1.msra.mxu0 0.0
    %2826 = vmatprep.subr.mxu0 0.0
    %2827 = vmatpush1.msra.mxu0 0.0
    %2828 = vmatprep.subr.mxu0 0.0
    %2829 = vmatpush1.msra.mxu0 0.0
    %2830 = vmatprep.subr.mxu0 0.0
    %2831 = vmatpush1.msra.mxu0 0.0
    %2832 = vmatprep.subr.mxu0 0.0
    %2833 = vmatpush1.msra.mxu0 0.0
    %2834 = vmatprep.subr.mxu0 0.0
    %2835 = vmatpush1.msra.mxu0 0.0
    %2836 = vmatprep.subr.mxu0 0.0
    %2837 = vmatpush1.msra.mxu0 0.0
    %2838 = vmatprep.subr.mxu0 0.0
    %2839 = vmatpush1.msra.mxu0 0.0
    %2840 = vmatprep.subr.mxu0 0.0
    %2841 = vmatpush1.msra.mxu0 0.0
    %2842 = vmatprep.subr.mxu0 0.0
    %2843 = vmatpush1.msra.mxu0 0.0
    %2844 = vmatprep.subr.mxu0 0.0
    %2845 = vmatpush1.msra.mxu0 0.0
    %2846 = vmatprep.subr.mxu0 0.0
    %2847 = vmatpush1.msra.mxu0 0.0
    %2848 = vmatprep.subr.mxu0 0.0
    %2849 = vmatpush1.msra.mxu0 0.0
    %2850 = vmatprep.subr.mxu0 0.0
    %2851 = vmatpush1.msra.mxu0 0.0
    %2852 = vmatprep.subr.mxu0 0.0
    %2853 = vmatpush1.msra.mxu0 0.0
    %2854 = vmatprep.subr.mxu0 0.0
    %2855 = vmatpush1.msra.mxu0 0.0
    %2856 = vmatprep.mubr.f32.mxu0 0.0
    %2857 = vmatmul.mubr.f32.gmra.mrb[0].mxu0 %v2790
    %v2858 = vpop.f32.mrb[0].mxu0
    %v2859 = vadd.f32 0.0, %v2858
    %v2860 = vpop.f32.mrb[0].mxu0
    %2861 = vdwg.mxu0
    %v2862 = vadd.f32 %v2078, %v2859
    %v2863 = vxor.u32 %v2862, 2147483648
    %v2864 = vmul.f32 %v2863, 1.442695
    %v2865 = vpow.pop %v2864
    %v2866 = vadd.f32 %v2865, 1.0
    %v2867 = vrcp.pop %v2866
    %v2868 = vmul.f32 1.0, %v2867
    %v2869 = vtanh.pop %v2862
    %v2870 = vmul.f32 %v2868, %v2780
    %2872 = vrot.lane.b32.xlu0 %v2869, 64
    %v2873 = vpop.permute.xlu0 %2872
    %v2875 = vmul.f32 %v2868, %v2873
    %2877 = vrot.lane.b32.xlu0 %v2875, 32
    %v2878 = vpop.permute.xlu0 %2877
    %v2880 = vadd.f32 %v2870, %v2878
    %v2881 = vtanh.pop %v2880
    %2883 = vrot.lane.b32.xlu0 %v2881, 64
    %v2884 = vpop.permute.xlu0 %2883
    %v2886 = vmul.f32 %v2868, %v2884
    %2888 = vrot.lane.b32.xlu0 %v2886, 32
    %v2889 = vpop.permute.xlu0 %2888
    %s2891 = scalar_lea.vmem [#allocation8], 2
    %2892 = vst.msk [vmem:[%s2891] sm:$0x3] %vm1497, %v2889
    %2894 = vrot.lane.b32.xlu0 %v2880, 96
    %v2895 = vpop.permute.xlu0 %2894
    %s2897 = scalar_lea.vmem [#allocation9], 2
    %2898 = vst.msk [vmem:[%s2897] sm:$0x3] %vm1497, %v2895
    %v2899 = vld [vmem:[%s7] sm:$0xff]
    %v2900 = vld [vmem:[%s7 + $0x8] sm:$0xff]
    %v2901 = vld [vmem:[%s7 + $0x10] sm:$0xff]
    %v2902 = vld [vmem:[%s7 + $0x18] sm:$0xff]
    %v2903 = vld [vmem:[#allocation7] sm:$0x1]
    %v2905 = vlaneseq
    %v2906 = vshrl.u32 %v2905, 7
    %v2907 = vsub.s32 0, %v2906
    %v2908 = vrot.slane %v2903, %v2907
    %2910 = vmatprep.subr.mxu0 0.0
    %2911 = vmatpush1.msra.mxu0 %v2899
    %2912 = vmatprep.subr.mxu0 0.0
    %2913 = vmatpush1.msra.mxu0 %v2900
    %2914 = vmatprep.subr.mxu0 0.0
    %2915 = vmatpush1.msra.mxu0 %v2901
    %2916 = vmatprep.subr.mxu0 0.0
    %2917 = vmatpush1.msra.mxu0 %v2902
    %2918 = vmatprep.subr.mxu0 0.0
    %2919 = vmatpush1.msra.mxu0 0.0
    %2920 = vmatprep.subr.mxu0 0.0
    %2921 = vmatpush1.msra.mxu0 0.0
    %2922 = vmatprep.subr.mxu0 0.0
    %2923 = vmatpush1.msra.mxu0 0.0
    %2924 = vmatprep.subr.mxu0 0.0
    %2925 = vmatpush1.msra.mxu0 0.0
    %2926 = vmatprep.subr.mxu0 0.0
    %2927 = vmatpush1.msra.mxu0 0.0
    %2928 = vmatprep.subr.mxu0 0.0
    %2929 = vmatpush1.msra.mxu0 0.0
    %2930 = vmatprep.subr.mxu0 0.0
    %2931 = vmatpush1.msra.mxu0 0.0
    %2932 = vmatprep.subr.mxu0 0.0
    %2933 = vmatpush1.msra.mxu0 0.0
    %2934 = vmatprep.subr.mxu0 0.0
    %2935 = vmatpush1.msra.mxu0 0.0
    %2936 = vmatprep.subr.mxu0 0.0
    %2937 = vmatpush1.msra.mxu0 0.0
    %2938 = vmatprep.subr.mxu0 0.0
    %2939 = vmatpush1.msra.mxu0 0.0
    %2940 = vmatprep.subr.mxu0 0.0
    %2941 = vmatpush1.msra.mxu0 0.0
    %2942 = vmatprep.subr.mxu0 0.0
    %2943 = vmatpush1.msra.mxu0 0.0
    %2944 = vmatprep.subr.mxu0 0.0
    %2945 = vmatpush1.msra.mxu0 0.0
    %2946 = vmatprep.subr.mxu0 0.0
    %2947 = vmatpush1.msra.mxu0 0.0
    %2948 = vmatprep.subr.mxu0 0.0
    %2949 = vmatpush1.msra.mxu0 0.0
    %2950 = vmatprep.subr.mxu0 0.0
    %2951 = vmatpush1.msra.mxu0 0.0
    %2952 = vmatprep.subr.mxu0 0.0
    %2953 = vmatpush1.msra.mxu0 0.0
    %2954 = vmatprep.subr.mxu0 0.0
    %2955 = vmatpush1.msra.mxu0 0.0
    %2956 = vmatprep.subr.mxu0 0.0
    %2957 = vmatpush1.msra.mxu0 0.0
    %2958 = vmatprep.subr.mxu0 0.0
    %2959 = vmatpush1.msra.mxu0 0.0
    %2960 = vmatprep.subr.mxu0 0.0
    %2961 = vmatpush1.msra.mxu0 0.0
    %2962 = vmatprep.subr.mxu0 0.0
    %2963 = vmatpush1.msra.mxu0 0.0
    %2964 = vmatprep.subr.mxu0 0.0
    %2965 = vmatpush1.msra.mxu0 0.0
    %2966 = vmatprep.subr.mxu0 0.0
    %2967 = vmatpush1.msra.mxu0 0.0
    %2968 = vmatprep.subr.mxu0 0.0
    %2969 = vmatpush1.msra.mxu0 0.0
    %2970 = vmatprep.subr.mxu0 0.0
    %2971 = vmatpush1.msra.mxu0 0.0
    %2972 = vmatprep.subr.mxu0 0.0
    %2973 = vmatpush1.msra.mxu0 0.0
    %2974 = vmatprep.mubr.f32.mxu0 0.0
    %2975 = vmatmul.mubr.f32.gmra.mrb[0].mxu0 %v2190
    %v2976 = vpop.f32.mrb[0].mxu0
    %v2977 = vadd.f32 %v2908, %v2976
    %v2978 = vpop.f32.mrb[0].mxu0
    %2979 = vdwg.mxu0
    %vm2980 = vcmask 123904
    %2981 = vst.msk [vmem:[%s11] sm:$0x3] %vm2980, %v2977
    %2982 = vmatprep.subr.mxu0 0.0
    %2983 = vmatpush1.msra.mxu0 %v2899
    %2984 = vmatprep.subr.mxu0 0.0
    %2985 = vmatpush1.msra.mxu0 %v2900
    %2986 = vmatprep.subr.mxu0 0.0
    %2987 = vmatpush1.msra.mxu0 %v2901
    %2988 = vmatprep.subr.mxu0 0.0
    %2989 = vmatpush1.msra.mxu0 %v2902
    %2990 = vmatprep.subr.mxu0 0.0
    %2991 = vmatpush1.msra.mxu0 0.0
    %2992 = vmatprep.subr.mxu0 0.0
    %2993 = vmatpush1.msra.mxu0 0.0
    %2994 = vmatprep.subr.mxu0 0.0
    %2995 = vmatpush1.msra.mxu0 0.0
    %2996 = vmatprep.subr.mxu0 0.0
    %2997 = vmatpush1.msra.mxu0 0.0
    %2998 = vmatprep.subr.mxu0 0.0
    %2999 = vmatpush1.msra.mxu0 0.0
    %3000 = vmatprep.subr.mxu0 0.0
    %3001 = vmatpush1.msra.mxu0 0.0
    %3002 = vmatprep.subr.mxu0 0.0
    %3003 = vmatpush1.msra.mxu0 0.0
    %3004 = vmatprep.subr.mxu0 0.0
    %3005 = vmatpush1.msra.mxu0 0.0
    %3006 = vmatprep.subr.mxu0 0.0
    %3007 = vmatpush1.msra.mxu0 0.0
    %3008 = vmatprep.subr.mxu0 0.0
    %3009 = vmatpush1.msra.mxu0 0.0
    %3010 = vmatprep.subr.mxu0 0.0
    %3011 = vmatpush1.msra.mxu0 0.0
    %3012 = vmatprep.subr.mxu0 0.0
    %3013 = vmatpush1.msra.mxu0 0.0
    %3014 = vmatprep.subr.mxu0 0.0
    %3015 = vmatpush1.msra.mxu0 0.0
    %3016 = vmatprep.subr.mxu0 0.0
    %3017 = vmatpush1.msra.mxu0 0.0
    %3018 = vmatprep.subr.mxu0 0.0
    %3019 = vmatpush1.msra.mxu0 0.0
    %3020 = vmatprep.subr.mxu0 0.0
    %3021 = vmatpush1.msra.mxu0 0.0
    %3022 = vmatprep.subr.mxu0 0.0
    %3023 = vmatpush1.msra.mxu0 0.0
    %3024 = vmatprep.subr.mxu0 0.0
    %3025 = vmatpush1.msra.mxu0 0.0
    %3026 = vmatprep.subr.mxu0 0.0
    %3027 = vmatpush1.msra.mxu0 0.0
    %3028 = vmatprep.subr.mxu0 0.0
    %3029 = vmatpush1.msra.mxu0 0.0
    %3030 = vmatprep.subr.mxu0 0.0
    %3031 = vmatpush1.msra.mxu0 0.0
    %3032 = vmatprep.subr.mxu0 0.0
    %3033 = vmatpush1.msra.mxu0 0.0
    %3034 = vmatprep.subr.mxu0 0.0
    %3035 = vmatpush1.msra.mxu0 0.0
    %3036 = vmatprep.subr.mxu0 0.0
    %3037 = vmatpush1.msra.mxu0 0.0
    %3038 = vmatprep.subr.mxu0 0.0
    %3039 = vmatpush1.msra.mxu0 0.0
    %3040 = vmatprep.subr.mxu0 0.0
    %3041 = vmatpush1.msra.mxu0 0.0
    %3042 = vmatprep.subr.mxu0 0.0
    %3043 = vmatpush1.msra.mxu0 0.0
    %3044 = vmatprep.subr.mxu0 0.0
    %3045 = vmatpush1.msra.mxu0 0.0
    %3046 = vmatprep.mubr.f32.mxu0 0.0
    %3047 = vmatmul.mubr.f32.gmra.mrb[0].mxu0 %v2290
    %v3048 = vpop.f32.mrb[0].mxu0
    %v3049 = vadd.f32 %v2908, %v3048
    %v3050 = vpop.f32.mrb[0].mxu0
    %3051 = vdwg.mxu0
    %3053 = vrot.lane.b32.xlu0 %v3049, 16
    %v3054 = vpop.permute.xlu0 %3053
    %vm3056 = vcmask 255104
    %3057 = vst.msk [vmem:[%s11] sm:$0x3] %vm3056, %v3054
    %3058 = vmatprep.subr.mxu0 0.0
    %3059 = vmatpush1.msra.mxu0 %v2899
    %3060 = vmatprep.subr.mxu0 0.0
    %3061 = vmatpush1.msra.mxu0 %v2900
    %3062 = vmatprep.subr.mxu0 0.0
    %3063 = vmatpush1.msra.mxu0 %v2901
    %3064 = vmatprep.subr.mxu0 0.0
    %3065 = vmatpush1.msra.mxu0 %v2902
    %3066 = vmatprep.subr.mxu0 0.0
    %3067 = vmatpush1.msra.mxu0 0.0
    %3068 = vmatprep.subr.mxu0 0.0
    %3069 = vmatpush1.msra.mxu0 0.0
    %3070 = vmatprep.subr.mxu0 0.0
    %3071 = vmatpush1.msra.mxu0 0.0
    %3072 = vmatprep.subr.mxu0 0.0
    %3073 = vmatpush1.msra.mxu0 0.0
    %3074 = vmatprep.subr.mxu0 0.0
    %3075 = vmatpush1.msra.mxu0 0.0
    %3076 = vmatprep.subr.mxu0 0.0
    %3077 = vmatpush1.msra.mxu0 0.0
    %3078 = vmatprep.subr.mxu0 0.0
    %3079 = vmatpush1.msra.mxu0 0.0
    %3080 = vmatprep.subr.mxu0 0.0
    %3081 = vmatpush1.msra.mxu0 0.0
    %3082 = vmatprep.subr.mxu0 0.0
    %3083 = vmatpush1.msra.mxu0 0.0
    %3084 = vmatprep.subr.mxu0 0.0
    %3085 = vmatpush1.msra.mxu0 0.0
    %3086 = vmatprep.subr.mxu0 0.0
    %3087 = vmatpush1.msra.mxu0 0.0
    %3088 = vmatprep.subr.mxu0 0.0
    %3089 = vmatpush1.msra.mxu0 0.0
    %3090 = vmatprep.subr.mxu0 0.0
    %3091 = vmatpush1.msra.mxu0 0.0
    %3092 = vmatprep.subr.mxu0 0.0
    %3093 = vmatpush1.msra.mxu0 0.0
    %3094 = vmatprep.subr.mxu0 0.0
    %3095 = vmatpush1.msra.mxu0 0.0
    %3096 = vmatprep.subr.mxu0 0.0
    %3097 = vmatpush1.msra.mxu0 0.0
    %3098 = vmatprep.subr.mxu0 0.0
    %3099 = vmatpush1.msra.mxu0 0.0
    %3100 = vmatprep.subr.mxu0 0.0
    %3101 = vmatpush1.msra.mxu0 0.0
    %3102 = vmatprep.subr.mxu0 0.0
    %3103 = vmatpush1.msra.mxu0 0.0
    %3104 = vmatprep.subr.mxu0 0.0
    %3105 = vmatpush1.msra.mxu0 0.0
    %3106 = vmatprep.subr.mxu0 0.0
    %3107 = vmatpush1.msra.mxu0 0.0
    %3108 = vmatprep.subr.mxu0 0.0
    %3109 = vmatpush1.msra.mxu0 0.0
    %3110 = vmatprep.subr.mxu0 0.0
    %3111 = vmatpush1.msra.mxu0 0.0
    %3112 = vmatprep.subr.mxu0 0.0
    %3113 = vmatpush1.msra.mxu0 0.0
    %3114 = vmatprep.subr.mxu0 0.0
    %3115 = vmatpush1.msra.mxu0 0.0
    %3116 = vmatprep.subr.mxu0 0.0
    %3117 = vmatpush1.msra.mxu0 0.0
    %3118 = vmatprep.subr.mxu0 0.0
    %3119 = vmatpush1.msra.mxu0 0.0
    %3120 = vmatprep.subr.mxu0 0.0
    %3121 = vmatpush1.msra.mxu0 0.0
    %3122 = vmatprep.mubr.f32.mxu0 0.0
    %3123 = vmatmul.mubr.f32.gmra.mrb[0].mxu0 %v2390
    %v3124 = vpop.f32.mrb[0].mxu0
    %v3125 = vadd.f32 %v2908, %v3124
    %v3126 = vpop.f32.mrb[0].mxu0
    %3127 = vdwg.mxu0
    %3129 = vrot.lane.b32.xlu0 %v3125, 32
    %v3130 = vpop.permute.xlu0 %3129
    %vm3132 = vcmask 386304
    %3133 = vst.msk [vmem:[%s11] sm:$0x3] %vm3132, %v3130
    %3134 = vmatprep.subr.mxu0 0.0
    %3135 = vmatpush1.msra.mxu0 %v2899
    %3136 = vmatprep.subr.mxu0 0.0
    %3137 = vmatpush1.msra.mxu0 %v2900
    %3138 = vmatprep.subr.mxu0 0.0
    %3139 = vmatpush1.msra.mxu0 %v2901
    %3140 = vmatprep.subr.mxu0 0.0
    %3141 = vmatpush1.msra.mxu0 %v2902
    %3142 = vmatprep.subr.mxu0 0.0
    %3143 = vmatpush1.msra.mxu0 0.0
    %3144 = vmatprep.subr.mxu0 0.0
    %3145 = vmatpush1.msra.mxu0 0.0
    %3146 = vmatprep.subr.mxu0 0.0
    %3147 = vmatpush1.msra.mxu0 0.0
    %3148 = vmatprep.subr.mxu0 0.0
    %3149 = vmatpush1.msra.mxu0 0.0
    %3150 = vmatprep.subr.mxu0 0.0
    %3151 = vmatpush1.msra.mxu0 0.0
    %3152 = vmatprep.subr.mxu0 0.0
    %3153 = vmatpush1.msra.mxu0 0.0
    %3154 = vmatprep.subr.mxu0 0.0
    %3155 = vmatpush1.msra.mxu0 0.0
    %3156 = vmatprep.subr.mxu0 0.0
    %3157 = vmatpush1.msra.mxu0 0.0
    %3158 = vmatprep.subr.mxu0 0.0
    %3159 = vmatpush1.msra.mxu0 0.0
    %3160 = vmatprep.subr.mxu0 0.0
    %3161 = vmatpush1.msra.mxu0 0.0
    %3162 = vmatprep.subr.mxu0 0.0
    %3163 = vmatpush1.msra.mxu0 0.0
    %3164 = vmatprep.subr.mxu0 0.0
    %3165 = vmatpush1.msra.mxu0 0.0
    %3166 = vmatprep.subr.mxu0 0.0
    %3167 = vmatpush1.msra.mxu0 0.0
    %3168 = vmatprep.subr.mxu0 0.0
    %3169 = vmatpush1.msra.mxu0 0.0
    %3170 = vmatprep.subr.mxu0 0.0
    %3171 = vmatpush1.msra.mxu0 0.0
    %3172 = vmatprep.subr.mxu0 0.0
    %3173 = vmatpush1.msra.mxu0 0.0
    %3174 = vmatprep.subr.mxu0 0.0
    %3175 = vmatpush1.msra.mxu0 0.0
    %3176 = vmatprep.subr.mxu0 0.0
    %3177 = vmatpush1.msra.mxu0 0.0
    %3178 = vmatprep.subr.mxu0 0.0
    %3179 = vmatpush1.msra.mxu0 0.0
    %3180 = vmatprep.subr.mxu0 0.0
    %3181 = vmatpush1.msra.mxu0 0.0
    %3182 = vmatprep.subr.mxu0 0.0
    %3183 = vmatpush1.msra.mxu0 0.0
    %3184 = vmatprep.subr.mxu0 0.0
    %3185 = vmatpush1.msra.mxu0 0.0
    %3186 = vmatprep.subr.mxu0 0.0
    %3187 = vmatpush1.msra.mxu0 0.0
    %3188 = vmatprep.subr.mxu0 0.0
    %3189 = vmatpush1.msra.mxu0 0.0
    %3190 = vmatprep.subr.mxu0 0.0
    %3191 = vmatpush1.msra.mxu0 0.0
    %3192 = vmatprep.subr.mxu0 0.0
    %3193 = vmatpush1.msra.mxu0 0.0
    %3194 = vmatprep.subr.mxu0 0.0
    %3195 = vmatpush1.msra.mxu0 0.0
    %3196 = vmatprep.subr.mxu0 0.0
    %3197 = vmatpush1.msra.mxu0 0.0
    %3198 = vmatprep.mubr.f32.mxu0 0.0
    %3199 = vmatmul.mubr.f32.gmra.mrb[0].mxu0 %v2490
    %v3200 = vpop.f32.mrb[0].mxu0
    %v3201 = vadd.f32 %v2908, %v3200
    %v3202 = vpop.f32.mrb[0].mxu0
    %3203 = vdwg.mxu0
    %3205 = vrot.lane.b32.xlu0 %v3201, 48
    %v3206 = vpop.permute.xlu0 %3205
    %vm3208 = vcmask 517504
    %3209 = vst.msk [vmem:[%s11] sm:$0x3] %vm3208, %v3206
    %3210 = vmatprep.subr.mxu0 0.0
    %3211 = vmatpush1.msra.mxu0 %v2899
    %3212 = vmatprep.subr.mxu0 0.0
    %3213 = vmatpush1.msra.mxu0 %v2900
    %3214 = vmatprep.subr.mxu0 0.0
    %3215 = vmatpush1.msra.mxu0 %v2901
    %3216 = vmatprep.subr.mxu0 0.0
    %3217 = vmatpush1.msra.mxu0 %v2902
    %3218 = vmatprep.subr.mxu0 0.0
    %3219 = vmatpush1.msra.mxu0 0.0
    %3220 = vmatprep.subr.mxu0 0.0
    %3221 = vmatpush1.msra.mxu0 0.0
    %3222 = vmatprep.subr.mxu0 0.0
    %3223 = vmatpush1.msra.mxu0 0.0
    %3224 = vmatprep.subr.mxu0 0.0
    %3225 = vmatpush1.msra.mxu0 0.0
    %3226 = vmatprep.subr.mxu0 0.0
    %3227 = vmatpush1.msra.mxu0 0.0
    %3228 = vmatprep.subr.mxu0 0.0
    %3229 = vmatpush1.msra.mxu0 0.0
    %3230 = vmatprep.subr.mxu0 0.0
    %3231 = vmatpush1.msra.mxu0 0.0
    %3232 = vmatprep.subr.mxu0 0.0
    %3233 = vmatpush1.msra.mxu0 0.0
    %3234 = vmatprep.subr.mxu0 0.0
    %3235 = vmatpush1.msra.mxu0 0.0
    %3236 = vmatprep.subr.mxu0 0.0
    %3237 = vmatpush1.msra.mxu0 0.0
    %3238 = vmatprep.subr.mxu0 0.0
    %3239 = vmatpush1.msra.mxu0 0.0
    %3240 = vmatprep.subr.mxu0 0.0
    %3241 = vmatpush1.msra.mxu0 0.0
    %3242 = vmatprep.subr.mxu0 0.0
    %3243 = vmatpush1.msra.mxu0 0.0
    %3244 = vmatprep.subr.mxu0 0.0
    %3245 = vmatpush1.msra.mxu0 0.0
    %3246 = vmatprep.subr.mxu0 0.0
    %3247 = vmatpush1.msra.mxu0 0.0
    %3248 = vmatprep.subr.mxu0 0.0
    %3249 = vmatpush1.msra.mxu0 0.0
    %3250 = vmatprep.subr.mxu0 0.0
    %3251 = vmatpush1.msra.mxu0 0.0
    %3252 = vmatprep.subr.mxu0 0.0
    %3253 = vmatpush1.msra.mxu0 0.0
    %3254 = vmatprep.subr.mxu0 0.0
    %3255 = vmatpush1.msra.mxu0 0.0
    %3256 = vmatprep.subr.mxu0 0.0
    %3257 = vmatpush1.msra.mxu0 0.0
    %3258 = vmatprep.subr.mxu0 0.0
    %3259 = vmatpush1.msra.mxu0 0.0
    %3260 = vmatprep.subr.mxu0 0.0
    %3261 = vmatpush1.msra.mxu0 0.0
    %3262 = vmatprep.subr.mxu0 0.0
    %3263 = vmatpush1.msra.mxu0 0.0
    %3264 = vmatprep.subr.mxu0 0.0
    %3265 = vmatpush1.msra.mxu0 0.0
    %3266 = vmatprep.subr.mxu0 0.0
    %3267 = vmatpush1.msra.mxu0 0.0
    %3268 = vmatprep.subr.mxu0 0.0
    %3269 = vmatpush1.msra.mxu0 0.0
    %3270 = vmatprep.subr.mxu0 0.0
    %3271 = vmatpush1.msra.mxu0 0.0
    %3272 = vmatprep.subr.mxu0 0.0
    %3273 = vmatpush1.msra.mxu0 0.0
    %3274 = vmatprep.mubr.f32.mxu0 0.0
    %3275 = vmatmul.mubr.f32.gmra.mrb[0].mxu0 %v2590
    %v3276 = vpop.f32.mrb[0].mxu0
    %v3277 = vadd.f32 %v2908, %v3276
    %v3278 = vpop.f32.mrb[0].mxu0
    %3279 = vdwg.mxu0
    %3281 = vrot.lane.b32.xlu0 %v3277, 64
    %v3282 = vpop.permute.xlu0 %3281
    %vm3284 = vcmask 648704
    %3285 = vst.msk [vmem:[%s11] sm:$0x3] %vm3284, %v3282
    %3286 = vmatprep.subr.mxu0 0.0
    %3287 = vmatpush1.msra.mxu0 %v2899
    %3288 = vmatprep.subr.mxu0 0.0
    %3289 = vmatpush1.msra.mxu0 %v2900
    %3290 = vmatprep.subr.mxu0 0.0
    %3291 = vmatpush1.msra.mxu0 %v2901
    %3292 = vmatprep.subr.mxu0 0.0
    %3293 = vmatpush1.msra.mxu0 %v2902
    %3294 = vmatprep.subr.mxu0 0.0
    %3295 = vmatpush1.msra.mxu0 0.0
    %3296 = vmatprep.subr.mxu0 0.0
    %3297 = vmatpush1.msra.mxu0 0.0
    %3298 = vmatprep.subr.mxu0 0.0
    %3299 = vmatpush1.msra.mxu0 0.0
    %3300 = vmatprep.subr.mxu0 0.0
    %3301 = vmatpush1.msra.mxu0 0.0
    %3302 = vmatprep.subr.mxu0 0.0
    %3303 = vmatpush1.msra.mxu0 0.0
    %3304 = vmatprep.subr.mxu0 0.0
    %3305 = vmatpush1.msra.mxu0 0.0
    %3306 = vmatprep.subr.mxu0 0.0
    %3307 = vmatpush1.msra.mxu0 0.0
    %3308 = vmatprep.subr.mxu0 0.0
    %3309 = vmatpush1.msra.mxu0 0.0
    %3310 = vmatprep.subr.mxu0 0.0
    %3311 = vmatpush1.msra.mxu0 0.0
    %3312 = vmatprep.subr.mxu0 0.0
    %3313 = vmatpush1.msra.mxu0 0.0
    %3314 = vmatprep.subr.mxu0 0.0
    %3315 = vmatpush1.msra.mxu0 0.0
    %3316 = vmatprep.subr.mxu0 0.0
    %3317 = vmatpush1.msra.mxu0 0.0
    %3318 = vmatprep.subr.mxu0 0.0
    %3319 = vmatpush1.msra.mxu0 0.0
    %3320 = vmatprep.subr.mxu0 0.0
    %3321 = vmatpush1.msra.mxu0 0.0
    %3322 = vmatprep.subr.mxu0 0.0
    %3323 = vmatpush1.msra.mxu0 0.0
    %3324 = vmatprep.subr.mxu0 0.0
    %3325 = vmatpush1.msra.mxu0 0.0
    %3326 = vmatprep.subr.mxu0 0.0
    %3327 = vmatpush1.msra.mxu0 0.0
    %3328 = vmatprep.subr.mxu0 0.0
    %3329 = vmatpush1.msra.mxu0 0.0
    %3330 = vmatprep.subr.mxu0 0.0
    %3331 = vmatpush1.msra.mxu0 0.0
    %3332 = vmatprep.subr.mxu0 0.0
    %3333 = vmatpush1.msra.mxu0 0.0
    %3334 = vmatprep.subr.mxu0 0.0
    %3335 = vmatpush1.msra.mxu0 0.0
    %3336 = vmatprep.subr.mxu0 0.0
    %3337 = vmatpush1.msra.mxu0 0.0
    %3338 = vmatprep.subr.mxu0 0.0
    %3339 = vmatpush1.msra.mxu0 0.0
    %3340 = vmatprep.subr.mxu0 0.0
    %3341 = vmatpush1.msra.mxu0 0.0
    %3342 = vmatprep.subr.mxu0 0.0
    %3343 = vmatpush1.msra.mxu0 0.0
    %3344 = vmatprep.subr.mxu0 0.0
    %3345 = vmatpush1.msra.mxu0 0.0
    %3346 = vmatprep.subr.mxu0 0.0
    %3347 = vmatpush1.msra.mxu0 0.0
    %3348 = vmatprep.subr.mxu0 0.0
    %3349 = vmatpush1.msra.mxu0 0.0
    %3350 = vmatprep.mubr.f32.mxu0 0.0
    %3351 = vmatmul.mubr.f32.gmra.mrb[0].mxu0 %v2690
    %v3352 = vpop.f32.mrb[0].mxu0
    %v3353 = vadd.f32 %v2908, %v3352
    %v3354 = vpop.f32.mrb[0].mxu0
    %3355 = vdwg.mxu0
    %3357 = vrot.lane.b32.xlu0 %v3353, 80
    %v3358 = vpop.permute.xlu0 %3357
    %vm3360 = vcmask 779904
    %3361 = vst.msk [vmem:[%s11] sm:$0x3] %vm3360, %v3358
    %3362 = vmatprep.subr.mxu0 0.0
    %3363 = vmatpush1.msra.mxu0 %v2899
    %3364 = vmatprep.subr.mxu0 0.0
    %3365 = vmatpush1.msra.mxu0 %v2900
    %3366 = vmatprep.subr.mxu0 0.0
    %3367 = vmatpush1.msra.mxu0 %v2901
    %3368 = vmatprep.subr.mxu0 0.0
    %3369 = vmatpush1.msra.mxu0 %v2902
    %3370 = vmatprep.subr.mxu0 0.0
    %3371 = vmatpush1.msra.mxu0 0.0
    %3372 = vmatprep.subr.mxu0 0.0
    %3373 = vmatpush1.msra.mxu0 0.0
    %3374 = vmatprep.subr.mxu0 0.0
    %3375 = vmatpush1.msra.mxu0 0.0
    %3376 = vmatprep.subr.mxu0 0.0
    %3377 = vmatpush1.msra.mxu0 0.0
    %3378 = vmatprep.subr.mxu0 0.0
    %3379 = vmatpush1.msra.mxu0 0.0
    %3380 = vmatprep.subr.mxu0 0.0
    %3381 = vmatpush1.msra.mxu0 0.0
    %3382 = vmatprep.subr.mxu0 0.0
    %3383 = vmatpush1.msra.mxu0 0.0
    %3384 = vmatprep.subr.mxu0 0.0
    %3385 = vmatpush1.msra.mxu0 0.0
    %3386 = vmatprep.subr.mxu0 0.0
    %3387 = vmatpush1.msra.mxu0 0.0
    %3388 = vmatprep.subr.mxu0 0.0
    %3389 = vmatpush1.msra.mxu0 0.0
    %3390 = vmatprep.subr.mxu0 0.0
    %3391 = vmatpush1.msra.mxu0 0.0
    %3392 = vmatprep.subr.mxu0 0.0
    %3393 = vmatpush1.msra.mxu0 0.0
    %3394 = vmatprep.subr.mxu0 0.0
    %3395 = vmatpush1.msra.mxu0 0.0
    %3396 = vmatprep.subr.mxu0 0.0
    %3397 = vmatpush1.msra.mxu0 0.0
    %3398 = vmatprep.subr.mxu0 0.0
    %3399 = vmatpush1.msra.mxu0 0.0
    %3400 = vmatprep.subr.mxu0 0.0
    %3401 = vmatpush1.msra.mxu0 0.0
    %3402 = vmatprep.subr.mxu0 0.0
    %3403 = vmatpush1.msra.mxu0 0.0
    %3404 = vmatprep.subr.mxu0 0.0
    %3405 = vmatpush1.msra.mxu0 0.0
    %3406 = vmatprep.subr.mxu0 0.0
    %3407 = vmatpush1.msra.mxu0 0.0
    %3408 = vmatprep.subr.mxu0 0.0
    %3409 = vmatpush1.msra.mxu0 0.0
    %3410 = vmatprep.subr.mxu0 0.0
    %3411 = vmatpush1.msra.mxu0 0.0
    %3412 = vmatprep.subr.mxu0 0.0
    %3413 = vmatpush1.msra.mxu0 0.0
    %3414 = vmatprep.subr.mxu0 0.0
    %3415 = vmatpush1.msra.mxu0 0.0
    %3416 = vmatprep.subr.mxu0 0.0
    %3417 = vmatpush1.msra.mxu0 0.0
    %3418 = vmatprep.subr.mxu0 0.0
    %3419 = vmatpush1.msra.mxu0 0.0
    %3420 = vmatprep.subr.mxu0 0.0
    %3421 = vmatpush1.msra.mxu0 0.0
    %3422 = vmatprep.subr.mxu0 0.0
    %3423 = vmatpush1.msra.mxu0 0.0
    %3424 = vmatprep.subr.mxu0 0.0
    %3425 = vmatpush1.msra.mxu0 0.0
    %3426 = vmatprep.mubr.f32.mxu0 0.0
    %3427 = vmatmul.mubr.f32.gmra.mrb[0].mxu0 %v2790
    %v3428 = vpop.f32.mrb[0].mxu0
    %v3429 = vadd.f32 %v2908, %v3428
    %v3430 = vpop.f32.mrb[0].mxu0
    %3431 = vdwg.mxu0
    %3433 = vrot.lane.b32.xlu0 %v3429, 96
    %v3434 = vpop.permute.xlu0 %3433
    %vm3436 = vcmask 911104
    %3437 = vst.msk [vmem:[%s11] sm:$0x3] %vm3436, %v3434
    %v3438 = vsel %vm690, %v2889, 0
    %3440 = vmatprep.subr.mxu0 0.0
    %3441 = vmatpush1.msra.mxu0 %v2899
    %3442 = vmatprep.subr.mxu0 0.0
    %3443 = vmatpush1.msra.mxu0 %v2900
    %3444 = vmatprep.subr.mxu0 0.0
    %3445 = vmatpush1.msra.mxu0 %v2901
    %3446 = vmatprep.subr.mxu0 0.0
    %3447 = vmatpush1.msra.mxu0 %v2902
    %3448 = vmatprep.subr.mxu0 0.0
    %3449 = vmatpush1.msra.mxu0 0.0
    %3450 = vmatprep.subr.mxu0 0.0
    %3451 = vmatpush1.msra.mxu0 0.0
    %3452 = vmatprep.subr.mxu0 0.0
    %3453 = vmatpush1.msra.mxu0 0.0
    %3454 = vmatprep.subr.mxu0 0.0
    %3455 = vmatpush1.msra.mxu0 0.0
    %3456 = vmatprep.subr.mxu0 0.0
    %3457 = vmatpush1.msra.mxu0 0.0
    %3458 = vmatprep.subr.mxu0 0.0
    %3459 = vmatpush1.msra.mxu0 0.0
    %3460 = vmatprep.subr.mxu0 0.0
    %3461 = vmatpush1.msra.mxu0 0.0
    %3462 = vmatprep.subr.mxu0 0.0
    %3463 = vmatpush1.msra.mxu0 0.0
    %3464 = vmatprep.subr.mxu0 0.0
    %3465 = vmatpush1.msra.mxu0 0.0
    %3466 = vmatprep.subr.mxu0 0.0
    %3467 = vmatpush1.msra.mxu0 0.0
    %3468 = vmatprep.subr.mxu0 0.0
    %3469 = vmatpush1.msra.mxu0 0.0
    %3470 = vmatprep.subr.mxu0 0.0
    %3471 = vmatpush1.msra.mxu0 0.0
    %3472 = vmatprep.subr.mxu0 0.0
    %3473 = vmatpush1.msra.mxu0 0.0
    %3474 = vmatprep.subr.mxu0 0.0
    %3475 = vmatpush1.msra.mxu0 0.0
    %3476 = vmatprep.subr.mxu0 0.0
    %3477 = vmatpush1.msra.mxu0 0.0
    %3478 = vmatprep.subr.mxu0 0.0
    %3479 = vmatpush1.msra.mxu0 0.0
    %3480 = vmatprep.subr.mxu0 0.0
    %3481 = vmatpush1.msra.mxu0 0.0
    %3482 = vmatprep.subr.mxu0 0.0
    %3483 = vmatpush1.msra.mxu0 0.0
    %3484 = vmatprep.subr.mxu0 0.0
    %3485 = vmatpush1.msra.mxu0 0.0
    %3486 = vmatprep.subr.mxu0 0.0
    %3487 = vmatpush1.msra.mxu0 0.0
    %3488 = vmatprep.subr.mxu0 0.0
    %3489 = vmatpush1.msra.mxu0 0.0
    %3490 = vmatprep.subr.mxu0 0.0
    %3491 = vmatpush1.msra.mxu0 0.0
    %3492 = vmatprep.subr.mxu0 0.0
    %3493 = vmatpush1.msra.mxu0 0.0
    %3494 = vmatprep.subr.mxu0 0.0
    %3495 = vmatpush1.msra.mxu0 0.0
    %3496 = vmatprep.subr.mxu0 0.0
    %3497 = vmatpush1.msra.mxu0 0.0
    %3498 = vmatprep.subr.mxu0 0.0
    %3499 = vmatpush1.msra.mxu0 0.0
    %3500 = vmatprep.subr.mxu0 0.0
    %3501 = vmatpush1.msra.mxu0 0.0
    %3502 = vmatprep.subr.mxu0 0.0
    %3503 = vmatpush1.msra.mxu0 0.0
    %3504 = vmatprep.mubr.f32.mxu0 0.0
    %3505 = vmatmul.mubr.f32.gmra.mrb[0].mxu0 %v3438
    %v3506 = vpop.f32.mrb[0].mxu0
    %v3507 = vadd.f32 %v2908, %v3506
    %v3508 = vpop.f32.mrb[0].mxu0
    %3509 = vdwg.mxu0
    %3511 = vrot.lane.b32.xlu0 %v3507, 112
    %v3512 = vpop.permute.xlu0 %3511
    %vm3514 = vcmask 1042304
    %3515 = vst.msk [vmem:[%s11] sm:$0x3] %vm3514, %v3512
    // Predicated region
    $region58: #{decoder_forward.1} parent=1 // pred_check
      _
    $region59: #{decoder_forward.1} parent=1 // pred_check_branch
      %3517 = sbr.rel (0) target = $region61
    $region60: #{decoder_forward.1} parent=1 // pred_region
      _
    $region61: #{decoder_forward.1} parent=1 // pred_fallthru
      _
    // Predicated region
    $region62: #{decoder_forward.1} parent=1 // pred_check
      _
    $region63: #{decoder_forward.1} parent=1 // pred_check_branch
      %3519 = sbr.rel (0) target = $region65
    $region64: #{decoder_forward.1} parent=1 // pred_region
      %s3521 = ssub.s32 64, 64
      %3522 = vsyncadd [#allocation4], %s3521
      %s3523 = sshll.u32 [#allocation8], 4
      %s3524 = int_to_ptr.vmem [resolvable:$true] %s3523
      %3529 = dma.vmem_to_hbm [thread:$0]  %s3524, 64, %s12, [#allocation4], 32, 32, 2
    $region65: #{decoder_forward.1} parent=1 // pred_fallthru
      _
    // Predicated region
    $region66: #{decoder_forward.1} parent=1 // pred_check
      _
    $region67: #{decoder_forward.1} parent=1 // pred_check_branch
      %3531 = sbr.rel (0) target = $region69
    $region68: #{decoder_forward.1} parent=1 // pred_region
      %s3533 = ssub.s32 64, 64
      %3534 = vsyncadd [#allocation10], %s3533
      %s3535 = sshll.u32 [#allocation9], 4
      %s3536 = int_to_ptr.vmem [resolvable:$true] %s3535
      %3541 = dma.vmem_to_hbm [thread:$0]  %s3536, 64, %s13, [#allocation10], 32, 32, 2
    $region69: #{decoder_forward.1} parent=1 // pred_fallthru
      _
    // Predicated region
    $region70: #{decoder_forward.1} parent=1 // pred_check
      _
    $region71: #{decoder_forward.1} parent=1 // pred_check_branch
      %3543 = sbr.rel (0) target = $region73
    $region72: #{decoder_forward.1} parent=1 // pred_region
      _
    $region73: #{decoder_forward.1} parent=1 // pred_fallthru
      _
    // Predicated region
    $region74: #{decoder_forward.1} parent=1 // pred_check
      _
    $region75: #{decoder_forward.1} parent=1 // pred_check_branch
      %3545 = sbr.rel (0) target = $region77
    $region76: #{decoder_forward.1} parent=1 // pred_region
      %3546 = dma.done [#allocation4], 64
    $region77: #{decoder_forward.1} parent=1 // pred_fallthru
      _
    // Predicated region
    $region78: #{decoder_forward.1} parent=1 // pred_check
      _
    $region79: #{decoder_forward.1} parent=1 // pred_check_branch
      %3548 = sbr.rel (0) target = $region81
    $region80: #{decoder_forward.1} parent=1 // pred_region
      %3549 = dma.done [#allocation10], 64
    $region81: #{decoder_forward.1} parent=1 // pred_fallthru
      _
    %3550 = vsyncpa [#allocation3], 1
    %3551 = vsyncpa [#allocation6], 1
    %3552 = vsyncpa [#allocation4], 1
    %3553 = vsyncpa [#allocation10], 1

</llo_original>
